<compile_context>
chip_gen: v6e
topology: v6e:2x2x1
jax: 0.10.0
libtpu: 0.0.40
codegen_flags: <defaults>
</compile_context>

<pallas_src>
import math

import jax
import jax.numpy as jnp
from jax.experimental import pallas as pl
from jax.experimental.pallas import tpu as pltpu

# ---------------- scaled-down RoBERTa config ---------------------------------
VOCAB = 512
MAX_POS = 64
PAD_IDX = 1                    # RoBERTa padding_idx (positions start at PAD_IDX+1)
TYPE_VOCAB = 1
HIDDEN = 128                   # roberta-large: 1024
NUM_LAYERS = 2                 # roberta-large: 24
NUM_HEADS = 2                  # roberta-large: 16
HEAD_DIM = HIDDEN // NUM_HEADS
INTERMEDIATE = 512             # roberta-large: 4096
NUM_CLASSES = 4
CLS_PAD = 128                  # lane-dense classifier output width
LN_EPS = 1e-5

B = 2                          # batch
S = 8                          # sequence length

# pl.reciprocal(approx=True) targets the TPU EUP; fall back to a plain divide
# when the default backend is not TPU (e.g. CPU interpret-mode runs).
_ON_TPU = jax.default_backend() == "tpu"


# ---------------- in-kernel helpers -------------------------------------------
def _layer_norm(x, g, b):
    mu = jnp.mean(x, axis=-1, keepdims=True)
    var = jnp.mean(jnp.square(x - mu), axis=-1, keepdims=True)
    return (x - mu) * jax.lax.rsqrt(var + LN_EPS) * g + b


def _gelu(x):
    # tanh approximation of gelu (erf-gelu differs by <1e-3)
    c = 0.7978845608028654  # sqrt(2/pi)
    return 0.5 * x * (1.0 + jnp.tanh(c * (x + 0.044715 * x * x * x)))


def _softmax_last(scores):
    m = jnp.max(scores, axis=-1, keepdims=True)
    p = jnp.exp(scores - m)
    denom = jnp.sum(p, axis=-1, keepdims=True)
    if _ON_TPU:
        return p * pl.reciprocal(denom, approx=True)   # EUP slot, frees the VALU
    return p / denom


# ---------------- fused Pallas kernel -----------------------------------------
def roberta_fused_kernel(
        x_emb_ref, bias_ref, emb_g_ref, emb_b_ref,
        wqkv_ref, bqkv_ref, wo_ref, bo_ref, ln1_g_ref, ln1_b_ref,
        w1_ref, b1_ref, w2_ref, b2_ref, ln2_g_ref, ln2_b_ref,
        pool_w_ref, pool_b_ref, cls_w_ref, cls_b_ref,
        logits_ref, h_ref):
    layer = pl.program_id(0)

    # ---- prologue (first grid step only): embedding LayerNorm into resident VMEM
    @pl.when(layer == 0)
    def _():
        h_ref[...] = _layer_norm(x_emb_ref[...], emb_g_ref[...], emb_b_ref[...])

    x = h_ref[...]                                            # (B*S, H) f32

    # ---- fused QKV projection: one (B*S,H)x(H,3H) MXU push (bf16 operands)
    qkv = (jnp.dot(x.astype(jnp.bfloat16), wqkv_ref[0],
                   preferred_element_type=jnp.float32) + bqkv_ref[0])
    scale = 1.0 / math.sqrt(HEAD_DIM)
    q = (qkv[:, 0 * HIDDEN:1 * HIDDEN] * scale).reshape(B, S, HIDDEN)
    k = qkv[:, 1 * HIDDEN:2 * HIDDEN].reshape(B, S, HIDDEN)
    v = qkv[:, 2 * HIDDEN:3 * HIDDEN].reshape(B, S, HIDDEN)

    bias = bias_ref[...][:, None, :]                          # (B, 1, S) additive mask

    # ---- attention: score/softmax/PV batched over B, short static loop over heads
    q_bf = q.astype(jnp.bfloat16)
    k_bf = k.astype(jnp.bfloat16)
    v_bf = v.astype(jnp.bfloat16)
    ctx_heads = []
    for h in range(NUM_HEADS):
        sl = slice(h * HEAD_DIM, (h + 1) * HEAD_DIM)
        qh, kh, vh = q_bf[:, :, sl], k_bf[:, :, sl], v_bf[:, :, sl]   # (B, S, dH)
        scores = jnp.einsum('bqd,bkd->bqk', qh, kh,
                            preferred_element_type=jnp.float32) + bias
        p = _softmax_last(scores)                              # (B, S, S) f32
        ctx_heads.append(jnp.einsum('bqk,bkd->bqd', p.astype(jnp.bfloat16), vh,
                                    preferred_element_type=jnp.float32))
    ctx = jnp.concatenate(ctx_heads, axis=-1).reshape(B * S, HIDDEN)

    # ---- full-width output projection, residual + LN
    attn = (jnp.dot(ctx.astype(jnp.bfloat16), wo_ref[0],
                    preferred_element_type=jnp.float32) + bo_ref[0])
    h1 = _layer_norm(x + attn, ln1_g_ref[0], ln1_b_ref[0])

    # ---- FFN
    ff = (jnp.dot(h1.astype(jnp.bfloat16), w1_ref[0],
                  preferred_element_type=jnp.float32) + b1_ref[0])
    ff = _gelu(ff)
    ff = (jnp.dot(ff.astype(jnp.bfloat16), w2_ref[0],
                  preferred_element_type=jnp.float32) + b2_ref[0])
    h_new = _layer_norm(h1 + ff, ln2_g_ref[0], ln2_b_ref[0])
    h_ref[...] = h_new

    # ---- epilogue (last grid step only): pooler + classifier (lane-dense out)
    @pl.when(layer == NUM_LAYERS - 1)
    def _():
        cls_tok = h_new.reshape(B, S, HIDDEN)[:, 0, :]        # (B, H) <s> token
        pooled = jnp.tanh(
            jnp.dot(cls_tok.astype(jnp.bfloat16), pool_w_ref[...],
                    preferred_element_type=jnp.float32) + pool_b_ref[...])
        logits_ref[...] = (
            jnp.dot(pooled.astype(jnp.bfloat16), cls_w_ref[...],
                    preferred_element_type=jnp.float32) + cls_b_ref[...])


# ---------------- pallas_call wrapper -----------------------------------------
def _fused_forward(x_emb, attn_bias, params):
    st = params['stacked']
    layer_args = [st['w_qkv'], st['b_qkv'], st['w_o'], st['b_o'],
                  st['ln1_g'], st['ln1_b'], st['w1'], st['b1'],
                  st['w2'], st['b2'], st['ln2_g'], st['ln2_b']]
    head_args = [x_emb, attn_bias, params['emb_ln_g'], params['emb_ln_b']]
    tail_args = [params['pool_w'], params['pool_b'],
                 params['cls_w'], params['cls_b']]

    full2d = lambda a: pl.BlockSpec(a.shape, lambda l: (0, 0))
    perlayer = lambda a: pl.BlockSpec((1,) + a.shape[1:], lambda l: (l, 0, 0))

    in_specs = ([full2d(a) for a in head_args]
                + [perlayer(a) for a in layer_args]
                + [full2d(a) for a in tail_args])

    return pl.pallas_call(
        roberta_fused_kernel,
        out_shape=jax.ShapeDtypeStruct((B, CLS_PAD), jnp.float32),
        grid=(NUM_LAYERS,),
        in_specs=in_specs,
        out_specs=pl.BlockSpec((B, CLS_PAD), lambda l: (0, 0)),
        scratch_shapes=[pltpu.VMEM((B * S, HIDDEN), jnp.float32)],
        compiler_params=pltpu.CompilerParams(
            dimension_semantics=("arbitrary",),    # layers are sequential
            vmem_limit_bytes=64 << 20),
    )(*head_args, *layer_args, *tail_args)


# ---------------- parameters & forward ----------------------------------------
def init_params(key):
    keys = iter(jax.random.split(key, 16))

    def w(shape, dtype=jnp.float32):
        return (0.02 * jax.random.normal(next(keys), shape)).astype(dtype)

    zeros = lambda s: jnp.zeros(s, jnp.float32)
    ones = lambda s: jnp.ones(s, jnp.float32)

    def stack_w(shape):   # stacked per-layer matmul weights, bf16 (halves DMA)
        return (0.02 * jax.random.normal(next(keys), (NUM_LAYERS,) + shape)
                ).astype(jnp.bfloat16)

    cls_w = jnp.zeros((HIDDEN, CLS_PAD), jnp.float32)
    cls_w = cls_w.at[:, :NUM_CLASSES].set(
        0.02 * jax.random.normal(next(keys), (HIDDEN, NUM_CLASSES)))

    return dict(
        word_emb=w((VOCAB, HIDDEN)),
        pos_emb=w((MAX_POS, HIDDEN)),
        type_emb=w((TYPE_VOCAB, HIDDEN)),
        emb_ln_g=ones((1, HIDDEN)), emb_ln_b=zeros((1, HIDDEN)),
        pool_w=w((HIDDEN, HIDDEN), dtype=jnp.bfloat16), pool_b=zeros((1, HIDDEN)),
        cls_w=cls_w.astype(jnp.bfloat16), cls_b=zeros((1, CLS_PAD)),
        stacked=dict(
            w_qkv=stack_w((HIDDEN, 3 * HIDDEN)),
            b_qkv=jnp.zeros((NUM_LAYERS, 1, 3 * HIDDEN), jnp.float32),
            w_o=stack_w((HIDDEN, HIDDEN)),
            b_o=jnp.zeros((NUM_LAYERS, 1, HIDDEN), jnp.float32),
            ln1_g=jnp.ones((NUM_LAYERS, 1, HIDDEN), jnp.float32),
            ln1_b=jnp.zeros((NUM_LAYERS, 1, HIDDEN), jnp.float32),
            w1=stack_w((HIDDEN, INTERMEDIATE)),
            b1=jnp.zeros((NUM_LAYERS, 1, INTERMEDIATE), jnp.float32),
            w2=stack_w((INTERMEDIATE, HIDDEN)),
            b2=jnp.zeros((NUM_LAYERS, 1, HIDDEN), jnp.float32),
            ln2_g=jnp.ones((NUM_LAYERS, 1, HIDDEN), jnp.float32),
            ln2_b=jnp.zeros((NUM_LAYERS, 1, HIDDEN), jnp.float32),
        ),
    )


@jax.jit
def roberta_large_forward(params, input_ids, attention_mask):
    assert input_ids.shape == (B, S)

    mask = attention_mask.astype(jnp.int32)
    # RoBERTa position ids: cumulative count of non-pad tokens, offset by pad idx.
    # TODO(synk): HF derives the non-pad mask from input_ids != padding_idx; the
    # attention_mask is used here as an equivalent non-pad indicator.
    pos_ids = jnp.clip(jnp.cumsum(mask, axis=1) * mask + PAD_IDX, 0, MAX_POS - 1)

    # Embedding gathers are glue (plain JAX); the LayerNorm runs in the kernel.
    we = jnp.take(params['word_emb'], input_ids, axis=0)       # (B,S,H)
    pe = jnp.take(params['pos_emb'], pos_ids, axis=0)
    te = params['type_emb'][0][None, None, :]                  # token_type_ids == 0
    x_emb = (we + pe + te).reshape(B * S, HIDDEN).astype(jnp.float32)

    # HF-style additive attention mask
    attn_bias = (1.0 - attention_mask.astype(jnp.float32)) * -10000.0   # (B,S)

    logits_pad = _fused_forward(x_emb, attn_bias, params)      # (B, 128)
    return logits_pad[:, :NUM_CLASSES]


if __name__ == "__main__":
    root = jax.random.PRNGKey(0)
    pkey, idkey = jax.random.split(root)
    params = init_params(pkey)

    input_ids = jax.random.randint(idkey, (B, S), 2, VOCAB, dtype=jnp.int32)
    attention_mask = jnp.array([[1] * S, [1] * (S - 2) + [0, 0]], dtype=jnp.int32)

    logits = roberta_large_forward(params, input_ids, attention_mask)
    logits = jax.block_until_ready(logits)

    assert logits.shape == (B, NUM_CLASSES), logits.shape
    assert bool(jnp.all(jnp.isfinite(logits)))
    print("KERNEL_OK")
</pallas_src>

<mosaic_0001>
module attributes {stable_mosaic.version = 11 : i64} {
  func.func @roberta_fused_kernel(%arg0: i32, %arg1: memref<16x128xf32, #tpu.memory_space<vmem>>, %arg2: memref<2x8xf32, #tpu.memory_space<vmem>>, %arg3: memref<1x128xf32, #tpu.memory_space<vmem>>, %arg4: memref<1x128xf32, #tpu.memory_space<vmem>>, %arg5: memref<1x128x384xbf16, #tpu.memory_space<vmem>>, %arg6: memref<1x1x384xf32, #tpu.memory_space<vmem>>, %arg7: memref<1x128x128xbf16, #tpu.memory_space<vmem>>, %arg8: memref<1x1x128xf32, #tpu.memory_space<vmem>>, %arg9: memref<1x1x128xf32, #tpu.memory_space<vmem>>, %arg10: memref<1x1x128xf32, #tpu.memory_space<vmem>>, %arg11: memref<1x128x512xbf16, #tpu.memory_space<vmem>>, %arg12: memref<1x1x512xf32, #tpu.memory_space<vmem>>, %arg13: memref<1x512x128xbf16, #tpu.memory_space<vmem>>, %arg14: memref<1x1x128xf32, #tpu.memory_space<vmem>>, %arg15: memref<1x1x128xf32, #tpu.memory_space<vmem>>, %arg16: memref<1x1x128xf32, #tpu.memory_space<vmem>>, %arg17: memref<128x128xbf16, #tpu.memory_space<vmem>>, %arg18: memref<1x128xf32, #tpu.memory_space<vmem>>, %arg19: memref<128x128xbf16, #tpu.memory_space<vmem>>, %arg20: memref<1x128xf32, #tpu.memory_space<vmem>>, %arg21: memref<2x128xf32, #tpu.memory_space<vmem>>, %arg22: memref<16x128xf32, #tpu.memory_space<vmem>>) attributes {dimension_semantics = [#tpu.dimension_semantics<arbitrary>], iteration_bounds = array<i64: 2>, scalar_prefetch = 0 : i64, scratch_operands = 1 : i64, tpu.core_type = #tpu.core_type<tc>, window_params = [{pipeline_mode = #tpu.pipeline_mode<synchronous>, transform_indices = @transform_0, window_bounds = array<i64: 16, 128>}, {pipeline_mode = #tpu.pipeline_mode<synchronous>, transform_indices = @transform_1, window_bounds = array<i64: 2, 8>}, {pipeline_mode = #tpu.pipeline_mode<synchronous>, transform_indices = @transform_2, window_bounds = array<i64: 1, 128>}, {pipeline_mode = #tpu.pipeline_mode<synchronous>, transform_indices = @transform_3, window_bounds = array<i64: 1, 128>}, {transform_indices = @transform_4, window_bounds = array<i64: 1, 128, 384>}, {transform_indices = @transform_5, window_bounds = array<i64: 1, 1, 384>}, {transform_indices = @transform_6, window_bounds = array<i64: 1, 128, 128>}, {transform_indices = @transform_7, window_bounds = array<i64: 1, 1, 128>}, {transform_indices = @transform_8, window_bounds = array<i64: 1, 1, 128>}, {transform_indices = @transform_9, window_bounds = array<i64: 1, 1, 128>}, {transform_indices = @transform_10, window_bounds = array<i64: 1, 128, 512>}, {transform_indices = @transform_11, window_bounds = array<i64: 1, 1, 512>}, {transform_indices = @transform_12, window_bounds = array<i64: 1, 512, 128>}, {transform_indices = @transform_13, window_bounds = array<i64: 1, 1, 128>}, {transform_indices = @transform_14, window_bounds = array<i64: 1, 1, 128>}, {transform_indices = @transform_15, window_bounds = array<i64: 1, 1, 128>}, {pipeline_mode = #tpu.pipeline_mode<synchronous>, transform_indices = @transform_16, window_bounds = array<i64: 128, 128>}, {pipeline_mode = #tpu.pipeline_mode<synchronous>, transform_indices = @transform_17, window_bounds = array<i64: 1, 128>}, {pipeline_mode = #tpu.pipeline_mode<synchronous>, transform_indices = @transform_18, window_bounds = array<i64: 128, 128>}, {pipeline_mode = #tpu.pipeline_mode<synchronous>, transform_indices = @transform_19, window_bounds = array<i64: 1, 128>}, {pipeline_mode = #tpu.pipeline_mode<synchronous>, transform_indices = @transform_20, window_bounds = array<i64: 2, 128>}]} {
    %c0_i32 = arith.constant 0 : i32
    %0 = arith.cmpi eq, %arg0, %c0_i32 : i32
    %1 = arith.extui %0 : i1 to i32
    %c0_i32_0 = arith.constant 0 : i32
    %2 = arith.cmpi ne, %1, %c0_i32_0 : i32
    scf.if %2 {
      %c0_69 = arith.constant 0 : index
      %c0_70 = arith.constant 0 : index
      %156 = vector.load %arg1[%c0_69, %c0_70] : memref<16x128xf32, #tpu.memory_space<vmem>>, vector<16x128xf32>
      %c0_71 = arith.constant 0 : index
      %c0_72 = arith.constant 0 : index
      %157 = vector.load %arg3[%c0_71, %c0_72] : memref<1x128xf32, #tpu.memory_space<vmem>>, vector<1x128xf32>
      %c0_73 = arith.constant 0 : index
      %c0_74 = arith.constant 0 : index
      %158 = vector.load %arg4[%c0_73, %c0_74] : memref<1x128xf32, #tpu.memory_space<vmem>>, vector<1x128xf32>
      %cst_75 = arith.constant dense<0.000000e+00> : vector<16xf32>
      %159 = vector.multi_reduction <add>, %156, %cst_75 [1] : vector<16x128xf32> to vector<16xf32>
      %160 = vector.shape_cast %159 : vector<16xf32> to vector<16x1xf32>
      %cst_76 = arith.constant 1.280000e+02 : f32
      %161 = vector.broadcast %cst_76 : f32 to vector<16x1xf32>
      %162 = arith.divf %160, %161 : vector<16x1xf32>
      %163 = vector.broadcast %162 : vector<16x1xf32> to vector<16x128xf32>
      %164 = arith.subf %156, %163 : vector<16x128xf32>
      %165 = arith.mulf %164, %164 : vector<16x128xf32>
      %cst_77 = arith.constant dense<0.000000e+00> : vector<16xf32>
      %166 = vector.multi_reduction <add>, %165, %cst_77 [1] : vector<16x128xf32> to vector<16xf32>
      %167 = vector.shape_cast %166 : vector<16xf32> to vector<16x1xf32>
      %cst_78 = arith.constant 1.280000e+02 : f32
      %168 = vector.broadcast %cst_78 : f32 to vector<16x1xf32>
      %169 = arith.divf %167, %168 : vector<16x1xf32>
      %170 = vector.broadcast %162 : vector<16x1xf32> to vector<16x128xf32>
      %171 = arith.subf %156, %170 : vector<16x128xf32>
      %cst_79 = arith.constant 9.99999974E-6 : f32
      %172 = vector.broadcast %cst_79 : f32 to vector<16x1xf32>
      %173 = arith.addf %169, %172 : vector<16x1xf32>
      %174 = math.rsqrt %173 : vector<16x1xf32>
      %175 = vector.broadcast %174 : vector<16x1xf32> to vector<16x128xf32>
      %176 = arith.mulf %171, %175 : vector<16x128xf32>
      %177 = vector.broadcast %157 : vector<1x128xf32> to vector<16x128xf32>
      %178 = arith.mulf %176, %177 : vector<16x128xf32>
      %179 = vector.broadcast %158 : vector<1x128xf32> to vector<16x128xf32>
      %180 = arith.addf %178, %179 : vector<16x128xf32>
      %c0_80 = arith.constant 0 : index
      %c0_81 = arith.constant 0 : index
      %181 = vector.load %arg22[%c0_80, %c0_81] : memref<16x128xf32, #tpu.memory_space<vmem>>, vector<16x128xf32>
      tpu.vector_store %arg22[%c0_80, %c0_81], %180 {strides = array<i32>} : memref<16x128xf32, #tpu.memory_space<vmem>>, vector<16x128xf32>,
    } else {
    }
    %c0 = arith.constant 0 : index
    %c0_1 = arith.constant 0 : index
    %3 = vector.load %arg22[%c0, %c0_1] : memref<16x128xf32, #tpu.memory_space<vmem>>, vector<16x128xf32>
    %4 = arith.truncf %3 : vector<16x128xf32> to vector<16x128xbf16>
    %c0_2 = arith.constant 0 : index
    %c0_3 = arith.constant 0 : index
    %c0_4 = arith.constant 0 : index
    %5 = vector.load %arg5[%c0_2, %c0_3, %c0_4] : memref<1x128x384xbf16, #tpu.memory_space<vmem>>, vector<1x128x384xbf16>
    %6 = vector.shape_cast %5 : vector<1x128x384xbf16> to vector<128x384xbf16>
    %cst = arith.constant dense<0.000000e+00> : vector<16x384xf32>
    %7 = tpu.matmul %4, %6, %cst {dimension_numbers = #tpu.dot_dimension_numbers<[1], [0], [0], [1], [0, 0, 1, 1], [], []>} : vector<16x128xbf16>, vector<128x384xbf16>, vector<16x384xf32> -> vector<16x384xf32>
    %c0_5 = arith.constant 0 : index
    %c0_6 = arith.constant 0 : index
    %c0_7 = arith.constant 0 : index
    %8 = vector.load %arg6[%c0_5, %c0_6, %c0_7] : memref<1x1x384xf32, #tpu.memory_space<vmem>>, vector<1x1x384xf32>
    %9 = vector.shape_cast %8 : vector<1x1x384xf32> to vector<1x384xf32>
    %10 = vector.broadcast %9 : vector<1x384xf32> to vector<16x384xf32>
    %11 = arith.addf %7, %10 : vector<16x384xf32>
    %12 = vector.extract_strided_slice %11 {offsets = [0, 0], sizes = [16, 128], strides = [1, 1]} : vector<16x384xf32> to vector<16x128xf32>
    %cst_8 = arith.constant 1.250000e-01 : f32
    %13 = vector.broadcast %cst_8 : f32 to vector<16x128xf32>
    %14 = arith.mulf %12, %13 : vector<16x128xf32>
    %15 = vector.shape_cast %14 : vector<16x128xf32> to vector<2x8x128xf32>
    %16 = vector.extract_strided_slice %11 {offsets = [0, 128], sizes = [16, 128], strides = [1, 1]} : vector<16x384xf32> to vector<16x128xf32>
    %17 = vector.shape_cast %16 : vector<16x128xf32> to vector<2x8x128xf32>
    %18 = vector.extract_strided_slice %11 {offsets = [0, 256], sizes = [16, 128], strides = [1, 1]} : vector<16x384xf32> to vector<16x128xf32>
    %19 = vector.shape_cast %18 : vector<16x128xf32> to vector<2x8x128xf32>
    %c0_9 = arith.constant 0 : index
    %c0_10 = arith.constant 0 : index
    %20 = vector.load %arg2[%c0_9, %c0_10] : memref<2x8xf32, #tpu.memory_space<vmem>>, vector<2x8xf32>
    %21 = vector.shape_cast %20 : vector<2x8xf32> to vector<2x1x8xf32>
    %22 = arith.truncf %15 : vector<2x8x128xf32> to vector<2x8x128xbf16>
    %23 = arith.truncf %17 : vector<2x8x128xf32> to vector<2x8x128xbf16>
    %24 = arith.truncf %19 : vector<2x8x128xf32> to vector<2x8x128xbf16>
    %25 = vector.extract_strided_slice %22 {offsets = [0, 0, 0], sizes = [2, 8, 64], strides = [1, 1, 1]} : vector<2x8x128xbf16> to vector<2x8x64xbf16>
    %26 = vector.extract_strided_slice %23 {offsets = [0, 0, 0], sizes = [2, 8, 64], strides = [1, 1, 1]} : vector<2x8x128xbf16> to vector<2x8x64xbf16>
    %27 = vector.extract_strided_slice %24 {offsets = [0, 0, 0], sizes = [2, 8, 64], strides = [1, 1, 1]} : vector<2x8x128xbf16> to vector<2x8x64xbf16>
    "tpu.trace_start"() <{level = 10 : i32, message = "bqd,bkd->bqk"}> : () -> ()
    %cst_11 = arith.constant dense<0.000000e+00> : vector<2x8x8xf32>
    %28 = tpu.matmul %25, %26, %cst_11 {dimension_numbers = #tpu.dot_dimension_numbers<[2], [2], [1], [1], [0, 0, 0, 1, 1, 1], [0], [0]>} : vector<2x8x64xbf16>, vector<2x8x64xbf16>, vector<2x8x8xf32> -> vector<2x8x8xf32>
    "tpu.trace_stop"() : () -> ()
    %29 = vector.broadcast %21 : vector<2x1x8xf32> to vector<2x8x8xf32>
    %30 = arith.addf %28, %29 : vector<2x8x8xf32>
    %cst_12 = arith.constant dense<0xFF800000> : vector<2x8xf32>
    %31 = vector.multi_reduction <maximumf>, %30, %cst_12 [2] : vector<2x8x8xf32> to vector<2x8xf32>
    %32 = vector.shape_cast %31 : vector<2x8xf32> to vector<2x8x1xf32>
    %33 = vector.broadcast %32 : vector<2x8x1xf32> to vector<2x8x8xf32>
    %34 = arith.subf %30, %33 : vector<2x8x8xf32>
    %35 = math.exp %34 : vector<2x8x8xf32>
    %cst_13 = arith.constant dense<0.000000e+00> : vector<2x8xf32>
    %36 = vector.multi_reduction <add>, %35, %cst_13 [2] : vector<2x8x8xf32> to vector<2x8xf32>
    %37 = vector.shape_cast %36 : vector<2x8xf32> to vector<2x8x1xf32>
    %38 = vector.broadcast %37 : vector<2x8x1xf32> to vector<2x8x8xf32>
    %39 = arith.divf %35, %38 : vector<2x8x8xf32>
    %40 = arith.truncf %39 : vector<2x8x8xf32> to vector<2x8x8xbf16>
    "tpu.trace_start"() <{level = 10 : i32, message = "bqk,bkd->bqd"}> : () -> ()
    %cst_14 = arith.constant dense<0.000000e+00> : vector<2x8x64xf32>
    %41 = tpu.matmul %40, %27, %cst_14 {dimension_numbers = #tpu.dot_dimension_numbers<[2], [1], [1], [2], [0, 0, 0, 1, 1, 2], [0], [0]>} : vector<2x8x8xbf16>, vector<2x8x64xbf16>, vector<2x8x64xf32> -> vector<2x8x64xf32>
    "tpu.trace_stop"() : () -> ()
    %42 = vector.extract_strided_slice %22 {offsets = [0, 0, 64], sizes = [2, 8, 64], strides = [1, 1, 1]} : vector<2x8x128xbf16> to vector<2x8x64xbf16>
    %43 = vector.extract_strided_slice %23 {offsets = [0, 0, 64], sizes = [2, 8, 64], strides = [1, 1, 1]} : vector<2x8x128xbf16> to vector<2x8x64xbf16>
    %44 = vector.extract_strided_slice %24 {offsets = [0, 0, 64], sizes = [2, 8, 64], strides = [1, 1, 1]} : vector<2x8x128xbf16> to vector<2x8x64xbf16>
    "tpu.trace_start"() <{level = 10 : i32, message = "bqd,bkd->bqk"}> : () -> ()
    %cst_15 = arith.constant dense<0.000000e+00> : vector<2x8x8xf32>
    %45 = tpu.matmul %42, %43, %cst_15 {dimension_numbers = #tpu.dot_dimension_numbers<[2], [2], [1], [1], [0, 0, 0, 1, 1, 1], [0], [0]>} : vector<2x8x64xbf16>, vector<2x8x64xbf16>, vector<2x8x8xf32> -> vector<2x8x8xf32>
    "tpu.trace_stop"() : () -> ()
    %46 = vector.broadcast %21 : vector<2x1x8xf32> to vector<2x8x8xf32>
    %47 = arith.addf %45, %46 : vector<2x8x8xf32>
    %cst_16 = arith.constant dense<0xFF800000> : vector<2x8xf32>
    %48 = vector.multi_reduction <maximumf>, %47, %cst_16 [2] : vector<2x8x8xf32> to vector<2x8xf32>
    %49 = vector.shape_cast %48 : vector<2x8xf32> to vector<2x8x1xf32>
    %50 = vector.broadcast %49 : vector<2x8x1xf32> to vector<2x8x8xf32>
    %51 = arith.subf %47, %50 : vector<2x8x8xf32>
    %52 = math.exp %51 : vector<2x8x8xf32>
    %cst_17 = arith.constant dense<0.000000e+00> : vector<2x8xf32>
    %53 = vector.multi_reduction <add>, %52, %cst_17 [2] : vector<2x8x8xf32> to vector<2x8xf32>
    %54 = vector.shape_cast %53 : vector<2x8xf32> to vector<2x8x1xf32>
    %55 = vector.broadcast %54 : vector<2x8x1xf32> to vector<2x8x8xf32>
    %56 = arith.divf %52, %55 : vector<2x8x8xf32>
    %57 = arith.truncf %56 : vector<2x8x8xf32> to vector<2x8x8xbf16>
    "tpu.trace_start"() <{level = 10 : i32, message = "bqk,bkd->bqd"}> : () -> ()
    %cst_18 = arith.constant dense<0.000000e+00> : vector<2x8x64xf32>
    %58 = tpu.matmul %57, %44, %cst_18 {dimension_numbers = #tpu.dot_dimension_numbers<[2], [1], [1], [2], [0, 0, 0, 1, 1, 2], [0], [0]>} : vector<2x8x8xbf16>, vector<2x8x64xbf16>, vector<2x8x64xf32> -> vector<2x8x64xf32>
    "tpu.trace_stop"() : () -> ()
    %59 = tpu.concatenate %41, %58 in 2 : vector<2x8x64xf32>, vector<2x8x64xf32> -> vector<2x8x128xf32>
    %60 = vector.shape_cast %59 : vector<2x8x128xf32> to vector<16x128xf32>
    %61 = arith.truncf %60 : vector<16x128xf32> to vector<16x128xbf16>
    %c0_19 = arith.constant 0 : index
    %c0_20 = arith.constant 0 : index
    %c0_21 = arith.constant 0 : index
    %62 = vector.load %arg7[%c0_19, %c0_20, %c0_21] : memref<1x128x128xbf16, #tpu.memory_space<vmem>>, vector<1x128x128xbf16>
    %63 = vector.shape_cast %62 : vector<1x128x128xbf16> to vector<128x128xbf16>
    %cst_22 = arith.constant dense<0.000000e+00> : vector<16x128xf32>
    %64 = tpu.matmul %61, %63, %cst_22 {dimension_numbers = #tpu.dot_dimension_numbers<[1], [0], [0], [1], [0, 0, 1, 1], [], []>} : vector<16x128xbf16>, vector<128x128xbf16>, vector<16x128xf32> -> vector<16x128xf32>
    %c0_23 = arith.constant 0 : index
    %c0_24 = arith.constant 0 : index
    %c0_25 = arith.constant 0 : index
    %65 = vector.load %arg8[%c0_23, %c0_24, %c0_25] : memref<1x1x128xf32, #tpu.memory_space<vmem>>, vector<1x1x128xf32>
    %66 = vector.shape_cast %65 : vector<1x1x128xf32> to vector<1x128xf32>
    %67 = vector.broadcast %66 : vector<1x128xf32> to vector<16x128xf32>
    %68 = arith.addf %64, %67 : vector<16x128xf32>
    %69 = arith.addf %3, %68 : vector<16x128xf32>
    %c0_26 = arith.constant 0 : index
    %c0_27 = arith.constant 0 : index
    %c0_28 = arith.constant 0 : index
    %70 = vector.load %arg9[%c0_26, %c0_27, %c0_28] : memref<1x1x128xf32, #tpu.memory_space<vmem>>, vector<1x1x128xf32>
    %71 = vector.shape_cast %70 : vector<1x1x128xf32> to vector<1x128xf32>
    %c0_29 = arith.constant 0 : index
    %c0_30 = arith.constant 0 : index
    %c0_31 = arith.constant 0 : index
    %72 = vector.load %arg10[%c0_29, %c0_30, %c0_31] : memref<1x1x128xf32, #tpu.memory_space<vmem>>, vector<1x1x128xf32>
    %73 = vector.shape_cast %72 : vector<1x1x128xf32> to vector<1x128xf32>
    %cst_32 = arith.constant dense<0.000000e+00> : vector<16xf32>
    %74 = vector.multi_reduction <add>, %69, %cst_32 [1] : vector<16x128xf32> to vector<16xf32>
    %75 = vector.shape_cast %74 : vector<16xf32> to vector<16x1xf32>
    %cst_33 = arith.constant 1.280000e+02 : f32
    %76 = vector.broadcast %cst_33 : f32 to vector<16x1xf32>
    %77 = arith.divf %75, %76 : vector<16x1xf32>
    %78 = vector.broadcast %77 : vector<16x1xf32> to vector<16x128xf32>
    %79 = arith.subf %69, %78 : vector<16x128xf32>
    %80 = arith.mulf %79, %79 : vector<16x128xf32>
    %cst_34 = arith.constant dense<0.000000e+00> : vector<16xf32>
    %81 = vector.multi_reduction <add>, %80, %cst_34 [1] : vector<16x128xf32> to vector<16xf32>
    %82 = vector.shape_cast %81 : vector<16xf32> to vector<16x1xf32>
    %cst_35 = arith.constant 1.280000e+02 : f32
    %83 = vector.broadcast %cst_35 : f32 to vector<16x1xf32>
    %84 = arith.divf %82, %83 : vector<16x1xf32>
    %85 = vector.broadcast %77 : vector<16x1xf32> to vector<16x128xf32>
    %86 = arith.subf %69, %85 : vector<16x128xf32>
    %cst_36 = arith.constant 9.99999974E-6 : f32
    %87 = vector.broadcast %cst_36 : f32 to vector<16x1xf32>
    %88 = arith.addf %84, %87 : vector<16x1xf32>
    %89 = math.rsqrt %88 : vector<16x1xf32>
    %90 = vector.broadcast %89 : vector<16x1xf32> to vector<16x128xf32>
    %91 = arith.mulf %86, %90 : vector<16x128xf32>
    %92 = vector.broadcast %71 : vector<1x128xf32> to vector<16x128xf32>
    %93 = arith.mulf %91, %92 : vector<16x128xf32>
    %94 = vector.broadcast %73 : vector<1x128xf32> to vector<16x128xf32>
    %95 = arith.addf %93, %94 : vector<16x128xf32>
    %96 = arith.truncf %95 : vector<16x128xf32> to vector<16x128xbf16>
    %c0_37 = arith.constant 0 : index
    %c0_38 = arith.constant 0 : index
    %c0_39 = arith.constant 0 : index
    %97 = vector.load %arg11[%c0_37, %c0_38, %c0_39] : memref<1x128x512xbf16, #tpu.memory_space<vmem>>, vector<1x128x512xbf16>
    %98 = vector.shape_cast %97 : vector<1x128x512xbf16> to vector<128x512xbf16>
    %cst_40 = arith.constant dense<0.000000e+00> : vector<16x512xf32>
    %99 = tpu.matmul %96, %98, %cst_40 {dimension_numbers = #tpu.dot_dimension_numbers<[1], [0], [0], [1], [0, 0, 1, 1], [], []>} : vector<16x128xbf16>, vector<128x512xbf16>, vector<16x512xf32> -> vector<16x512xf32>
    %c0_41 = arith.constant 0 : index
    %c0_42 = arith.constant 0 : index
    %c0_43 = arith.constant 0 : index
    %100 = vector.load %arg12[%c0_41, %c0_42, %c0_43] : memref<1x1x512xf32, #tpu.memory_space<vmem>>, vector<1x1x512xf32>
    %101 = vector.shape_cast %100 : vector<1x1x512xf32> to vector<1x512xf32>
    %102 = vector.broadcast %101 : vector<1x512xf32> to vector<16x512xf32>
    %103 = arith.addf %99, %102 : vector<16x512xf32>
    %cst_44 = arith.constant 5.000000e-01 : f32
    %104 = vector.broadcast %cst_44 : f32 to vector<16x512xf32>
    %105 = arith.mulf %104, %103 : vector<16x512xf32>
    %cst_45 = arith.constant 4.471500e-02 : f32
    %106 = vector.broadcast %cst_45 : f32 to vector<16x512xf32>
    %107 = arith.mulf %106, %103 : vector<16x512xf32>
    %108 = arith.mulf %107, %103 : vector<16x512xf32>
    %109 = arith.mulf %108, %103 : vector<16x512xf32>
    %110 = arith.addf %103, %109 : vector<16x512xf32>
    %cst_46 = arith.constant 0.797884583 : f32
    %111 = vector.broadcast %cst_46 : f32 to vector<16x512xf32>
    %112 = arith.mulf %111, %110 : vector<16x512xf32>
    %113 = math.tanh %112 : vector<16x512xf32>
    %cst_47 = arith.constant 1.000000e+00 : f32
    %114 = vector.broadcast %cst_47 : f32 to vector<16x512xf32>
    %115 = arith.addf %114, %113 : vector<16x512xf32>
    %116 = arith.mulf %105, %115 : vector<16x512xf32>
    %117 = arith.truncf %116 : vector<16x512xf32> to vector<16x512xbf16>
    %c0_48 = arith.constant 0 : index
    %c0_49 = arith.constant 0 : index
    %c0_50 = arith.constant 0 : index
    %118 = vector.load %arg13[%c0_48, %c0_49, %c0_50] : memref<1x512x128xbf16, #tpu.memory_space<vmem>>, vector<1x512x128xbf16>
    %119 = vector.shape_cast %118 : vector<1x512x128xbf16> to vector<512x128xbf16>
    %cst_51 = arith.constant dense<0.000000e+00> : vector<16x128xf32>
    %120 = tpu.matmul %117, %119, %cst_51 {dimension_numbers = #tpu.dot_dimension_numbers<[1], [0], [0], [1], [0, 0, 1, 1], [], []>} : vector<16x512xbf16>, vector<512x128xbf16>, vector<16x128xf32> -> vector<16x128xf32>
    %c0_52 = arith.constant 0 : index
    %c0_53 = arith.constant 0 : index
    %c0_54 = arith.constant 0 : index
    %121 = vector.load %arg14[%c0_52, %c0_53, %c0_54] : memref<1x1x128xf32, #tpu.memory_space<vmem>>, vector<1x1x128xf32>
    %122 = vector.shape_cast %121 : vector<1x1x128xf32> to vector<1x128xf32>
    %123 = vector.broadcast %122 : vector<1x128xf32> to vector<16x128xf32>
    %124 = arith.addf %120, %123 : vector<16x128xf32>
    %125 = arith.addf %95, %124 : vector<16x128xf32>
    %c0_55 = arith.constant 0 : index
    %c0_56 = arith.constant 0 : index
    %c0_57 = arith.constant 0 : index
    %126 = vector.load %arg15[%c0_55, %c0_56, %c0_57] : memref<1x1x128xf32, #tpu.memory_space<vmem>>, vector<1x1x128xf32>
    %127 = vector.shape_cast %126 : vector<1x1x128xf32> to vector<1x128xf32>
    %c0_58 = arith.constant 0 : index
    %c0_59 = arith.constant 0 : index
    %c0_60 = arith.constant 0 : index
    %128 = vector.load %arg16[%c0_58, %c0_59, %c0_60] : memref<1x1x128xf32, #tpu.memory_space<vmem>>, vector<1x1x128xf32>
    %129 = vector.shape_cast %128 : vector<1x1x128xf32> to vector<1x128xf32>
    %cst_61 = arith.constant dense<0.000000e+00> : vector<16xf32>
    %130 = vector.multi_reduction <add>, %125, %cst_61 [1] : vector<16x128xf32> to vector<16xf32>
    %131 = vector.shape_cast %130 : vector<16xf32> to vector<16x1xf32>
    %cst_62 = arith.constant 1.280000e+02 : f32
    %132 = vector.broadcast %cst_62 : f32 to vector<16x1xf32>
    %133 = arith.divf %131, %132 : vector<16x1xf32>
    %134 = vector.broadcast %133 : vector<16x1xf32> to vector<16x128xf32>
    %135 = arith.subf %125, %134 : vector<16x128xf32>
    %136 = arith.mulf %135, %135 : vector<16x128xf32>
    %cst_63 = arith.constant dense<0.000000e+00> : vector<16xf32>
    %137 = vector.multi_reduction <add>, %136, %cst_63 [1] : vector<16x128xf32> to vector<16xf32>
    %138 = vector.shape_cast %137 : vector<16xf32> to vector<16x1xf32>
    %cst_64 = arith.constant 1.280000e+02 : f32
    %139 = vector.broadcast %cst_64 : f32 to vector<16x1xf32>
    %140 = arith.divf %138, %139 : vector<16x1xf32>
    %141 = vector.broadcast %133 : vector<16x1xf32> to vector<16x128xf32>
    %142 = arith.subf %125, %141 : vector<16x128xf32>
    %cst_65 = arith.constant 9.99999974E-6 : f32
    %143 = vector.broadcast %cst_65 : f32 to vector<16x1xf32>
    %144 = arith.addf %140, %143 : vector<16x1xf32>
    %145 = math.rsqrt %144 : vector<16x1xf32>
    %146 = vector.broadcast %145 : vector<16x1xf32> to vector<16x128xf32>
    %147 = arith.mulf %142, %146 : vector<16x128xf32>
    %148 = vector.broadcast %127 : vector<1x128xf32> to vector<16x128xf32>
    %149 = arith.mulf %147, %148 : vector<16x128xf32>
    %150 = vector.broadcast %129 : vector<1x128xf32> to vector<16x128xf32>
    %151 = arith.addf %149, %150 : vector<16x128xf32>
    %c0_66 = arith.constant 0 : index
    %c0_67 = arith.constant 0 : index
    %152 = vector.load %arg22[%c0_66, %c0_67] : memref<16x128xf32, #tpu.memory_space<vmem>>, vector<16x128xf32>
    tpu.vector_store %arg22[%c0_66, %c0_67], %151 {strides = array<i32>} : memref<16x128xf32, #tpu.memory_space<vmem>>, vector<16x128xf32>,
    %c1_i32 = arith.constant 1 : i32
    %153 = arith.cmpi eq, %arg0, %c1_i32 : i32
    %154 = arith.extui %153 : i1 to i32
    %c0_i32_68 = arith.constant 0 : i32
    %155 = arith.cmpi ne, %154, %c0_i32_68 : i32
    scf.if %155 {
      %156 = vector.shape_cast %151 : vector<16x128xf32> to vector<2x8x128xf32>
      %157 = vector.extract_strided_slice %156 {offsets = [0, 0, 0], sizes = [2, 1, 128], strides = [1, 1, 1]} : vector<2x8x128xf32> to vector<2x1x128xf32>
      %158 = vector.shape_cast %157 : vector<2x1x128xf32> to vector<2x128xf32>
      %159 = arith.truncf %158 : vector<2x128xf32> to vector<2x128xbf16>
      %c0_69 = arith.constant 0 : index
      %c0_70 = arith.constant 0 : index
      %160 = vector.load %arg17[%c0_69, %c0_70] : memref<128x128xbf16, #tpu.memory_space<vmem>>, vector<128x128xbf16>
      %cst_71 = arith.constant dense<0.000000e+00> : vector<2x128xf32>
      %161 = tpu.matmul %159, %160, %cst_71 {dimension_numbers = #tpu.dot_dimension_numbers<[1], [0], [0], [1], [0, 0, 1, 1], [], []>} : vector<2x128xbf16>, vector<128x128xbf16>, vector<2x128xf32> -> vector<2x128xf32>
      %c0_72 = arith.constant 0 : index
      %c0_73 = arith.constant 0 : index
      %162 = vector.load %arg18[%c0_72, %c0_73] : memref<1x128xf32, #tpu.memory_space<vmem>>, vector<1x128xf32>
      %163 = vector.broadcast %162 : vector<1x128xf32> to vector<2x128xf32>
      %164 = arith.addf %161, %163 : vector<2x128xf32>
      %165 = math.tanh %164 : vector<2x128xf32>
      %166 = arith.truncf %165 : vector<2x128xf32> to vector<2x128xbf16>
      %c0_74 = arith.constant 0 : index
      %c0_75 = arith.constant 0 : index
      %167 = vector.load %arg19[%c0_74, %c0_75] : memref<128x128xbf16, #tpu.memory_space<vmem>>, vector<128x128xbf16>
      %cst_76 = arith.constant dense<0.000000e+00> : vector<2x128xf32>
      %168 = tpu.matmul %166, %167, %cst_76 {dimension_numbers = #tpu.dot_dimension_numbers<[1], [0], [0], [1], [0, 0, 1, 1], [], []>} : vector<2x128xbf16>, vector<128x128xbf16>, vector<2x128xf32> -> vector<2x128xf32>
      %c0_77 = arith.constant 0 : index
      %c0_78 = arith.constant 0 : index
      %169 = vector.load %arg20[%c0_77, %c0_78] : memref<1x128xf32, #tpu.memory_space<vmem>>, vector<1x128xf32>
      %170 = vector.broadcast %169 : vector<1x128xf32> to vector<2x128xf32>
      %171 = arith.addf %168, %170 : vector<2x128xf32>
      %c0_79 = arith.constant 0 : index
      %c0_80 = arith.constant 0 : index
      %172 = vector.load %arg21[%c0_79, %c0_80] : memref<2x128xf32, #tpu.memory_space<vmem>>, vector<2x128xf32>
      tpu.vector_store %arg21[%c0_79, %c0_80], %171 {strides = array<i32>} : memref<2x128xf32, #tpu.memory_space<vmem>>, vector<2x128xf32>,
    } else {
    }
    return
  }
  func.func @transform_0(%arg0: i32) -> (i32, i32) {
    %c0_i32 = arith.constant 0 : i32
    %c0_i32_0 = arith.constant 0 : i32
    %c0_i32_1 = arith.constant 0 : i32
    return %c0_i32, %c0_i32_0 : i32, i32
  }
  func.func @transform_1(%arg0: i32) -> (i32, i32) {
    %c0_i32 = arith.constant 0 : i32
    %c0_i32_0 = arith.constant 0 : i32
    %c0_i32_1 = arith.constant 0 : i32
    return %c0_i32, %c0_i32_0 : i32, i32
  }
  func.func @transform_2(%arg0: i32) -> (i32, i32) {
    %c0_i32 = arith.constant 0 : i32
    %c0_i32_0 = arith.constant 0 : i32
    %c0_i32_1 = arith.constant 0 : i32
    return %c0_i32, %c0_i32_0 : i32, i32
  }
  func.func @transform_3(%arg0: i32) -> (i32, i32) {
    %c0_i32 = arith.constant 0 : i32
    %c0_i32_0 = arith.constant 0 : i32
    %c0_i32_1 = arith.constant 0 : i32
    return %c0_i32, %c0_i32_0 : i32, i32
  }
  func.func @transform_4(%arg0: i32) -> (i32, i32, i32) {
    %c0_i32 = arith.constant 0 : i32
    %c0_i32_0 = arith.constant 0 : i32
    %c0_i32_1 = arith.constant 0 : i32
    return %arg0, %c0_i32, %c0_i32_0 : i32, i32, i32
  }
  func.func @transform_5(%arg0: i32) -> (i32, i32, i32) {
    %c0_i32 = arith.constant 0 : i32
    %c0_i32_0 = arith.constant 0 : i32
    %c0_i32_1 = arith.constant 0 : i32
    return %arg0, %c0_i32, %c0_i32_0 : i32, i32, i32
  }
  func.func @transform_6(%arg0: i32) -> (i32, i32, i32) {
    %c0_i32 = arith.constant 0 : i32
    %c0_i32_0 = arith.constant 0 : i32
    %c0_i32_1 = arith.constant 0 : i32
    return %arg0, %c0_i32, %c0_i32_0 : i32, i32, i32
  }
  func.func @transform_7(%arg0: i32) -> (i32, i32, i32) {
    %c0_i32 = arith.constant 0 : i32
    %c0_i32_0 = arith.constant 0 : i32
    %c0_i32_1 = arith.constant 0 : i32
    return %arg0, %c0_i32, %c0_i32_0 : i32, i32, i32
  }
  func.func @transform_8(%arg0: i32) -> (i32, i32, i32) {
    %c0_i32 = arith.constant 0 : i32
    %c0_i32_0 = arith.constant 0 : i32
    %c0_i32_1 = arith.constant 0 : i32
    return %arg0, %c0_i32, %c0_i32_0 : i32, i32, i32
  }
  func.func @transform_9(%arg0: i32) -> (i32, i32, i32) {
    %c0_i32 = arith.constant 0 : i32
    %c0_i32_0 = arith.constant 0 : i32
    %c0_i32_1 = arith.constant 0 : i32
    return %arg0, %c0_i32, %c0_i32_0 : i32, i32, i32
  }
  func.func @transform_10(%arg0: i32) -> (i32, i32, i32) {
    %c0_i32 = arith.constant 0 : i32
    %c0_i32_0 = arith.constant 0 : i32
    %c0_i32_1 = arith.constant 0 : i32
    return %arg0, %c0_i32, %c0_i32_0 : i32, i32, i32
  }
  func.func @transform_11(%arg0: i32) -> (i32, i32, i32) {
    %c0_i32 = arith.constant 0 : i32
    %c0_i32_0 = arith.constant 0 : i32
    %c0_i32_1 = arith.constant 0 : i32
    return %arg0, %c0_i32, %c0_i32_0 : i32, i32, i32
  }
  func.func @transform_12(%arg0: i32) -> (i32, i32, i32) {
    %c0_i32 = arith.constant 0 : i32
    %c0_i32_0 = arith.constant 0 : i32
    %c0_i32_1 = arith.constant 0 : i32
    return %arg0, %c0_i32, %c0_i32_0 : i32, i32, i32
  }
  func.func @transform_13(%arg0: i32) -> (i32, i32, i32) {
    %c0_i32 = arith.constant 0 : i32
    %c0_i32_0 = arith.constant 0 : i32
    %c0_i32_1 = arith.constant 0 : i32
    return %arg0, %c0_i32, %c0_i32_0 : i32, i32, i32
  }
  func.func @transform_14(%arg0: i32) -> (i32, i32, i32) {
    %c0_i32 = arith.constant 0 : i32
    %c0_i32_0 = arith.constant 0 : i32
    %c0_i32_1 = arith.constant 0 : i32
    return %arg0, %c0_i32, %c0_i32_0 : i32, i32, i32
  }
  func.func @transform_15(%arg0: i32) -> (i32, i32, i32) {
    %c0_i32 = arith.constant 0 : i32
    %c0_i32_0 = arith.constant 0 : i32
    %c0_i32_1 = arith.constant 0 : i32
    return %arg0, %c0_i32, %c0_i32_0 : i32, i32, i32
  }
  func.func @transform_16(%arg0: i32) -> (i32, i32) {
    %c0_i32 = arith.constant 0 : i32
    %c0_i32_0 = arith.constant 0 : i32
    %c0_i32_1 = arith.constant 0 : i32
    return %c0_i32, %c0_i32_0 : i32, i32
  }
  func.func @transform_17(%arg0: i32) -> (i32, i32) {
    %c0_i32 = arith.constant 0 : i32
    %c0_i32_0 = arith.constant 0 : i32
    %c0_i32_1 = arith.constant 0 : i32
    return %c0_i32, %c0_i32_0 : i32, i32
  }
  func.func @transform_18(%arg0: i32) -> (i32, i32) {
    %c0_i32 = arith.constant 0 : i32
    %c0_i32_0 = arith.constant 0 : i32
    %c0_i32_1 = arith.constant 0 : i32
    return %c0_i32, %c0_i32_0 : i32, i32
  }
  func.func @transform_19(%arg0: i32) -> (i32, i32) {
    %c0_i32 = arith.constant 0 : i32
    %c0_i32_0 = arith.constant 0 : i32
    %c0_i32_1 = arith.constant 0 : i32
    return %c0_i32, %c0_i32_0 : i32, i32
  }
  func.func @transform_20(%arg0: i32) -> (i32, i32) {
    %c0_i32 = arith.constant 0 : i32
    %c0_i32_0 = arith.constant 0 : i32
    %c0_i32_1 = arith.constant 0 : i32
    return %c0_i32, %c0_i32_0 : i32, i32
  }
}

</mosaic_0001>

<llo_original>
// kernel: roberta_large_forward.1
$region0: #{roberta_large_forward.1}
  #allocation0 [shape = 'u32[]', space=smem, size = 0x4, offset = 0x4, fixed_abs, tag = 'smem constant byte address 0x4 - core index']
  #allocation1 [shape = 'u32[144,128]{1,0:T(1,128)}', space=vmem, size = 0x12000, scoped, tag = 'internal scratch']
  #allocation2 [shape = 'f32[16,128]{1,0:T(8,128)}', space=vmem, size = 0x2000, scoped, tag = 'scratch operand']
  %s0 = inlined_call_operand.vmem [shape: f32[16,128], index: 0, kind: input, shape index: {}]
  %s1 = inlined_call_operand.vmem [shape: f32[2,8], index: 1, kind: input, shape index: {}]
  %s2 = inlined_call_operand.vmem [shape: f32[1,128], index: 2, kind: input, shape index: {}]
  %s3 = inlined_call_operand.vmem [shape: f32[1,128], index: 3, kind: input, shape index: {}]
  %s4 = inlined_call_operand.vmem [shape: bf16[2,128,384], index: 4, kind: input, shape index: {}]
  %s5 = inlined_call_operand.vmem [shape: f32[2,1,384], index: 5, kind: input, shape index: {}]
  %s6 = inlined_call_operand.hbm [shape: bf16[2,128,128], index: 6, kind: input, shape index: {}]
  %s7 = inlined_call_operand.vmem [shape: f32[2,1,128], index: 7, kind: input, shape index: {}]
  %s8 = inlined_call_operand.vmem [shape: f32[2,1,128], index: 8, kind: input, shape index: {}]
  %s9 = inlined_call_operand.vmem [shape: f32[2,1,128], index: 9, kind: input, shape index: {}]
  %s10 = inlined_call_operand.hbm [shape: bf16[2,128,512], index: 10, kind: input, shape index: {}]
  %s11 = inlined_call_operand.vmem [shape: f32[2,1,512], index: 11, kind: input, shape index: {}]
  %s12 = inlined_call_operand.hbm [shape: bf16[2,512,128], index: 12, kind: input, shape index: {}]
  %s13 = inlined_call_operand.vmem [shape: f32[2,1,128], index: 13, kind: input, shape index: {}]
  %s14 = inlined_call_operand.hbm [shape: f32[2,1,128], index: 14, kind: input, shape index: {}]
  %s15 = inlined_call_operand.hbm [shape: f32[2,1,128], index: 15, kind: input, shape index: {}]
  %s16 = inlined_call_operand.hbm [shape: bf16[128,128], index: 16, kind: input, shape index: {}]
  %s17 = inlined_call_operand.vmem [shape: f32[1,128], index: 17, kind: input, shape index: {}]
  %s18 = inlined_call_operand.hbm [shape: bf16[128,128], index: 18, kind: input, shape index: {}]
  %s19 = inlined_call_operand.vmem [shape: f32[1,128], index: 19, kind: input, shape index: {}]
  %s20 = inlined_call_operand.hbm [shape: f32[2,128], index: 20, kind: output, shape index: {}]
  %s21 = sld [smem:[#allocation0]]
  $region149: #{roberta_large_forward.1} parent=0
    _
  %s23 = ssub.s32 1, %s21
  %s24 = scalar_select 0, %s23, %s21
  $region1: #{roberta_large_forward.1} parent=0
    #allocation3 [shape = 'u8[65536]{0}', space=vmem, size = 0x10000, scoped, tag = 'input window, operand 6']
    #allocation4 [shape = 's32[2]{0}', space=sflag, size = 0x8, scoped, tag = 'scoped memory for roberta_large_forward.1']
    #allocation5 [shape = 's32[2]{0}', space=sflag, size = 0x8, scoped, tag = 'scoped memory for roberta_large_forward.1']
    #allocation6 [shape = 'u8[262144]{0}', space=vmem, size = 0x40000, scoped, tag = 'input window, operand 10']
    #allocation7 [shape = 's32[2]{0}', space=sflag, size = 0x8, scoped, tag = 'scoped memory for roberta_large_forward.1']
    #allocation8 [shape = 'u8[262144]{0}', space=vmem, size = 0x40000, scoped, tag = 'input window, operand 12']
    #allocation9 [shape = 'u8[1024]{0}', space=vmem, size = 0x400, scoped, tag = 'input window, operand 14']
    #allocation10 [shape = 's32[2]{0}', space=sflag, size = 0x8, scoped, tag = 'scoped memory for roberta_large_forward.1']
    #allocation11 [shape = 'u8[1024]{0}', space=vmem, size = 0x400, scoped, tag = 'input window, operand 15']
    #allocation12 [shape = 'u8[32768]{0}', space=vmem, size = 0x8000, scoped, tag = 'input window, operand 16, single buffered']
    #allocation13 [shape = 's32[1]{0}', space=sflag, size = 0x4, scoped, tag = 'scoped memory for roberta_large_forward.1']
    #allocation14 [shape = 'u8[32768]{0}', space=vmem, size = 0x8000, scoped, tag = 'input window, operand 18, single buffered']
    #allocation15 [shape = 'u8[1024]{0}', space=vmem, size = 0x400, scoped, tag = 'output window, operand 0, single buffered']
    %25 = vsyncpa [#allocation4], 0
    %s26 = scalar_lea.sflag [#allocation4], 1
    %27 = vsyncpa %s26, 0
    %28 = vsyncpa [#allocation7], 0
    %s29 = scalar_lea.sflag [#allocation7], 1
    %30 = vsyncpa %s29, 0
    %31 = vsyncpa [#allocation10], 0
    %s32 = scalar_lea.sflag [#allocation10], 1
    %33 = vsyncpa %s32, 0
    %34 = vsyncpa [#allocation13], 0
    %35 = vsyncpa [#allocation5], 0
    loop: start=0, step=1, limit=4
    $region2: #{roberta_large_forward.1} parent=1 // loop_pre_header
      _
    $region3: #{roberta_large_forward.1} parent=1 // loop_header
      %s37 = sphi 0, %s41
      %p38 = scmp.ge.s32.totalorder %s37, 4
      %s45 = sphi 0, %s45
      %s47 = sphi 0, %s45
      %s48 = sphi 0, %s47
      %s62 = sphi 0, %s48
      %s66 = sphi 0, %s66
      %s68 = sphi 0, %s66
      %s69 = sphi 0, %s68
      %s83 = sphi 0, %s69
      %s87 = sphi 0, %s87
      %s89 = sphi 0, %s87
      %s90 = sphi 0, %s89
      %s104 = sphi 0, %s90
      %s108 = sphi 0, %s108
      %s110 = sphi 0, %s108
      %s111 = sphi 0, %s110
      %s125 = sphi 0, %s111
      %s131 = sphi 0, %s133
      %s134 = sphi 0, %s131
      %s135 = sphi 0, %s134
      %s151 = sphi 0, %s135
      %s157 = sphi 0, %s159
      %s160 = sphi 0, %s157
      %s161 = sphi 0, %s160
      %s177 = sphi 0, %s161
      %s183 = sphi 0, %s185
      %s186 = sphi 0, %s183
      %s187 = sphi 0, %s186
      %s203 = sphi 0, %s187
      %s209 = sphi 0, %s211
      %s212 = sphi 0, %s209
      %s213 = sphi 0, %s212
      %s229 = sphi 0, %s213
      %s235 = sphi 0, %s237
      %s238 = sphi 0, %s235
      %s239 = sphi 0, %s238
      %s255 = sphi 0, %s239
      %s261 = sphi 0, %s263
      %s264 = sphi 0, %s261
      %s265 = sphi 0, %s264
      %s281 = sphi 0, %s265
      %s287 = sphi 0, %s289
      %s290 = sphi 0, %s287
      %s291 = sphi 0, %s290
      %s307 = sphi 0, %s291
      %s313 = sphi 0, %s315
      %s316 = sphi 0, %s313
      %s317 = sphi 0, %s316
      %s333 = sphi 0, %s317
      %s339 = sphi 0, %s341
      %s342 = sphi 0, %s339
      %s343 = sphi 0, %s342
      %s359 = sphi 0, %s343
      %s365 = sphi 0, %s367
      %s368 = sphi 0, %s365
      %s369 = sphi 0, %s368
      %s385 = sphi 0, %s369
      %s391 = sphi 0, %s393
      %s394 = sphi 0, %s391
      %s395 = sphi 0, %s394
      %s411 = sphi 0, %s395
      %s417 = sphi 0, %s419
      %s420 = sphi 0, %s417
      %s421 = sphi 0, %s420
      %s437 = sphi 0, %s421
      %s441 = sphi 0, %s441
      %s443 = sphi 0, %s441
      %s444 = sphi 0, %s443
      %s458 = sphi 0, %s444
      %s462 = sphi 0, %s462
      %s464 = sphi 0, %s462
      %s465 = sphi 0, %s464
      %s479 = sphi 0, %s465
      %s483 = sphi 0, %s483
      %s485 = sphi 0, %s483
      %s486 = sphi 0, %s485
      %s500 = sphi 0, %s486
      %s504 = sphi 0, %s504
      %s506 = sphi 0, %s504
      %s507 = sphi 0, %s506
      %s521 = sphi 0, %s507
      %s525 = sphi 0, %s525
      %s527 = sphi 0, %s525
      %s528 = sphi 0, %s527
      %s542 = sphi 0, %s528
    $region4: #{roberta_large_forward.1} parent=1 // loop_header_branch
      %40 = sbr.rel (%p38) target = $region8
    $region5: #{roberta_large_forward.1} parent=1 // loop_body
      %s42 = ssub.s32 %s37, 1
      %s43 = ssub.s32 %s37, 2
      %s44 = sadd.s32 %s37, 1
      %s46 = sadd.s32 %s45, 1
      %p49 = scmp.eq.s32.totalorder %s37, 1
      %p50 = scmp.ne.s32.totalorder %s45, %s47
      %p51 = scmp.eq.s32.totalorder %s37, 0
      %p52 = por %p50, %p51
      %p53 = scmp.ne.s32.totalorder %s45, %s47
      %p54 = scmp.eq.s32.totalorder %s42, 1
      %p55 = por %p53, %p54
      %p56 = scmp.ne.s32.totalorder %s47, %s48
      %p57 = scmp.eq.s32.totalorder %s42, 0
      %p58 = por %p56, %p57
      %p59 = scmp.ne.s32.totalorder %s47, %s48
      %p60 = scmp.eq.s32.totalorder %s43, 1
      %p61 = por %p59, %p60
      %p63 = scmp.ne.s32.totalorder %s48, %s62
      %p64 = scmp.eq.s32.totalorder %s43, 0
      %p65 = por %p63, %p64
      %s67 = sadd.s32 %s66, 1
      %p70 = scmp.eq.s32.totalorder %s37, 1
      %p71 = scmp.ne.s32.totalorder %s66, %s68
      %p72 = scmp.eq.s32.totalorder %s37, 0
      %p73 = por %p71, %p72
      %p74 = scmp.ne.s32.totalorder %s66, %s68
      %p75 = scmp.eq.s32.totalorder %s42, 1
      %p76 = por %p74, %p75
      %p77 = scmp.ne.s32.totalorder %s68, %s69
      %p78 = scmp.eq.s32.totalorder %s42, 0
      %p79 = por %p77, %p78
      %p80 = scmp.ne.s32.totalorder %s68, %s69
      %p81 = scmp.eq.s32.totalorder %s43, 1
      %p82 = por %p80, %p81
      %p84 = scmp.ne.s32.totalorder %s69, %s83
      %p85 = scmp.eq.s32.totalorder %s43, 0
      %p86 = por %p84, %p85
      %s88 = sadd.s32 %s87, 1
      %p91 = scmp.eq.s32.totalorder %s37, 1
      %p92 = scmp.ne.s32.totalorder %s87, %s89
      %p93 = scmp.eq.s32.totalorder %s37, 0
      %p94 = por %p92, %p93
      %p95 = scmp.ne.s32.totalorder %s87, %s89
      %p96 = scmp.eq.s32.totalorder %s42, 1
      %p97 = por %p95, %p96
      %p98 = scmp.ne.s32.totalorder %s89, %s90
      %p99 = scmp.eq.s32.totalorder %s42, 0
      %p100 = por %p98, %p99
      %p101 = scmp.ne.s32.totalorder %s89, %s90
      %p102 = scmp.eq.s32.totalorder %s43, 1
      %p103 = por %p101, %p102
      %p105 = scmp.ne.s32.totalorder %s90, %s104
      %p106 = scmp.eq.s32.totalorder %s43, 0
      %p107 = por %p105, %p106
      %s109 = sadd.s32 %s108, 1
      %p112 = scmp.eq.s32.totalorder %s37, 1
      %p113 = scmp.ne.s32.totalorder %s108, %s110
      %p114 = scmp.eq.s32.totalorder %s37, 0
      %p115 = por %p113, %p114
      %p116 = scmp.ne.s32.totalorder %s108, %s110
      %p117 = scmp.eq.s32.totalorder %s42, 1
      %p118 = por %p116, %p117
      %p119 = scmp.ne.s32.totalorder %s110, %s111
      %p120 = scmp.eq.s32.totalorder %s42, 0
      %p121 = por %p119, %p120
      %p122 = scmp.ne.s32.totalorder %s110, %s111
      %p123 = scmp.eq.s32.totalorder %s43, 1
      %p124 = por %p122, %p123
      %p126 = scmp.ne.s32.totalorder %s111, %s125
      %p127 = scmp.eq.s32.totalorder %s43, 0
      %p128 = por %p126, %p127
      %s129 = ssub.s32 %s37, %s44
      %p130 = scmp.eq.s32.totalorder %s129, 0
      %s132 = sadd.s32 %s131, 1
      %s133 = scalar_select %p130, %s131, %s132
      %p136 = pneg %p130
      %p137 = scmp.eq.s32.totalorder %s37, 1
      %p138 = por %p136, %p137
      %p139 = scmp.ne.s32.totalorder %s131, %s134
      %p140 = scmp.eq.s32.totalorder %s37, 0
      %p141 = por %p139, %p140
      %p142 = scmp.ne.s32.totalorder %s131, %s134
      %p143 = scmp.eq.s32.totalorder %s42, 1
      %p144 = por %p142, %p143
      %p145 = scmp.ne.s32.totalorder %s134, %s135
      %p146 = scmp.eq.s32.totalorder %s42, 0
      %p147 = por %p145, %p146
      %p148 = scmp.ne.s32.totalorder %s134, %s135
      %p149 = scmp.eq.s32.totalorder %s43, 1
      %p150 = por %p148, %p149
      %p152 = scmp.ne.s32.totalorder %s135, %s151
      %p153 = scmp.eq.s32.totalorder %s43, 0
      %p154 = por %p152, %p153
      %s155 = ssub.s32 %s37, %s44
      %p156 = scmp.eq.s32.totalorder %s155, 0
      %s158 = sadd.s32 %s157, 1
      %s159 = scalar_select %p156, %s157, %s158
      %p162 = pneg %p156
      %p163 = scmp.eq.s32.totalorder %s37, 1
      %p164 = por %p162, %p163
      %p165 = scmp.ne.s32.totalorder %s157, %s160
      %p166 = scmp.eq.s32.totalorder %s37, 0
      %p167 = por %p165, %p166
      %p168 = scmp.ne.s32.totalorder %s157, %s160
      %p169 = scmp.eq.s32.totalorder %s42, 1
      %p170 = por %p168, %p169
      %p171 = scmp.ne.s32.totalorder %s160, %s161
      %p172 = scmp.eq.s32.totalorder %s42, 0
      %p173 = por %p171, %p172
      %p174 = scmp.ne.s32.totalorder %s160, %s161
      %p175 = scmp.eq.s32.totalorder %s43, 1
      %p176 = por %p174, %p175
      %p178 = scmp.ne.s32.totalorder %s161, %s177
      %p179 = scmp.eq.s32.totalorder %s43, 0
      %p180 = por %p178, %p179
      %s181 = ssub.s32 %s37, %s44
      %p182 = scmp.eq.s32.totalorder %s181, 0
      %s184 = sadd.s32 %s183, 1
      %s185 = scalar_select %p182, %s183, %s184
      %p188 = pneg %p182
      %p189 = scmp.eq.s32.totalorder %s37, 1
      %p190 = por %p188, %p189
      %p191 = scmp.ne.s32.totalorder %s183, %s186
      %p192 = scmp.eq.s32.totalorder %s37, 0
      %p193 = por %p191, %p192
      %p194 = scmp.ne.s32.totalorder %s183, %s186
      %p195 = scmp.eq.s32.totalorder %s42, 1
      %p196 = por %p194, %p195
      %p197 = scmp.ne.s32.totalorder %s186, %s187
      %p198 = scmp.eq.s32.totalorder %s42, 0
      %p199 = por %p197, %p198
      %p200 = scmp.ne.s32.totalorder %s186, %s187
      %p201 = scmp.eq.s32.totalorder %s43, 1
      %p202 = por %p200, %p201
      %p204 = scmp.ne.s32.totalorder %s187, %s203
      %p205 = scmp.eq.s32.totalorder %s43, 0
      %p206 = por %p204, %p205
      %s207 = ssub.s32 %s37, %s44
      %p208 = scmp.eq.s32.totalorder %s207, 0
      %s210 = sadd.s32 %s209, 1
      %s211 = scalar_select %p208, %s209, %s210
      %p214 = pneg %p208
      %p215 = scmp.eq.s32.totalorder %s37, 1
      %p216 = por %p214, %p215
      %p217 = scmp.ne.s32.totalorder %s209, %s212
      %p218 = scmp.eq.s32.totalorder %s37, 0
      %p219 = por %p217, %p218
      %p220 = scmp.ne.s32.totalorder %s209, %s212
      %p221 = scmp.eq.s32.totalorder %s42, 1
      %p222 = por %p220, %p221
      %p223 = scmp.ne.s32.totalorder %s212, %s213
      %p224 = scmp.eq.s32.totalorder %s42, 0
      %p225 = por %p223, %p224
      %p226 = scmp.ne.s32.totalorder %s212, %s213
      %p227 = scmp.eq.s32.totalorder %s43, 1
      %p228 = por %p226, %p227
      %p230 = scmp.ne.s32.totalorder %s213, %s229
      %p231 = scmp.eq.s32.totalorder %s43, 0
      %p232 = por %p230, %p231
      %s233 = ssub.s32 %s37, %s44
      %p234 = scmp.eq.s32.totalorder %s233, 0
      %s236 = sadd.s32 %s235, 1
      %s237 = scalar_select %p234, %s235, %s236
      %p240 = pneg %p234
      %p241 = scmp.eq.s32.totalorder %s37, 1
      %p242 = por %p240, %p241
      %p243 = scmp.ne.s32.totalorder %s235, %s238
      %p244 = scmp.eq.s32.totalorder %s37, 0
      %p245 = por %p243, %p244
      %p246 = scmp.ne.s32.totalorder %s235, %s238
      %p247 = scmp.eq.s32.totalorder %s42, 1
      %p248 = por %p246, %p247
      %p249 = scmp.ne.s32.totalorder %s238, %s239
      %p250 = scmp.eq.s32.totalorder %s42, 0
      %p251 = por %p249, %p250
      %p252 = scmp.ne.s32.totalorder %s238, %s239
      %p253 = scmp.eq.s32.totalorder %s43, 1
      %p254 = por %p252, %p253
      %p256 = scmp.ne.s32.totalorder %s239, %s255
      %p257 = scmp.eq.s32.totalorder %s43, 0
      %p258 = por %p256, %p257
      %s259 = ssub.s32 %s37, %s44
      %p260 = scmp.eq.s32.totalorder %s259, 0
      %s262 = sadd.s32 %s261, 1
      %s263 = scalar_select %p260, %s261, %s262
      %p266 = pneg %p260
      %p267 = scmp.eq.s32.totalorder %s37, 1
      %p268 = por %p266, %p267
      %p269 = scmp.ne.s32.totalorder %s261, %s264
      %p270 = scmp.eq.s32.totalorder %s37, 0
      %p271 = por %p269, %p270
      %p272 = scmp.ne.s32.totalorder %s261, %s264
      %p273 = scmp.eq.s32.totalorder %s42, 1
      %p274 = por %p272, %p273
      %p275 = scmp.ne.s32.totalorder %s264, %s265
      %p276 = scmp.eq.s32.totalorder %s42, 0
      %p277 = por %p275, %p276
      %p278 = scmp.ne.s32.totalorder %s264, %s265
      %p279 = scmp.eq.s32.totalorder %s43, 1
      %p280 = por %p278, %p279
      %p282 = scmp.ne.s32.totalorder %s265, %s281
      %p283 = scmp.eq.s32.totalorder %s43, 0
      %p284 = por %p282, %p283
      %s285 = ssub.s32 %s37, %s44
      %p286 = scmp.eq.s32.totalorder %s285, 0
      %s288 = sadd.s32 %s287, 1
      %s289 = scalar_select %p286, %s287, %s288
      %p292 = pneg %p286
      %p293 = scmp.eq.s32.totalorder %s37, 1
      %p294 = por %p292, %p293
      %p295 = scmp.ne.s32.totalorder %s287, %s290
      %p296 = scmp.eq.s32.totalorder %s37, 0
      %p297 = por %p295, %p296
      %p298 = scmp.ne.s32.totalorder %s287, %s290
      %p299 = scmp.eq.s32.totalorder %s42, 1
      %p300 = por %p298, %p299
      %p301 = scmp.ne.s32.totalorder %s290, %s291
      %p302 = scmp.eq.s32.totalorder %s42, 0
      %p303 = por %p301, %p302
      %p304 = scmp.ne.s32.totalorder %s290, %s291
      %p305 = scmp.eq.s32.totalorder %s43, 1
      %p306 = por %p304, %p305
      %p308 = scmp.ne.s32.totalorder %s291, %s307
      %p309 = scmp.eq.s32.totalorder %s43, 0
      %p310 = por %p308, %p309
      %s311 = ssub.s32 %s37, %s44
      %p312 = scmp.eq.s32.totalorder %s311, 0
      %s314 = sadd.s32 %s313, 1
      %s315 = scalar_select %p312, %s313, %s314
      %p318 = pneg %p312
      %p319 = scmp.eq.s32.totalorder %s37, 1
      %p320 = por %p318, %p319
      %p321 = scmp.ne.s32.totalorder %s313, %s316
      %p322 = scmp.eq.s32.totalorder %s37, 0
      %p323 = por %p321, %p322
      %p324 = scmp.ne.s32.totalorder %s313, %s316
      %p325 = scmp.eq.s32.totalorder %s42, 1
      %p326 = por %p324, %p325
      %p327 = scmp.ne.s32.totalorder %s316, %s317
      %p328 = scmp.eq.s32.totalorder %s42, 0
      %p329 = por %p327, %p328
      %p330 = scmp.ne.s32.totalorder %s316, %s317
      %p331 = scmp.eq.s32.totalorder %s43, 1
      %p332 = por %p330, %p331
      %p334 = scmp.ne.s32.totalorder %s317, %s333
      %p335 = scmp.eq.s32.totalorder %s43, 0
      %p336 = por %p334, %p335
      %s337 = ssub.s32 %s37, %s44
      %p338 = scmp.eq.s32.totalorder %s337, 0
      %s340 = sadd.s32 %s339, 1
      %s341 = scalar_select %p338, %s339, %s340
      %p344 = pneg %p338
      %p345 = scmp.eq.s32.totalorder %s37, 1
      %p346 = por %p344, %p345
      %p347 = scmp.ne.s32.totalorder %s339, %s342
      %p348 = scmp.eq.s32.totalorder %s37, 0
      %p349 = por %p347, %p348
      %p350 = scmp.ne.s32.totalorder %s339, %s342
      %p351 = scmp.eq.s32.totalorder %s42, 1
      %p352 = por %p350, %p351
      %p353 = scmp.ne.s32.totalorder %s342, %s343
      %p354 = scmp.eq.s32.totalorder %s42, 0
      %p355 = por %p353, %p354
      %p356 = scmp.ne.s32.totalorder %s342, %s343
      %p357 = scmp.eq.s32.totalorder %s43, 1
      %p358 = por %p356, %p357
      %p360 = scmp.ne.s32.totalorder %s343, %s359
      %p361 = scmp.eq.s32.totalorder %s43, 0
      %p362 = por %p360, %p361
      %s363 = ssub.s32 %s37, %s44
      %p364 = scmp.eq.s32.totalorder %s363, 0
      %s366 = sadd.s32 %s365, 1
      %s367 = scalar_select %p364, %s365, %s366
      %p370 = pneg %p364
      %p371 = scmp.eq.s32.totalorder %s37, 1
      %p372 = por %p370, %p371
      %p373 = scmp.ne.s32.totalorder %s365, %s368
      %p374 = scmp.eq.s32.totalorder %s37, 0
      %p375 = por %p373, %p374
      %p376 = scmp.ne.s32.totalorder %s365, %s368
      %p377 = scmp.eq.s32.totalorder %s42, 1
      %p378 = por %p376, %p377
      %p379 = scmp.ne.s32.totalorder %s368, %s369
      %p380 = scmp.eq.s32.totalorder %s42, 0
      %p381 = por %p379, %p380
      %p382 = scmp.ne.s32.totalorder %s368, %s369
      %p383 = scmp.eq.s32.totalorder %s43, 1
      %p384 = por %p382, %p383
      %p386 = scmp.ne.s32.totalorder %s369, %s385
      %p387 = scmp.eq.s32.totalorder %s43, 0
      %p388 = por %p386, %p387
      %s389 = ssub.s32 %s37, %s44
      %p390 = scmp.eq.s32.totalorder %s389, 0
      %s392 = sadd.s32 %s391, 1
      %s393 = scalar_select %p390, %s391, %s392
      %p396 = pneg %p390
      %p397 = scmp.eq.s32.totalorder %s37, 1
      %p398 = por %p396, %p397
      %p399 = scmp.ne.s32.totalorder %s391, %s394
      %p400 = scmp.eq.s32.totalorder %s37, 0
      %p401 = por %p399, %p400
      %p402 = scmp.ne.s32.totalorder %s391, %s394
      %p403 = scmp.eq.s32.totalorder %s42, 1
      %p404 = por %p402, %p403
      %p405 = scmp.ne.s32.totalorder %s394, %s395
      %p406 = scmp.eq.s32.totalorder %s42, 0
      %p407 = por %p405, %p406
      %p408 = scmp.ne.s32.totalorder %s394, %s395
      %p409 = scmp.eq.s32.totalorder %s43, 1
      %p410 = por %p408, %p409
      %p412 = scmp.ne.s32.totalorder %s395, %s411
      %p413 = scmp.eq.s32.totalorder %s43, 0
      %p414 = por %p412, %p413
      %s415 = ssub.s32 %s37, %s44
      %p416 = scmp.eq.s32.totalorder %s415, 0
      %s418 = sadd.s32 %s417, 1
      %s419 = scalar_select %p416, %s417, %s418
      %p422 = pneg %p416
      %p423 = scmp.eq.s32.totalorder %s37, 1
      %p424 = por %p422, %p423
      %p425 = scmp.ne.s32.totalorder %s417, %s420
      %p426 = scmp.eq.s32.totalorder %s37, 0
      %p427 = por %p425, %p426
      %p428 = scmp.ne.s32.totalorder %s417, %s420
      %p429 = scmp.eq.s32.totalorder %s42, 1
      %p430 = por %p428, %p429
      %p431 = scmp.ne.s32.totalorder %s420, %s421
      %p432 = scmp.eq.s32.totalorder %s42, 0
      %p433 = por %p431, %p432
      %p434 = scmp.ne.s32.totalorder %s420, %s421
      %p435 = scmp.eq.s32.totalorder %s43, 1
      %p436 = por %p434, %p435
      %p438 = scmp.ne.s32.totalorder %s421, %s437
      %p439 = scmp.eq.s32.totalorder %s43, 0
      %p440 = por %p438, %p439
      %s442 = sadd.s32 %s441, 1
      %p445 = scmp.eq.s32.totalorder %s37, 1
      %p446 = scmp.ne.s32.totalorder %s441, %s443
      %p447 = scmp.eq.s32.totalorder %s37, 0
      %p448 = por %p446, %p447
      %p449 = scmp.ne.s32.totalorder %s441, %s443
      %p450 = scmp.eq.s32.totalorder %s42, 1
      %p451 = por %p449, %p450
      %p452 = scmp.ne.s32.totalorder %s443, %s444
      %p453 = scmp.eq.s32.totalorder %s42, 0
      %p454 = por %p452, %p453
      %p455 = scmp.ne.s32.totalorder %s443, %s444
      %p456 = scmp.eq.s32.totalorder %s43, 1
      %p457 = por %p455, %p456
      %p459 = scmp.ne.s32.totalorder %s444, %s458
      %p460 = scmp.eq.s32.totalorder %s43, 0
      %p461 = por %p459, %p460
      %s463 = sadd.s32 %s462, 1
      %p466 = scmp.eq.s32.totalorder %s37, 1
      %p467 = scmp.ne.s32.totalorder %s462, %s464
      %p468 = scmp.eq.s32.totalorder %s37, 0
      %p469 = por %p467, %p468
      %p470 = scmp.ne.s32.totalorder %s462, %s464
      %p471 = scmp.eq.s32.totalorder %s42, 1
      %p472 = por %p470, %p471
      %p473 = scmp.ne.s32.totalorder %s464, %s465
      %p474 = scmp.eq.s32.totalorder %s42, 0
      %p475 = por %p473, %p474
      %p476 = scmp.ne.s32.totalorder %s464, %s465
      %p477 = scmp.eq.s32.totalorder %s43, 1
      %p478 = por %p476, %p477
      %p480 = scmp.ne.s32.totalorder %s465, %s479
      %p481 = scmp.eq.s32.totalorder %s43, 0
      %p482 = por %p480, %p481
      %s484 = sadd.s32 %s483, 1
      %p487 = scmp.eq.s32.totalorder %s37, 1
      %p488 = scmp.ne.s32.totalorder %s483, %s485
      %p489 = scmp.eq.s32.totalorder %s37, 0
      %p490 = por %p488, %p489
      %p491 = scmp.ne.s32.totalorder %s483, %s485
      %p492 = scmp.eq.s32.totalorder %s42, 1
      %p493 = por %p491, %p492
      %p494 = scmp.ne.s32.totalorder %s485, %s486
      %p495 = scmp.eq.s32.totalorder %s42, 0
      %p496 = por %p494, %p495
      %p497 = scmp.ne.s32.totalorder %s485, %s486
      %p498 = scmp.eq.s32.totalorder %s43, 1
      %p499 = por %p497, %p498
      %p501 = scmp.ne.s32.totalorder %s486, %s500
      %p502 = scmp.eq.s32.totalorder %s43, 0
      %p503 = por %p501, %p502
      %s505 = sadd.s32 %s504, 1
      %p508 = scmp.eq.s32.totalorder %s37, 1
      %p509 = scmp.ne.s32.totalorder %s504, %s506
      %p510 = scmp.eq.s32.totalorder %s37, 0
      %p511 = por %p509, %p510
      %p512 = scmp.ne.s32.totalorder %s504, %s506
      %p513 = scmp.eq.s32.totalorder %s42, 1
      %p514 = por %p512, %p513
      %p515 = scmp.ne.s32.totalorder %s506, %s507
      %p516 = scmp.eq.s32.totalorder %s42, 0
      %p517 = por %p515, %p516
      %p518 = scmp.ne.s32.totalorder %s506, %s507
      %p519 = scmp.eq.s32.totalorder %s43, 1
      %p520 = por %p518, %p519
      %p522 = scmp.ne.s32.totalorder %s507, %s521
      %p523 = scmp.eq.s32.totalorder %s43, 0
      %p524 = por %p522, %p523
      %s526 = sadd.s32 %s525, 1
      %p529 = scmp.eq.s32.totalorder %s37, 1
      %p530 = scmp.ne.s32.totalorder %s525, %s527
      %p531 = scmp.eq.s32.totalorder %s37, 0
      %p532 = por %p530, %p531
      %p533 = scmp.ne.s32.totalorder %s525, %s527
      %p534 = scmp.eq.s32.totalorder %s42, 1
      %p535 = por %p533, %p534
      %p536 = scmp.ne.s32.totalorder %s527, %s528
      %p537 = scmp.eq.s32.totalorder %s42, 0
      %p538 = por %p536, %p537
      %p539 = scmp.ne.s32.totalorder %s527, %s528
      %p540 = scmp.eq.s32.totalorder %s43, 1
      %p541 = por %p539, %p540
      %p543 = scmp.ne.s32.totalorder %s528, %s542
      %p544 = scmp.eq.s32.totalorder %s43, 0
      %p545 = por %p543, %p544
      %p546 = scmp.le.s32.totalorder 1, %s37
      %p547 = scmp.lt.s32.totalorder %s37, 3
      %p548 = pnand %p546, %p547
      %p549 = pneg %p548
      // Predicated region
      $region9: #{roberta_large_forward.1} parent=5 // pred_check
        _
      $region10: #{roberta_large_forward.1} parent=5 // pred_check_branch
        %551 = sbr.rel (%p548) target = $region12
      $region11: #{roberta_large_forward.1} parent=5 // pred_region
        %s552 = ssub.s32 %s37, 1
        // Predicated region
        $region13: #{roberta_large_forward.1} parent=11 // pred_check
          %p553 = pneg %p58
        $region14: #{roberta_large_forward.1} parent=11 // pred_check_branch
          %555 = sbr.rel (%p553) target = $region16
        $region15: #{roberta_large_forward.1} parent=11 // pred_region
          _
        $region16: #{roberta_large_forward.1} parent=11 // pred_fallthru
          _
        // Predicated region
        $region17: #{roberta_large_forward.1} parent=11 // pred_check
          %p556 = pneg %p79
        $region18: #{roberta_large_forward.1} parent=11 // pred_check_branch
          %558 = sbr.rel (%p556) target = $region20
        $region19: #{roberta_large_forward.1} parent=11 // pred_region
          _
        $region20: #{roberta_large_forward.1} parent=11 // pred_fallthru
          _
        // Predicated region
        $region21: #{roberta_large_forward.1} parent=11 // pred_check
          %p559 = pneg %p100
        $region22: #{roberta_large_forward.1} parent=11 // pred_check_branch
          %561 = sbr.rel (%p559) target = $region24
        $region23: #{roberta_large_forward.1} parent=11 // pred_region
          _
        $region24: #{roberta_large_forward.1} parent=11 // pred_fallthru
          _
        // Predicated region
        $region25: #{roberta_large_forward.1} parent=11 // pred_check
          %p562 = pneg %p121
        $region26: #{roberta_large_forward.1} parent=11 // pred_check_branch
          %564 = sbr.rel (%p562) target = $region28
        $region27: #{roberta_large_forward.1} parent=11 // pred_region
          _
        $region28: #{roberta_large_forward.1} parent=11 // pred_fallthru
          _
        // Predicated region
        $region29: #{roberta_large_forward.1} parent=11 // pred_check
          %p565 = pneg %p454
        $region30: #{roberta_large_forward.1} parent=11 // pred_check_branch
          %567 = sbr.rel (%p565) target = $region32
        $region31: #{roberta_large_forward.1} parent=11 // pred_region
          %s569 = ssub.s32 1024, 1024
          %570 = vsyncadd [#allocation13], %s569
          %s571 = sshll.u32 [#allocation12], 4
          %s572 = int_to_ptr.vmem [resolvable:$true] %s571
          %577 = dma.hbm_to_vmem [thread:$0]  %s16, 1024, %s572, [#allocation13], 64, 64, 4
        $region32: #{roberta_large_forward.1} parent=11 // pred_fallthru
          _
        // Predicated region
        $region33: #{roberta_large_forward.1} parent=11 // pred_check
          %p578 = pneg %p475
        $region34: #{roberta_large_forward.1} parent=11 // pred_check_branch
          %580 = sbr.rel (%p578) target = $region36
        $region35: #{roberta_large_forward.1} parent=11 // pred_region
          _
        $region36: #{roberta_large_forward.1} parent=11 // pred_fallthru
          _
        // Predicated region
        $region37: #{roberta_large_forward.1} parent=11 // pred_check
          %p581 = pneg %p496
        $region38: #{roberta_large_forward.1} parent=11 // pred_check_branch
          %583 = sbr.rel (%p581) target = $region40
        $region39: #{roberta_large_forward.1} parent=11 // pred_region
          %s585 = ssub.s32 1024, 1024
          %586 = vsyncadd [#allocation13], %s585
          %s587 = sshll.u32 [#allocation14], 4
          %s588 = int_to_ptr.vmem [resolvable:$true] %s587
          %593 = dma.hbm_to_vmem [thread:$0]  %s18, 1024, %s588, [#allocation13], 64, 64, 4
        $region40: #{roberta_large_forward.1} parent=11 // pred_fallthru
          _
        // Predicated region
        $region41: #{roberta_large_forward.1} parent=11 // pred_check
          %p594 = pneg %p517
        $region42: #{roberta_large_forward.1} parent=11 // pred_check_branch
          %596 = sbr.rel (%p594) target = $region44
        $region43: #{roberta_large_forward.1} parent=11 // pred_region
          _
        $region44: #{roberta_large_forward.1} parent=11 // pred_fallthru
          _
      $region12: #{roberta_large_forward.1} parent=5 // pred_fallthru
        _
      %p597 = scmp.lt.s32.totalorder %s37, 2
      // Predicated region
      $region45: #{roberta_large_forward.1} parent=5 // pred_check
        %p598 = pneg %p597
      $region46: #{roberta_large_forward.1} parent=5 // pred_check_branch
        %600 = sbr.rel (%p598) target = $region48
      $region47: #{roberta_large_forward.1} parent=5 // pred_region
        // Predicated region
        $region49: #{roberta_large_forward.1} parent=47 // pred_check
          %p601 = pneg %p141
        $region50: #{roberta_large_forward.1} parent=47 // pred_check_branch
          %603 = sbr.rel (%p601) target = $region52
        $region51: #{roberta_large_forward.1} parent=47 // pred_region
          %p604 = scmp.lt.s32.totalorder %s37, 1
          %s605 = scalar_select %p604, %s37, 1
          %s606 = smul.addr %s605, 48
          %s607 = smul.addr %s606, 4
          %s608 = scalar_lea.vmem %s4, %s607
        $region52: #{roberta_large_forward.1} parent=47 // pred_fallthru
          _
        // Predicated region
        $region53: #{roberta_large_forward.1} parent=47 // pred_check
          %p609 = pneg %p167
        $region54: #{roberta_large_forward.1} parent=47 // pred_check_branch
          %611 = sbr.rel (%p609) target = $region56
        $region55: #{roberta_large_forward.1} parent=47 // pred_region
          %p612 = scmp.lt.s32.totalorder %s37, 1
          %s613 = scalar_select %p612, %s37, 1
          %s614 = smul.addr %s613, 3
          %s615 = scalar_lea.vmem %s5, %s614
        $region56: #{roberta_large_forward.1} parent=47 // pred_fallthru
          _
        // Predicated region
        $region57: #{roberta_large_forward.1} parent=47 // pred_check
          %p616 = pneg %p193
        $region58: #{roberta_large_forward.1} parent=47 // pred_check_branch
          %618 = sbr.rel (%p616) target = $region60
        $region59: #{roberta_large_forward.1} parent=47 // pred_region
          %s619 = sand.u32 %s183, 1
          %s620 = scalar_lea.sflag [#allocation4], %s619
          %s621 = sand.u32 %s183, 1
          %s622 = smul.addr %s621, 64
          %s623 = scalar_lea.vmem [#allocation3], %s622
          %s625 = ssub.s32 1024, 1024
          %626 = vsyncadd %s620, %s625
          %s627 = smul.addr %s37, 16
          %s628 = smul.addr %s627, 64
          %s629 = scalar_lea.hbm %s6, %s628
          %s630 = sshll.u32 %s623, 4
          %s631 = int_to_ptr.vmem [resolvable:$true] %s630
          %636 = dma.hbm_to_vmem [thread:$0]  %s629, 1024, %s631, %s620, 64, 64, 4
        $region60: #{roberta_large_forward.1} parent=47 // pred_fallthru
          _
        // Predicated region
        $region61: #{roberta_large_forward.1} parent=47 // pred_check
          %p637 = pneg %p219
        $region62: #{roberta_large_forward.1} parent=47 // pred_check_branch
          %639 = sbr.rel (%p637) target = $region64
        $region63: #{roberta_large_forward.1} parent=47 // pred_region
          %p640 = scmp.lt.s32.totalorder %s37, 1
          %s641 = scalar_select %p640, %s37, 1
          %s642 = scalar_lea.vmem %s7, %s641
        $region64: #{roberta_large_forward.1} parent=47 // pred_fallthru
          _
        // Predicated region
        $region65: #{roberta_large_forward.1} parent=47 // pred_check
          %p643 = pneg %p245
        $region66: #{roberta_large_forward.1} parent=47 // pred_check_branch
          %645 = sbr.rel (%p643) target = $region68
        $region67: #{roberta_large_forward.1} parent=47 // pred_region
          %p646 = scmp.lt.s32.totalorder %s37, 1
          %s647 = scalar_select %p646, %s37, 1
          %s648 = scalar_lea.vmem %s8, %s647
        $region68: #{roberta_large_forward.1} parent=47 // pred_fallthru
          _
        // Predicated region
        $region69: #{roberta_large_forward.1} parent=47 // pred_check
          %p649 = pneg %p271
        $region70: #{roberta_large_forward.1} parent=47 // pred_check_branch
          %651 = sbr.rel (%p649) target = $region72
        $region71: #{roberta_large_forward.1} parent=47 // pred_region
          %p652 = scmp.lt.s32.totalorder %s37, 1
          %s653 = scalar_select %p652, %s37, 1
          %s654 = scalar_lea.vmem %s9, %s653
        $region72: #{roberta_large_forward.1} parent=47 // pred_fallthru
          _
        // Predicated region
        $region73: #{roberta_large_forward.1} parent=47 // pred_check
          %p655 = pneg %p297
        $region74: #{roberta_large_forward.1} parent=47 // pred_check_branch
          %657 = sbr.rel (%p655) target = $region76
        $region75: #{roberta_large_forward.1} parent=47 // pred_region
          %s658 = sand.u32 %s37, 1
          %s659 = scalar_lea.sflag [#allocation7], %s658
          %s660 = sand.u32 %s287, 1
          %s661 = smul.addr %s660, 256
          %s662 = scalar_lea.vmem [#allocation6], %s661
          %s664 = ssub.s32 4096, 4096
          %665 = vsyncadd %s659, %s664
          %s666 = smul.addr %s37, 64
          %s667 = smul.addr %s666, 64
          %s668 = scalar_lea.hbm %s10, %s667
          %s669 = sshll.u32 %s662, 4
          %s670 = int_to_ptr.vmem [resolvable:$true] %s669
          %675 = dma.hbm_to_vmem [thread:$0]  %s668, 4096, %s670, %s659, 256, 256, 16
        $region76: #{roberta_large_forward.1} parent=47 // pred_fallthru
          _
        // Predicated region
        $region77: #{roberta_large_forward.1} parent=47 // pred_check
          %p676 = pneg %p323
        $region78: #{roberta_large_forward.1} parent=47 // pred_check_branch
          %678 = sbr.rel (%p676) target = $region80
        $region79: #{roberta_large_forward.1} parent=47 // pred_region
          %p679 = scmp.lt.s32.totalorder %s37, 1
          %s680 = scalar_select %p679, %s37, 1
          %s681 = smul.addr %s680, 4
          %s682 = scalar_lea.vmem %s11, %s681
        $region80: #{roberta_large_forward.1} parent=47 // pred_fallthru
          _
        // Predicated region
        $region81: #{roberta_large_forward.1} parent=47 // pred_check
          %p683 = pneg %p349
        $region82: #{roberta_large_forward.1} parent=47 // pred_check_branch
          %685 = sbr.rel (%p683) target = $region84
        $region83: #{roberta_large_forward.1} parent=47 // pred_region
          %s686 = sand.u32 %s37, 1
          %s687 = scalar_lea.sflag [#allocation7], %s686
          %s688 = sand.u32 %s339, 1
          %s689 = smul.addr %s688, 256
          %s690 = scalar_lea.vmem [#allocation8], %s689
          %s692 = ssub.s32 4096, 4096
          %693 = vsyncadd %s687, %s692
          %s694 = smul.addr %s37, 64
          %s695 = smul.addr %s694, 64
          %s696 = scalar_lea.hbm %s12, %s695
          %s697 = sshll.u32 %s690, 4
          %s698 = int_to_ptr.vmem [resolvable:$true] %s697
          %703 = dma.hbm_to_vmem [thread:$0]  %s696, 4096, %s698, %s687, 64, 64, 4
        $region84: #{roberta_large_forward.1} parent=47 // pred_fallthru
          _
        // Predicated region
        $region85: #{roberta_large_forward.1} parent=47 // pred_check
          %p704 = pneg %p375
        $region86: #{roberta_large_forward.1} parent=47 // pred_check_branch
          %706 = sbr.rel (%p704) target = $region88
        $region87: #{roberta_large_forward.1} parent=47 // pred_region
          %p707 = scmp.lt.s32.totalorder %s37, 1
          %s708 = scalar_select %p707, %s37, 1
          %s709 = scalar_lea.vmem %s13, %s708
        $region88: #{roberta_large_forward.1} parent=47 // pred_fallthru
          _
        // Predicated region
        $region89: #{roberta_large_forward.1} parent=47 // pred_check
          %p710 = pneg %p401
        $region90: #{roberta_large_forward.1} parent=47 // pred_check_branch
          %712 = sbr.rel (%p710) target = $region92
        $region91: #{roberta_large_forward.1} parent=47 // pred_region
          %s713 = sand.u32 %s37, 1
          %s714 = scalar_lea.sflag [#allocation10], %s713
          %s715 = sand.u32 %s391, 1
          %s716 = scalar_lea.vmem [#allocation9], %s715
          %s718 = ssub.s32 16, 16
          %719 = vsyncadd %s714, %s718
          %s720 = smul.addr %s37, 16
          %s721 = scalar_lea.hbm %s14, %s720
          %s723 = sshll.u32 %s716, 4
          %s724 = int_to_ptr.vmem [resolvable:$true] %s723
          %726 = dma.hbm_to_vmem [thread:$0]  %s721, 16, %s724, %s714
        $region92: #{roberta_large_forward.1} parent=47 // pred_fallthru
          _
        // Predicated region
        $region93: #{roberta_large_forward.1} parent=47 // pred_check
          %p727 = pneg %p427
        $region94: #{roberta_large_forward.1} parent=47 // pred_check_branch
          %729 = sbr.rel (%p727) target = $region96
        $region95: #{roberta_large_forward.1} parent=47 // pred_region
          %s730 = sand.u32 %s37, 1
          %s731 = scalar_lea.sflag [#allocation10], %s730
          %s732 = sand.u32 %s417, 1
          %s733 = scalar_lea.vmem [#allocation11], %s732
          %s735 = ssub.s32 16, 16
          %736 = vsyncadd %s731, %s735
          %s737 = smul.addr %s37, 16
          %s738 = scalar_lea.hbm %s15, %s737
          %s740 = sshll.u32 %s733, 4
          %s741 = int_to_ptr.vmem [resolvable:$true] %s740
          %743 = dma.hbm_to_vmem [thread:$0]  %s738, 16, %s741, %s731
        $region96: #{roberta_large_forward.1} parent=47 // pred_fallthru
          _
      $region48: #{roberta_large_forward.1} parent=5 // pred_fallthru
        _
      %p744 = scmp.le.s32.totalorder 1, %s37
      %p745 = scmp.lt.s32.totalorder %s37, 3
      %p746 = pnand %p744, %p745
      %p747 = pneg %p746
      // Predicated region
      $region97: #{roberta_large_forward.1} parent=5 // pred_check
        _
      $region98: #{roberta_large_forward.1} parent=5 // pred_check_branch
        %749 = sbr.rel (%p746) target = $region100
      $region99: #{roberta_large_forward.1} parent=5 // pred_region
        %s750 = ssub.s32 %s37, 1
        %s751 = sand.u32 %s186, 1
        %s752 = scalar_lea.sflag [#allocation4], %s751
        %s753 = sand.u32 %s186, 1
        %s754 = smul.addr %s753, 64
        %s755 = scalar_lea.vmem [#allocation3], %s754
        // Predicated region
        $region101: #{roberta_large_forward.1} parent=99 // pred_check
          %p756 = pneg %p199
        $region102: #{roberta_large_forward.1} parent=99 // pred_check_branch
          %758 = sbr.rel (%p756) target = $region104
        $region103: #{roberta_large_forward.1} parent=99 // pred_region
          %759 = dma.done %s752, 1024
        $region104: #{roberta_large_forward.1} parent=99 // pred_fallthru
          _
        %s760 = sand.u32 %s42, 1
        %s761 = scalar_lea.sflag [#allocation7], %s760
        %s762 = sand.u32 %s290, 1
        %s763 = smul.addr %s762, 256
        %s764 = scalar_lea.vmem [#allocation6], %s763
        // Predicated region
        $region105: #{roberta_large_forward.1} parent=99 // pred_check
          %p765 = pneg %p303
        $region106: #{roberta_large_forward.1} parent=99 // pred_check_branch
          %767 = sbr.rel (%p765) target = $region108
        $region107: #{roberta_large_forward.1} parent=99 // pred_region
          %768 = dma.done %s761, 4096
        $region108: #{roberta_large_forward.1} parent=99 // pred_fallthru
          _
        %s769 = sand.u32 %s42, 1
        %s770 = scalar_lea.sflag [#allocation7], %s769
        %s771 = sand.u32 %s342, 1
        %s772 = smul.addr %s771, 256
        %s773 = scalar_lea.vmem [#allocation8], %s772
        // Predicated region
        $region109: #{roberta_large_forward.1} parent=99 // pred_check
          %p774 = pneg %p355
        $region110: #{roberta_large_forward.1} parent=99 // pred_check_branch
          %776 = sbr.rel (%p774) target = $region112
        $region111: #{roberta_large_forward.1} parent=99 // pred_region
          %777 = dma.done %s770, 4096
        $region112: #{roberta_large_forward.1} parent=99 // pred_fallthru
          _
        %s778 = sand.u32 %s42, 1
        %s779 = scalar_lea.sflag [#allocation10], %s778
        %s780 = sand.u32 %s394, 1
        %s781 = scalar_lea.vmem [#allocation9], %s780
        // Predicated region
        $region113: #{roberta_large_forward.1} parent=99 // pred_check
          %p782 = pneg %p407
        $region114: #{roberta_large_forward.1} parent=99 // pred_check_branch
          %784 = sbr.rel (%p782) target = $region116
        $region115: #{roberta_large_forward.1} parent=99 // pred_region
          %785 = dma.done %s779, 16
        $region116: #{roberta_large_forward.1} parent=99 // pred_fallthru
          _
        %s786 = sand.u32 %s42, 1
        %s787 = scalar_lea.sflag [#allocation10], %s786
        %s788 = sand.u32 %s420, 1
        %s789 = scalar_lea.vmem [#allocation11], %s788
        // Predicated region
        $region117: #{roberta_large_forward.1} parent=99 // pred_check
          %p790 = pneg %p433
        $region118: #{roberta_large_forward.1} parent=99 // pred_check_branch
          %792 = sbr.rel (%p790) target = $region120
        $region119: #{roberta_large_forward.1} parent=99 // pred_region
          %793 = dma.done %s787, 16
        $region120: #{roberta_large_forward.1} parent=99 // pred_fallthru
          _
        // Predicated region
        $region121: #{roberta_large_forward.1} parent=99 // pred_check
          %p794 = pneg %p454
        $region122: #{roberta_large_forward.1} parent=99 // pred_check_branch
          %796 = sbr.rel (%p794) target = $region124
        $region123: #{roberta_large_forward.1} parent=99 // pred_region
          %797 = dma.done [#allocation13], 1024
        $region124: #{roberta_large_forward.1} parent=99 // pred_fallthru
          _
        // Predicated region
        $region125: #{roberta_large_forward.1} parent=99 // pred_check
          %p798 = pneg %p496
        $region126: #{roberta_large_forward.1} parent=99 // pred_check_branch
          %800 = sbr.rel (%p798) target = $region128
        $region127: #{roberta_large_forward.1} parent=99 // pred_region
          %801 = dma.done [#allocation13], 1024
        $region128: #{roberta_large_forward.1} parent=99 // pred_fallthru
          _
        %p802 = pneg %p58
        %p803 = pneg %p55
        %p804 = pneg %p79
        %p805 = pneg %p76
        %p806 = pneg %p100
        %p807 = pneg %p97
        %p808 = pneg %p121
        %p809 = pneg %p118
        %p810 = scmp.lt.s32.totalorder %s42, 1
        %s811 = scalar_select %p810, %s42, 1
        %s812 = smul.addr %s811, 48
        %s813 = smul.addr %s812, 4
        %s814 = scalar_lea.vmem %s4, %s813
        %p815 = pneg %p147
        %p816 = pneg %p144
        %p817 = scmp.lt.s32.totalorder %s42, 1
        %s818 = scalar_select %p817, %s42, 1
        %s819 = smul.addr %s818, 3
        %s820 = scalar_lea.vmem %s5, %s819
        %p821 = pneg %p173
        %p822 = pneg %p170
        %s823 = sand.u32 %s186, 1
        %s824 = scalar_lea.sflag [#allocation4], %s823
        %s825 = sand.u32 %s186, 1
        %s826 = smul.addr %s825, 64
        %s827 = scalar_lea.vmem [#allocation3], %s826
        %p828 = pneg %p199
        %p829 = pneg %p196
        %p830 = scmp.lt.s32.totalorder %s42, 1
        %s831 = scalar_select %p830, %s42, 1
        %s832 = scalar_lea.vmem %s7, %s831
        %p833 = pneg %p225
        %p834 = pneg %p222
        %p835 = scmp.lt.s32.totalorder %s42, 1
        %s836 = scalar_select %p835, %s42, 1
        %s837 = scalar_lea.vmem %s8, %s836
        %p838 = pneg %p251
        %p839 = pneg %p248
        %p840 = scmp.lt.s32.totalorder %s42, 1
        %s841 = scalar_select %p840, %s42, 1
        %s842 = scalar_lea.vmem %s9, %s841
        %p843 = pneg %p277
        %p844 = pneg %p274
        %s845 = sand.u32 %s42, 1
        %s846 = scalar_lea.sflag [#allocation7], %s845
        %s847 = sand.u32 %s290, 1
        %s848 = smul.addr %s847, 256
        %s849 = scalar_lea.vmem [#allocation6], %s848
        %p850 = pneg %p303
        %p851 = pneg %p300
        %p852 = scmp.lt.s32.totalorder %s42, 1
        %s853 = scalar_select %p852, %s42, 1
        %s854 = smul.addr %s853, 4
        %s855 = scalar_lea.vmem %s11, %s854
        %p856 = pneg %p329
        %p857 = pneg %p326
        %s858 = sand.u32 %s42, 1
        %s859 = scalar_lea.sflag [#allocation7], %s858
        %s860 = sand.u32 %s342, 1
        %s861 = smul.addr %s860, 256
        %s862 = scalar_lea.vmem [#allocation8], %s861
        %p863 = pneg %p355
        %p864 = pneg %p352
        %p865 = scmp.lt.s32.totalorder %s42, 1
        %s866 = scalar_select %p865, %s42, 1
        %s867 = scalar_lea.vmem %s13, %s866
        %p868 = pneg %p381
        %p869 = pneg %p378
        %s870 = sand.u32 %s42, 1
        %s871 = scalar_lea.sflag [#allocation10], %s870
        %s872 = sand.u32 %s394, 1
        %s873 = scalar_lea.vmem [#allocation9], %s872
        %p874 = pneg %p407
        %p875 = pneg %p404
        %s876 = sand.u32 %s42, 1
        %s877 = scalar_lea.sflag [#allocation10], %s876
        %s878 = sand.u32 %s420, 1
        %s879 = scalar_lea.vmem [#allocation11], %s878
        %p880 = pneg %p433
        %p881 = pneg %p430
        %p882 = pneg %p454
        %p883 = pneg %p451
        %p884 = pneg %p475
        %p885 = pneg %p472
        %p886 = pneg %p496
        %p887 = pneg %p493
        %p888 = pneg %p517
        %p889 = pneg %p514
        %p890 = pneg %p538
        %p891 = pneg %p535
        %p892 = scmp.lt.s32.totalorder %s42, 1
        %s893 = scalar_select %p892, %s42, 1
        %s894 = smul.addr %s893, 48
        %s895 = smul.addr %s894, 4
        %s896 = scalar_lea.vmem %s4, %s895
        %p897 = scmp.lt.s32.totalorder %s42, 1
        %s898 = scalar_select %p897, %s42, 1
        %s899 = smul.addr %s898, 3
        %s900 = scalar_lea.vmem %s5, %s899
        %p901 = scmp.lt.s32.totalorder %s42, 1
        %s902 = scalar_select %p901, %s42, 1
        %s903 = scalar_lea.vmem %s7, %s902
        %p904 = scmp.lt.s32.totalorder %s42, 1
        %s905 = scalar_select %p904, %s42, 1
        %s906 = scalar_lea.vmem %s8, %s905
        %p907 = scmp.lt.s32.totalorder %s42, 1
        %s908 = scalar_select %p907, %s42, 1
        %s909 = scalar_lea.vmem %s9, %s908
        %p910 = scmp.lt.s32.totalorder %s42, 1
        %s911 = scalar_select %p910, %s42, 1
        %s912 = smul.addr %s911, 4
        %s913 = scalar_lea.vmem %s11, %s912
        %p914 = scmp.lt.s32.totalorder %s42, 1
        %s915 = scalar_select %p914, %s42, 1
        %s916 = scalar_lea.vmem %s13, %s915
        %p918 = scmp.eq.s32.totalorder %s42, 0
        // Predicated region
        $region129: #{roberta_large_forward.1} parent=99 // pred_check
          %p919 = pneg %p918
        $region130: #{roberta_large_forward.1} parent=99 // pred_check_branch
          %921 = sbr.rel (%p919) target = $region132
        $region131: #{roberta_large_forward.1} parent=99 // pred_region
          %v922 = vld [vmem:[%s0] sm:$0xff]
          %v923 = vld [vmem:[%s0 + $0x8] sm:$0xff]
          %v924 = vld [vmem:[%s2] sm:$0x1]
          %v925 = vld [vmem:[%s3] sm:$0x1]
          %926 = vadd.xlane.f32.xlu0 %v922
          %v927 = vpop.xlane.xlu0 %926
          %928 = vadd.xlane.f32.xlu0 %v923
          %v929 = vpop.xlane.xlu0 %928
          %v930 = vrcp.pop 128.0
          %v931 = vmul.f32 %v927, %v930
          %v932 = vmul.f32 %v929, %v930
          %v933 = vsub.f32 %v922, %v931
          %v934 = vsub.f32 %v923, %v932
          %v935 = vmul.f32 %v933, %v933
          %v936 = vmul.f32 %v934, %v934
          %937 = vadd.xlane.f32.xlu0 %v935
          %v938 = vpop.xlane.xlu0 %937
          %939 = vadd.xlane.f32.xlu0 %v936
          %v940 = vpop.xlane.xlu0 %939
          %v941 = vmul.f32 %v938, %v930
          %v942 = vmul.f32 %v940, %v930
          %v943 = vadd.f32 %v941, 1e-05
          %v944 = vadd.f32 %v942, 1e-05
          %v945 = vrsqrt.pop %v943
          %v946 = vrsqrt.pop %v944
          %v947 = vmul.f32 %v933, %v945
          %v948 = vmul.f32 %v934, %v946
          %v950 = vlaneseq
          %v951 = vshrl.u32 %v950, 7
          %v952 = vsub.s32 0, %v951
          %v953 = vrot.slane %v924, %v952
          %v955 = vmul.f32 %v947, %v953
          %v956 = vmul.f32 %v948, %v953
          %v958 = vlaneseq
          %v959 = vshrl.u32 %v958, 7
          %v960 = vsub.s32 0, %v959
          %v961 = vrot.slane %v925, %v960
          %v963 = vadd.f32 %v955, %v961
          %v964 = vadd.f32 %v956, %v961
          %965 = vst [vmem:[#allocation2] sm:$0xff] %v963
          %966 = vst [vmem:[#allocation2 + $0x8] sm:$0xff] %v964
        $region132: #{roberta_large_forward.1} parent=99 // pred_fallthru
          _
        %v967 = vld [vmem:[#allocation2] sm:$0xff]
        %v968 = vld [vmem:[#allocation2 + $0x8] sm:$0xff]
        %v969 = vpack.c.bf16 %v968, %v967
        %v970 = vld [vmem:[%s896] sm:$0xff]
        %v971 = vld [vmem:[%s896 + $0x8] sm:$0xf]
        %v972 = vld [vmem:[%s896 + $0xc] sm:$0xff]
        %v973 = vld [vmem:[%s896 + $0x14] sm:$0xf]
        %v974 = vld [vmem:[%s896 + $0x18] sm:$0xff]
        %v975 = vld [vmem:[%s896 + $0x20] sm:$0xf]
        %v976 = vld [vmem:[%s896 + $0x24] sm:$0xff]
        %v977 = vld [vmem:[%s896 + $0x2c] sm:$0xf]
        %v978 = vld [vmem:[%s896 + $0x30] sm:$0xff]
        %v979 = vld [vmem:[%s896 + $0x38] sm:$0xf]
        %v980 = vld [vmem:[%s896 + $0x3c] sm:$0xff]
        %v981 = vld [vmem:[%s896 + $0x44] sm:$0xf]
        %v982 = vld [vmem:[%s896 + $0x48] sm:$0xff]
        %v983 = vld [vmem:[%s896 + $0x50] sm:$0xf]
        %v984 = vld [vmem:[%s896 + $0x54] sm:$0xff]
        %v985 = vld [vmem:[%s896 + $0x5c] sm:$0xf]
        %v986 = vld [vmem:[%s896 + $0x60] sm:$0xff]
        %v987 = vld [vmem:[%s896 + $0x68] sm:$0xf]
        %v988 = vld [vmem:[%s896 + $0x6c] sm:$0xff]
        %v989 = vld [vmem:[%s896 + $0x74] sm:$0xf]
        %v990 = vld [vmem:[%s896 + $0x78] sm:$0xff]
        %v991 = vld [vmem:[%s896 + $0x80] sm:$0xf]
        %v992 = vld [vmem:[%s896 + $0x84] sm:$0xff]
        %v993 = vld [vmem:[%s896 + $0x8c] sm:$0xf]
        %v994 = vld [vmem:[%s896 + $0x90] sm:$0xff]
        %v995 = vld [vmem:[%s896 + $0x98] sm:$0xf]
        %v996 = vld [vmem:[%s896 + $0x9c] sm:$0xff]
        %v997 = vld [vmem:[%s896 + $0xa4] sm:$0xf]
        %v998 = vld [vmem:[%s896 + $0xa8] sm:$0xff]
        %v999 = vld [vmem:[%s896 + $0xb0] sm:$0xf]
        %v1000 = vld [vmem:[%s896 + $0xb4] sm:$0xff]
        %v1001 = vld [vmem:[%s896 + $0xbc] sm:$0xf]
        %v1002 = vld [vmem:[%s900] sm:$0x7]
        %v1004 = vlaneseq
        %v1005 = vshrl.u32 %v1004, 7
        %v1006 = vsub.s32 0, %v1005
        %v1007 = vrot.slane %v1002, %v1006
        %v1008 = vlaneseq
        %v1009 = vshrl.u32 %v1008, 7
        %v1010 = vsub.s32 1, %v1009
        %v1011 = vrot.slane %v1002, %v1010
        %v1012 = vlaneseq
        %v1013 = vshrl.u32 %v1012, 7
        %v1014 = vsub.s32 2, %v1013
        %v1015 = vrot.slane %v1002, %v1014
        %v1051 = vunpack.c.l.b16 %v970
        %v1052 = vunpack.c.h.b16 %v970
        %v1053 = vunpack.c.l.b16 %v971
        %v1054 = vunpack.c.l.b16 %v972
        %v1055 = vunpack.c.h.b16 %v972
        %v1056 = vunpack.c.l.b16 %v973
        %v1057 = vunpack.c.l.b16 %v974
        %v1058 = vunpack.c.h.b16 %v974
        %v1059 = vunpack.c.l.b16 %v975
        %v1060 = vunpack.c.l.b16 %v976
        %v1061 = vunpack.c.h.b16 %v976
        %v1062 = vunpack.c.l.b16 %v977
        %v1063 = vunpack.c.l.b16 %v978
        %v1064 = vunpack.c.h.b16 %v978
        %v1065 = vunpack.c.l.b16 %v979
        %v1066 = vunpack.c.l.b16 %v980
        %v1067 = vunpack.c.h.b16 %v980
        %v1068 = vunpack.c.l.b16 %v981
        %v1069 = vunpack.c.l.b16 %v982
        %v1070 = vunpack.c.h.b16 %v982
        %v1071 = vunpack.c.l.b16 %v983
        %v1072 = vunpack.c.l.b16 %v984
        %v1073 = vunpack.c.h.b16 %v984
        %v1074 = vunpack.c.l.b16 %v985
        %v1075 = vunpack.c.l.b16 %v986
        %v1076 = vunpack.c.h.b16 %v986
        %v1077 = vunpack.c.l.b16 %v987
        %v1078 = vunpack.c.l.b16 %v988
        %v1079 = vunpack.c.h.b16 %v988
        %v1080 = vunpack.c.l.b16 %v989
        %v1081 = vunpack.c.l.b16 %v990
        %v1082 = vunpack.c.h.b16 %v990
        %v1083 = vunpack.c.l.b16 %v991
        %v1084 = vunpack.c.l.b16 %v992
        %v1085 = vunpack.c.h.b16 %v992
        %v1086 = vunpack.c.l.b16 %v993
        %v1087 = vunpack.c.l.b16 %v994
        %v1088 = vunpack.c.h.b16 %v994
        %v1089 = vunpack.c.l.b16 %v995
        %v1090 = vunpack.c.l.b16 %v996
        %v1091 = vunpack.c.h.b16 %v996
        %v1092 = vunpack.c.l.b16 %v997
        %v1093 = vunpack.c.l.b16 %v998
        %v1094 = vunpack.c.h.b16 %v998
        %v1095 = vunpack.c.l.b16 %v999
        %v1096 = vunpack.c.l.b16 %v1000
        %v1097 = vunpack.c.h.b16 %v1000
        %v1098 = vunpack.c.l.b16 %v1001
        %v1099 = vpack.c.b16 %v1054, %v1051
        %v1100 = vpack.c.b16 %v1055, %v1052
        %v1101 = vpack.c.b16 %v1056, %v1053
        %v1102 = vpack.c.b16 %v1060, %v1057
        %v1103 = vpack.c.b16 %v1061, %v1058
        %v1104 = vpack.c.b16 %v1062, %v1059
        %v1105 = vpack.c.b16 %v1066, %v1063
        %v1106 = vpack.c.b16 %v1067, %v1064
        %v1107 = vpack.c.b16 %v1068, %v1065
        %v1108 = vpack.c.b16 %v1072, %v1069
        %v1109 = vpack.c.b16 %v1073, %v1070
        %v1110 = vpack.c.b16 %v1074, %v1071
        %v1111 = vpack.c.b16 %v1078, %v1075
        %v1112 = vpack.c.b16 %v1079, %v1076
        %v1113 = vpack.c.b16 %v1080, %v1077
        %v1114 = vpack.c.b16 %v1084, %v1081
        %v1115 = vpack.c.b16 %v1085, %v1082
        %v1116 = vpack.c.b16 %v1086, %v1083
        %v1117 = vpack.c.b16 %v1090, %v1087
        %v1118 = vpack.c.b16 %v1091, %v1088
        %v1119 = vpack.c.b16 %v1092, %v1089
        %v1120 = vpack.c.b16 %v1096, %v1093
        %v1121 = vpack.c.b16 %v1097, %v1094
        %v1122 = vpack.c.b16 %v1098, %v1095
        %1147 = vmatprep.subr.bf16.mxu0 %v1121
        %1148 = vmatpush1.bf16.msra.mxu0 %v1120
        %1149 = vmatprep.subr.bf16.mxu0 %v1118
        %1150 = vmatpush1.bf16.msra.mxu0 %v1117
        %1151 = vmatprep.subr.bf16.mxu0 %v1115
        %1152 = vmatpush1.bf16.msra.mxu0 %v1114
        %1153 = vmatprep.subr.bf16.mxu0 %v1112
        %1154 = vmatpush1.bf16.msra.mxu0 %v1111
        %1155 = vmatprep.subr.bf16.mxu0 %v1109
        %1156 = vmatpush1.bf16.msra.mxu0 %v1108
        %1157 = vmatprep.subr.bf16.mxu0 %v1106
        %1158 = vmatpush1.bf16.msra.mxu0 %v1105
        %1159 = vmatprep.subr.bf16.mxu0 %v1103
        %1160 = vmatpush1.bf16.msra.mxu0 %v1102
        %1161 = vmatprep.subr.bf16.mxu0 %v1100
        %1162 = vmatpush1.bf16.msra.mxu0 %v1099
        %1163 = vmatprep.subr.bf16.mxu0 0
        %1164 = vmatpush2.bf16.msra.mxu0 0
        %1165 = vmatprep.subr.bf16.mxu0 0
        %1166 = vmatpush2.bf16.msra.mxu0 0
        %1167 = vmatprep.subr.bf16.mxu0 0
        %1168 = vmatpush2.bf16.msra.mxu0 0
        %1169 = vmatprep.subr.bf16.mxu0 0
        %1170 = vmatpush2.bf16.msra.mxu0 0
        %1171 = vmatprep.subr.bf16.mxu0 0
        %1172 = vmatpush2.bf16.msra.mxu0 0
        %1173 = vmatprep.subr.bf16.mxu0 0
        %1174 = vmatpush2.bf16.msra.mxu0 0
        %1175 = vmatprep.subr.bf16.mxu0 0
        %1176 = vmatpush2.bf16.msra.mxu0 0
        %1177 = vmatprep.subr.bf16.mxu0 0
        %1178 = vmatpush2.bf16.msra.mxu0 0
        %1179 = vmatprep.mubr.bf16.mxu0 0
        %1180 = vmatmul.mubr.bf16.gmra.mxu0 %v969
        %v1181 = vpop.f32.mrf.mxu0
        %v1182 = vadd.f32 %v1007, %v1181
        %v1183 = vpop.f32.mrf.mxu0
        %v1184 = vadd.f32 %v1011, %v1183
        %v1185 = vpop.f32.mrf.mxu0
        %v1186 = vadd.f32 %v1007, %v1185
        %v1187 = vpop.f32.mrf.mxu0
        %v1188 = vadd.f32 %v1011, %v1187
        %1189 = vdwg.mxu0
        %1190 = vmatprep.subr.bf16.mxu0 0
        %1191 = vmatpush1.bf16.msra.mxu0 %v1122
        %1192 = vmatprep.subr.bf16.mxu0 0
        %1193 = vmatpush1.bf16.msra.mxu0 %v1119
        %1194 = vmatprep.subr.bf16.mxu0 0
        %1195 = vmatpush1.bf16.msra.mxu0 %v1116
        %1196 = vmatprep.subr.bf16.mxu0 0
        %1197 = vmatpush1.bf16.msra.mxu0 %v1113
        %1198 = vmatprep.subr.bf16.mxu0 0
        %1199 = vmatpush1.bf16.msra.mxu0 %v1110
        %1200 = vmatprep.subr.bf16.mxu0 0
        %1201 = vmatpush1.bf16.msra.mxu0 %v1107
        %1202 = vmatprep.subr.bf16.mxu0 0
        %1203 = vmatpush1.bf16.msra.mxu0 %v1104
        %1204 = vmatprep.subr.bf16.mxu0 0
        %1205 = vmatpush1.bf16.msra.mxu0 %v1101
        %1206 = vmatprep.subr.bf16.mxu0 0
        %1207 = vmatpush2.bf16.msra.mxu0 0
        %1208 = vmatprep.subr.bf16.mxu0 0
        %1209 = vmatpush2.bf16.msra.mxu0 0
        %1210 = vmatprep.subr.bf16.mxu0 0
        %1211 = vmatpush2.bf16.msra.mxu0 0
        %1212 = vmatprep.subr.bf16.mxu0 0
        %1213 = vmatpush2.bf16.msra.mxu0 0
        %1214 = vmatprep.subr.bf16.mxu0 0
        %1215 = vmatpush2.bf16.msra.mxu0 0
        %1216 = vmatprep.subr.bf16.mxu0 0
        %1217 = vmatpush2.bf16.msra.mxu0 0
        %1218 = vmatprep.subr.bf16.mxu0 0
        %1219 = vmatpush2.bf16.msra.mxu0 0
        %1220 = vmatprep.subr.bf16.mxu0 0
        %1221 = vmatpush2.bf16.msra.mxu0 0
        %1222 = vmatprep.mubr.bf16.mxu0 0
        %1223 = vmatmul.mubr.bf16.gmra.mxu0 %v969
        %v1224 = vpop.f32.mrf.mxu0
        %v1225 = vadd.f32 %v1015, %v1224
        %v1226 = vpop.f32.mrf.mxu0
        %v1227 = vpop.f32.mrf.mxu0
        %v1228 = vadd.f32 %v1015, %v1227
        %v1229 = vpop.f32.mrf.mxu0
        %1230 = vdwg.mxu0
        %v1231 = vmul.f32 %v1182, 0.125
        %v1232 = vmul.f32 %v1186, 0.125
        %v1233 = vld [vmem:[%s1] sm:$0x3]
        %v1236 = vunpack.c.l.s4 1966171168
        %v1237 = vunpack.c.0.s8 %v1236
        %v1238 = vlaneseq
        %v1239 = vshrl.u32 %v1238, 7
        %v1240 = vsub.s32 %v1237, %v1239
        %v1241 = vrot.slane %v1233, %v1240
        %v1242 = vcombine.high %v1241, %v1241
        %v1244 = vunpack.c.l.s4 1966171168
        %v1245 = vunpack.c.0.s8 %v1244
        %v1246 = vlaneseq
        %v1247 = vshrl.u32 %v1246, 7
        %v1248 = vsub.s32 %v1245, %v1247
        %v1249 = vrot.slane %v1241, %v1248
        %v1251 = vunpack.c.l.s4 1966171168
        %v1252 = vunpack.c.0.s8 %v1251
        %v1253 = vlaneseq
        %v1254 = vshrl.u32 %v1253, 7
        %v1255 = vsub.s32 %v1252, %v1254
        %v1256 = vrot.slane %v1242, %v1255
        %v1257 = vpack.c.bf16 %v1231, %v1231
        %v1258 = vpack.c.bf16 %v1232, %v1232
        %v1259 = vpack.c.bf16 %v1184, %v1184
        %v1260 = vpack.c.bf16 %v1188, %v1188
        %v1261 = vpack.c.bf16 %v1225, %v1225
        %v1262 = vpack.c.bf16 %v1228, %v1228
        %v1263 = vlaneseq
        %v1264 = vshrl.u32 %v1263, 7
        %v1265 = vsub.s32 0, %v1264
        %v1266 = vrot.slane %v1249, %v1265
        %v1267 = vlaneseq
        %v1268 = vshrl.u32 %v1267, 7
        %v1269 = vsub.s32 0, %v1268
        %v1270 = vrot.slane %v1256, %v1269
        %vm1273 = vcmask 523264
        %v1275 = vsel %vm1273, %v1257, 0
        %v1278 = vsel %vm1273, %v1259, 0
        %1280 = vmatprep.subr.bf16.mxu0 0
        %1281 = vmatpush1.bf16.xpose.msra.mxu0 0
        %1282 = vmatprep.subr.bf16.mxu0 0
        %1283 = vmatpush1.bf16.xpose.msra.mxu0 0
        %1284 = vmatprep.subr.bf16.mxu0 0
        %1285 = vmatpush1.bf16.xpose.msra.mxu0 0
        %1286 = vmatprep.subr.bf16.mxu0 0
        %1287 = vmatpush1.bf16.xpose.msra.mxu0 0
        %1288 = vmatprep.subr.bf16.mxu0 0
        %1289 = vmatpush1.bf16.xpose.msra.mxu0 0
        %1290 = vmatprep.subr.bf16.mxu0 0
        %1291 = vmatpush1.bf16.xpose.msra.mxu0 0
        %1292 = vmatprep.subr.bf16.mxu0 0
        %1293 = vmatpush1.bf16.xpose.msra.mxu0 0
        %1294 = vmatprep.subr.bf16.mxu0 0
        %1295 = vmatpush1.bf16.xpose.msra.mxu0 %v1278
        %1296 = vmatprep.subr.bf16.mxu0 0
        %1297 = vmatpush2.bf16.xpose.msra.mxu0 0
        %1298 = vmatprep.subr.bf16.mxu0 0
        %1299 = vmatpush2.bf16.xpose.msra.mxu0 0
        %1300 = vmatprep.subr.bf16.mxu0 0
        %1301 = vmatpush2.bf16.xpose.msra.mxu0 0
        %1302 = vmatprep.subr.bf16.mxu0 0
        %1303 = vmatpush2.bf16.xpose.msra.mxu0 0
        %1304 = vmatprep.subr.bf16.mxu0 0
        %1305 = vmatpush2.bf16.xpose.msra.mxu0 0
        %1306 = vmatprep.subr.bf16.mxu0 0
        %1307 = vmatpush2.bf16.xpose.msra.mxu0 0
        %1308 = vmatprep.subr.bf16.mxu0 0
        %1309 = vmatpush2.bf16.xpose.msra.mxu0 0
        %1310 = vmatprep.subr.bf16.mxu0 0
        %1311 = vmatpush2.bf16.xpose.msra.mxu0 0
        %1312 = vmatprep.mubr.bf16.mxu0 0
        %1313 = vmatmul.mubr.bf16.gmra.mxu0 %v1275
        %v1314 = vpop.f32.mrf.mxu0
        %v1315 = vadd.f32 %v1266, %v1314
        %v1316 = vpop.f32.mrf.mxu0
        %v1317 = vpop.f32.mrf.mxu0
        %v1318 = vpop.f32.mrf.mxu0
        %1319 = vdwg.mxu0
        %v1321 = vsel %vm1273, %v1258, 0
        %v1324 = vsel %vm1273, %v1260, 0
        %1326 = vmatprep.subr.bf16.mxu0 0
        %1327 = vmatpush1.bf16.xpose.msra.mxu0 0
        %1328 = vmatprep.subr.bf16.mxu0 0
        %1329 = vmatpush1.bf16.xpose.msra.mxu0 0
        %1330 = vmatprep.subr.bf16.mxu0 0
        %1331 = vmatpush1.bf16.xpose.msra.mxu0 0
        %1332 = vmatprep.subr.bf16.mxu0 0
        %1333 = vmatpush1.bf16.xpose.msra.mxu0 0
        %1334 = vmatprep.subr.bf16.mxu0 0
        %1335 = vmatpush1.bf16.xpose.msra.mxu0 0
        %1336 = vmatprep.subr.bf16.mxu0 0
        %1337 = vmatpush1.bf16.xpose.msra.mxu0 0
        %1338 = vmatprep.subr.bf16.mxu0 0
        %1339 = vmatpush1.bf16.xpose.msra.mxu0 0
        %1340 = vmatprep.subr.bf16.mxu0 0
        %1341 = vmatpush1.bf16.xpose.msra.mxu0 %v1324
        %1342 = vmatprep.subr.bf16.mxu0 0
        %1343 = vmatpush2.bf16.xpose.msra.mxu0 0
        %1344 = vmatprep.subr.bf16.mxu0 0
        %1345 = vmatpush2.bf16.xpose.msra.mxu0 0
        %1346 = vmatprep.subr.bf16.mxu0 0
        %1347 = vmatpush2.bf16.xpose.msra.mxu0 0
        %1348 = vmatprep.subr.bf16.mxu0 0
        %1349 = vmatpush2.bf16.xpose.msra.mxu0 0
        %1350 = vmatprep.subr.bf16.mxu0 0
        %1351 = vmatpush2.bf16.xpose.msra.mxu0 0
        %1352 = vmatprep.subr.bf16.mxu0 0
        %1353 = vmatpush2.bf16.xpose.msra.mxu0 0
        %1354 = vmatprep.subr.bf16.mxu0 0
        %1355 = vmatpush2.bf16.xpose.msra.mxu0 0
        %1356 = vmatprep.subr.bf16.mxu0 0
        %1357 = vmatpush2.bf16.xpose.msra.mxu0 0
        %1358 = vmatprep.mubr.bf16.mxu0 0
        %1359 = vmatmul.mubr.bf16.gmra.mxu0 %v1321
        %v1360 = vpop.f32.mrf.mxu0
        %v1361 = vadd.f32 %v1270, %v1360
        %v1362 = vpop.f32.mrf.mxu0
        %v1363 = vpop.f32.mrf.mxu0
        %v1364 = vpop.f32.mrf.mxu0
        %1365 = vdwg.mxu0
        %vm1366 = vcmask 64512
        %v1367 = vsel %vm1366, %v1315, -inf
        %1368 = vmax.xlane.f32.xlu0 %v1367
        %v1369 = vpop.xlane.xlu0 %1368
        %v1370 = vsel %vm1366, %v1361, -inf
        %1371 = vmax.xlane.f32.xlu0 %v1370
        %v1372 = vpop.xlane.xlu0 %1371
        %v1373 = vsub.f32 %v1315, %v1369
        %v1374 = vsub.f32 %v1361, %v1372
        %v1375 = vmul.f32 %v1373, 1.442695
        %v1376 = vpow.pop %v1375
        %v1377 = vmul.f32 %v1374, 1.442695
        %v1378 = vpow.pop %v1377
        %v1379 = vsel %vm1366, %v1376, 0.0
        %1380 = vadd.xlane.f32.xlu0 %v1379
        %v1381 = vpop.xlane.xlu0 %1380
        %v1382 = vsel %vm1366, %v1378, 0.0
        %1383 = vadd.xlane.f32.xlu0 %v1382
        %v1384 = vpop.xlane.xlu0 %1383
        %v1385 = vrcp.pop %v1381
        %v1386 = vmul.f32 %v1376, %v1385
        %v1387 = vrcp.pop %v1384
        %v1388 = vmul.f32 %v1378, %v1387
        %v1389 = vpack.c.bf16 %v1386, %v1386
        %v1390 = vpack.c.bf16 %v1388, %v1388
        %v1392 = vsel %vm1366, %v1389, 0
        %vm1394 = vcmask 1043456
        %v1396 = vsel %vm1394, %v1261, 0
        %1398 = vmatprep.subr.bf16.mxu0 0
        %1399 = vmatpush1.bf16.msra.mxu0 0
        %1400 = vmatprep.subr.bf16.mxu0 0
        %1401 = vmatpush1.bf16.msra.mxu0 0
        %1402 = vmatprep.subr.bf16.mxu0 0
        %1403 = vmatpush1.bf16.msra.mxu0 0
        %1404 = vmatprep.subr.bf16.mxu0 0
        %1405 = vmatpush1.bf16.msra.mxu0 0
        %1406 = vmatprep.subr.bf16.mxu0 0
        %1407 = vmatpush1.bf16.msra.mxu0 0
        %1408 = vmatprep.subr.bf16.mxu0 0
        %1409 = vmatpush1.bf16.msra.mxu0 0
        %1410 = vmatprep.subr.bf16.mxu0 0
        %1411 = vmatpush1.bf16.msra.mxu0 0
        %1412 = vmatprep.subr.bf16.mxu0 0
        %1413 = vmatpush1.bf16.msra.mxu0 %v1396
        %1414 = vmatprep.subr.bf16.mxu0 0
        %1415 = vmatpush2.bf16.msra.mxu0 0
        %1416 = vmatprep.subr.bf16.mxu0 0
        %1417 = vmatpush2.bf16.msra.mxu0 0
        %1418 = vmatprep.subr.bf16.mxu0 0
        %1419 = vmatpush2.bf16.msra.mxu0 0
        %1420 = vmatprep.subr.bf16.mxu0 0
        %1421 = vmatpush2.bf16.msra.mxu0 0
        %1422 = vmatprep.subr.bf16.mxu0 0
        %1423 = vmatpush2.bf16.msra.mxu0 0
        %1424 = vmatprep.subr.bf16.mxu0 0
        %1425 = vmatpush2.bf16.msra.mxu0 0
        %1426 = vmatprep.subr.bf16.mxu0 0
        %1427 = vmatpush2.bf16.msra.mxu0 0
        %1428 = vmatprep.subr.bf16.mxu0 0
        %1429 = vmatpush2.bf16.msra.mxu0 0
        %1430 = vmatprep.mubr.bf16.mxu0 0
        %1431 = vmatmul.mubr.bf16.gmra.mxu0 %v1392
        %v1432 = vpop.f32.mrf.mxu0
        %v1433 = vadd.f32 0.0, %v1432
        %v1434 = vpop.f32.mrf.mxu0
        %v1435 = vpop.f32.mrf.mxu0
        %v1436 = vpop.f32.mrf.mxu0
        %1437 = vdwg.mxu0
        %v1439 = vsel %vm1366, %v1390, 0
        %v1442 = vsel %vm1394, %v1262, 0
        %1444 = vmatprep.subr.bf16.mxu0 0
        %1445 = vmatpush1.bf16.msra.mxu0 0
        %1446 = vmatprep.subr.bf16.mxu0 0
        %1447 = vmatpush1.bf16.msra.mxu0 0
        %1448 = vmatprep.subr.bf16.mxu0 0
        %1449 = vmatpush1.bf16.msra.mxu0 0
        %1450 = vmatprep.subr.bf16.mxu0 0
        %1451 = vmatpush1.bf16.msra.mxu0 0
        %1452 = vmatprep.subr.bf16.mxu0 0
        %1453 = vmatpush1.bf16.msra.mxu0 0
        %1454 = vmatprep.subr.bf16.mxu0 0
        %1455 = vmatpush1.bf16.msra.mxu0 0
        %1456 = vmatprep.subr.bf16.mxu0 0
        %1457 = vmatpush1.bf16.msra.mxu0 0
        %1458 = vmatprep.subr.bf16.mxu0 0
        %1459 = vmatpush1.bf16.msra.mxu0 %v1442
        %1460 = vmatprep.subr.bf16.mxu0 0
        %1461 = vmatpush2.bf16.msra.mxu0 0
        %1462 = vmatprep.subr.bf16.mxu0 0
        %1463 = vmatpush2.bf16.msra.mxu0 0
        %1464 = vmatprep.subr.bf16.mxu0 0
        %1465 = vmatpush2.bf16.msra.mxu0 0
        %1466 = vmatprep.subr.bf16.mxu0 0
        %1467 = vmatpush2.bf16.msra.mxu0 0
        %1468 = vmatprep.subr.bf16.mxu0 0
        %1469 = vmatpush2.bf16.msra.mxu0 0
        %1470 = vmatprep.subr.bf16.mxu0 0
        %1471 = vmatpush2.bf16.msra.mxu0 0
        %1472 = vmatprep.subr.bf16.mxu0 0
        %1473 = vmatpush2.bf16.msra.mxu0 0
        %1474 = vmatprep.subr.bf16.mxu0 0
        %1475 = vmatpush2.bf16.msra.mxu0 0
        %1476 = vmatprep.mubr.bf16.mxu0 0
        %1477 = vmatmul.mubr.bf16.gmra.mxu0 %v1439
        %v1478 = vpop.f32.mrf.mxu0
        %v1479 = vadd.f32 0.0, %v1478
        %v1480 = vpop.f32.mrf.mxu0
        %v1481 = vpop.f32.mrf.mxu0
        %v1482 = vpop.f32.mrf.mxu0
        %1483 = vdwg.mxu0
        %1485 = vrot.lane.b32.xlu0 %v1257, 64
        %v1486 = vpop.permute.xlu0 %1485
        %1488 = vrot.lane.b32.xlu0 %v1259, 64
        %v1489 = vpop.permute.xlu0 %1488
        %v1491 = vsel %vm1273, %v1486, 0
        %v1494 = vsel %vm1273, %v1489, 0
        %1496 = vmatprep.subr.bf16.mxu0 0
        %1497 = vmatpush1.bf16.xpose.msra.mxu0 0
        %1498 = vmatprep.subr.bf16.mxu0 0
        %1499 = vmatpush1.bf16.xpose.msra.mxu0 0
        %1500 = vmatprep.subr.bf16.mxu0 0
        %1501 = vmatpush1.bf16.xpose.msra.mxu0 0
        %1502 = vmatprep.subr.bf16.mxu0 0
        %1503 = vmatpush1.bf16.xpose.msra.mxu0 0
        %1504 = vmatprep.subr.bf16.mxu0 0
        %1505 = vmatpush1.bf16.xpose.msra.mxu0 0
        %1506 = vmatprep.subr.bf16.mxu0 0
        %1507 = vmatpush1.bf16.xpose.msra.mxu0 0
        %1508 = vmatprep.subr.bf16.mxu0 0
        %1509 = vmatpush1.bf16.xpose.msra.mxu0 0
        %1510 = vmatprep.subr.bf16.mxu0 0
        %1511 = vmatpush1.bf16.xpose.msra.mxu0 %v1494
        %1512 = vmatprep.subr.bf16.mxu0 0
        %1513 = vmatpush2.bf16.xpose.msra.mxu0 0
        %1514 = vmatprep.subr.bf16.mxu0 0
        %1515 = vmatpush2.bf16.xpose.msra.mxu0 0
        %1516 = vmatprep.subr.bf16.mxu0 0
        %1517 = vmatpush2.bf16.xpose.msra.mxu0 0
        %1518 = vmatprep.subr.bf16.mxu0 0
        %1519 = vmatpush2.bf16.xpose.msra.mxu0 0
        %1520 = vmatprep.subr.bf16.mxu0 0
        %1521 = vmatpush2.bf16.xpose.msra.mxu0 0
        %1522 = vmatprep.subr.bf16.mxu0 0
        %1523 = vmatpush2.bf16.xpose.msra.mxu0 0
        %1524 = vmatprep.subr.bf16.mxu0 0
        %1525 = vmatpush2.bf16.xpose.msra.mxu0 0
        %1526 = vmatprep.subr.bf16.mxu0 0
        %1527 = vmatpush2.bf16.xpose.msra.mxu0 0
        %1528 = vmatprep.mubr.bf16.mxu0 0
        %1529 = vmatmul.mubr.bf16.gmra.mxu0 %v1491
        %v1530 = vpop.f32.mrf.mxu0
        %v1531 = vadd.f32 %v1266, %v1530
        %v1532 = vpop.f32.mrf.mxu0
        %v1533 = vpop.f32.mrf.mxu0
        %v1534 = vpop.f32.mrf.mxu0
        %1535 = vdwg.mxu0
        %1537 = vrot.lane.b32.xlu0 %v1258, 64
        %v1538 = vpop.permute.xlu0 %1537
        %1540 = vrot.lane.b32.xlu0 %v1260, 64
        %v1541 = vpop.permute.xlu0 %1540
        %v1543 = vsel %vm1273, %v1538, 0
        %v1546 = vsel %vm1273, %v1541, 0
        %1548 = vmatprep.subr.bf16.mxu0 0
        %1549 = vmatpush1.bf16.xpose.msra.mxu0 0
        %1550 = vmatprep.subr.bf16.mxu0 0
        %1551 = vmatpush1.bf16.xpose.msra.mxu0 0
        %1552 = vmatprep.subr.bf16.mxu0 0
        %1553 = vmatpush1.bf16.xpose.msra.mxu0 0
        %1554 = vmatprep.subr.bf16.mxu0 0
        %1555 = vmatpush1.bf16.xpose.msra.mxu0 0
        %1556 = vmatprep.subr.bf16.mxu0 0
        %1557 = vmatpush1.bf16.xpose.msra.mxu0 0
        %1558 = vmatprep.subr.bf16.mxu0 0
        %1559 = vmatpush1.bf16.xpose.msra.mxu0 0
        %1560 = vmatprep.subr.bf16.mxu0 0
        %1561 = vmatpush1.bf16.xpose.msra.mxu0 0
        %1562 = vmatprep.subr.bf16.mxu0 0
        %1563 = vmatpush1.bf16.xpose.msra.mxu0 %v1546
        %1564 = vmatprep.subr.bf16.mxu0 0
        %1565 = vmatpush2.bf16.xpose.msra.mxu0 0
        %1566 = vmatprep.subr.bf16.mxu0 0
        %1567 = vmatpush2.bf16.xpose.msra.mxu0 0
        %1568 = vmatprep.subr.bf16.mxu0 0
        %1569 = vmatpush2.bf16.xpose.msra.mxu0 0
        %1570 = vmatprep.subr.bf16.mxu0 0
        %1571 = vmatpush2.bf16.xpose.msra.mxu0 0
        %1572 = vmatprep.subr.bf16.mxu0 0
        %1573 = vmatpush2.bf16.xpose.msra.mxu0 0
        %1574 = vmatprep.subr.bf16.mxu0 0
        %1575 = vmatpush2.bf16.xpose.msra.mxu0 0
        %1576 = vmatprep.subr.bf16.mxu0 0
        %1577 = vmatpush2.bf16.xpose.msra.mxu0 0
        %1578 = vmatprep.subr.bf16.mxu0 0
        %1579 = vmatpush2.bf16.xpose.msra.mxu0 0
        %1580 = vmatprep.mubr.bf16.mxu0 0
        %1581 = vmatmul.mubr.bf16.gmra.mxu0 %v1543
        %v1582 = vpop.f32.mrf.mxu0
        %v1583 = vadd.f32 %v1270, %v1582
        %v1584 = vpop.f32.mrf.mxu0
        %v1585 = vpop.f32.mrf.mxu0
        %v1586 = vpop.f32.mrf.mxu0
        %1587 = vdwg.mxu0
        %v1588 = vsel %vm1366, %v1531, -inf
        %1589 = vmax.xlane.f32.xlu0 %v1588
        %v1590 = vpop.xlane.xlu0 %1589
        %v1591 = vsel %vm1366, %v1583, -inf
        %1592 = vmax.xlane.f32.xlu0 %v1591
        %v1593 = vpop.xlane.xlu0 %1592
        %v1594 = vsub.f32 %v1531, %v1590
        %v1595 = vsub.f32 %v1583, %v1593
        %v1596 = vmul.f32 %v1594, 1.442695
        %v1597 = vpow.pop %v1596
        %v1598 = vmul.f32 %v1595, 1.442695
        %v1599 = vpow.pop %v1598
        %v1600 = vsel %vm1366, %v1597, 0.0
        %1601 = vadd.xlane.f32.xlu0 %v1600
        %v1602 = vpop.xlane.xlu0 %1601
        %v1603 = vsel %vm1366, %v1599, 0.0
        %1604 = vadd.xlane.f32.xlu0 %v1603
        %v1605 = vpop.xlane.xlu0 %1604
        %v1606 = vrcp.pop %v1602
        %v1607 = vmul.f32 %v1597, %v1606
        %v1608 = vrcp.pop %v1605
        %v1609 = vmul.f32 %v1599, %v1608
        %v1610 = vpack.c.bf16 %v1607, %v1607
        %v1611 = vpack.c.bf16 %v1609, %v1609
        %1613 = vrot.lane.b32.xlu0 %v1261, 64
        %v1614 = vpop.permute.xlu0 %1613
        %v1616 = vsel %vm1366, %v1610, 0
        %v1619 = vsel %vm1394, %v1614, 0
        %1621 = vmatprep.subr.bf16.mxu0 0
        %1622 = vmatpush1.bf16.msra.mxu0 0
        %1623 = vmatprep.subr.bf16.mxu0 0
        %1624 = vmatpush1.bf16.msra.mxu0 0
        %1625 = vmatprep.subr.bf16.mxu0 0
        %1626 = vmatpush1.bf16.msra.mxu0 0
        %1627 = vmatprep.subr.bf16.mxu0 0
        %1628 = vmatpush1.bf16.msra.mxu0 0
        %1629 = vmatprep.subr.bf16.mxu0 0
        %1630 = vmatpush1.bf16.msra.mxu0 0
        %1631 = vmatprep.subr.bf16.mxu0 0
        %1632 = vmatpush1.bf16.msra.mxu0 0
        %1633 = vmatprep.subr.bf16.mxu0 0
        %1634 = vmatpush1.bf16.msra.mxu0 0
        %1635 = vmatprep.subr.bf16.mxu0 0
        %1636 = vmatpush1.bf16.msra.mxu0 %v1619
        %1637 = vmatprep.subr.bf16.mxu0 0
        %1638 = vmatpush2.bf16.msra.mxu0 0
        %1639 = vmatprep.subr.bf16.mxu0 0
        %1640 = vmatpush2.bf16.msra.mxu0 0
        %1641 = vmatprep.subr.bf16.mxu0 0
        %1642 = vmatpush2.bf16.msra.mxu0 0
        %1643 = vmatprep.subr.bf16.mxu0 0
        %1644 = vmatpush2.bf16.msra.mxu0 0
        %1645 = vmatprep.subr.bf16.mxu0 0
        %1646 = vmatpush2.bf16.msra.mxu0 0
        %1647 = vmatprep.subr.bf16.mxu0 0
        %1648 = vmatpush2.bf16.msra.mxu0 0
        %1649 = vmatprep.subr.bf16.mxu0 0
        %1650 = vmatpush2.bf16.msra.mxu0 0
        %1651 = vmatprep.subr.bf16.mxu0 0
        %1652 = vmatpush2.bf16.msra.mxu0 0
        %1653 = vmatprep.mubr.bf16.mxu0 0
        %1654 = vmatmul.mubr.bf16.gmra.mxu0 %v1616
        %v1655 = vpop.f32.mrf.mxu0
        %v1656 = vadd.f32 0.0, %v1655
        %v1657 = vpop.f32.mrf.mxu0
        %v1658 = vpop.f32.mrf.mxu0
        %v1659 = vpop.f32.mrf.mxu0
        %1660 = vdwg.mxu0
        %1662 = vrot.lane.b32.xlu0 %v1262, 64
        %v1663 = vpop.permute.xlu0 %1662
        %v1665 = vsel %vm1366, %v1611, 0
        %v1668 = vsel %vm1394, %v1663, 0
        %1670 = vmatprep.subr.bf16.mxu0 0
        %1671 = vmatpush1.bf16.msra.mxu0 0
        %1672 = vmatprep.subr.bf16.mxu0 0
        %1673 = vmatpush1.bf16.msra.mxu0 0
        %1674 = vmatprep.subr.bf16.mxu0 0
        %1675 = vmatpush1.bf16.msra.mxu0 0
        %1676 = vmatprep.subr.bf16.mxu0 0
        %1677 = vmatpush1.bf16.msra.mxu0 0
        %1678 = vmatprep.subr.bf16.mxu0 0
        %1679 = vmatpush1.bf16.msra.mxu0 0
        %1680 = vmatprep.subr.bf16.mxu0 0
        %1681 = vmatpush1.bf16.msra.mxu0 0
        %1682 = vmatprep.subr.bf16.mxu0 0
        %1683 = vmatpush1.bf16.msra.mxu0 0
        %1684 = vmatprep.subr.bf16.mxu0 0
        %1685 = vmatpush1.bf16.msra.mxu0 %v1668
        %1686 = vmatprep.subr.bf16.mxu0 0
        %1687 = vmatpush2.bf16.msra.mxu0 0
        %1688 = vmatprep.subr.bf16.mxu0 0
        %1689 = vmatpush2.bf16.msra.mxu0 0
        %1690 = vmatprep.subr.bf16.mxu0 0
        %1691 = vmatpush2.bf16.msra.mxu0 0
        %1692 = vmatprep.subr.bf16.mxu0 0
        %1693 = vmatpush2.bf16.msra.mxu0 0
        %1694 = vmatprep.subr.bf16.mxu0 0
        %1695 = vmatpush2.bf16.msra.mxu0 0
        %1696 = vmatprep.subr.bf16.mxu0 0
        %1697 = vmatpush2.bf16.msra.mxu0 0
        %1698 = vmatprep.subr.bf16.mxu0 0
        %1699 = vmatpush2.bf16.msra.mxu0 0
        %1700 = vmatprep.subr.bf16.mxu0 0
        %1701 = vmatpush2.bf16.msra.mxu0 0
        %1702 = vmatprep.mubr.bf16.mxu0 0
        %1703 = vmatmul.mubr.bf16.gmra.mxu0 %v1665
        %v1704 = vpop.f32.mrf.mxu0
        %v1705 = vadd.f32 0.0, %v1704
        %v1706 = vpop.f32.mrf.mxu0
        %v1707 = vpop.f32.mrf.mxu0
        %v1708 = vpop.f32.mrf.mxu0
        %1709 = vdwg.mxu0
        %1712 = vrot.lane.b32.xlu0 %v1656, 64
        %v1713 = vpop.permute.xlu0 %1712
        %1714 = vrot.lane.b32.xlu0 %v1705, 64
        %v1715 = vpop.permute.xlu0 %1714
        %v1718 = vsel %vm1273, %v1433, %v1713
        %v1719 = vsel %vm1273, %v1479, %v1715
        %v1720 = vpack.c.bf16 %v1719, %v1718
        %v1721 = vld [vmem:[%s755] sm:$0xf]
        %v1722 = vld [vmem:[%s755 + $0x4] sm:$0xf]
        %v1723 = vld [vmem:[%s755 + $0x8] sm:$0xf]
        %v1724 = vld [vmem:[%s755 + $0xc] sm:$0xf]
        %v1725 = vld [vmem:[%s755 + $0x10] sm:$0xf]
        %v1726 = vld [vmem:[%s755 + $0x14] sm:$0xf]
        %v1727 = vld [vmem:[%s755 + $0x18] sm:$0xf]
        %v1728 = vld [vmem:[%s755 + $0x1c] sm:$0xf]
        %v1729 = vld [vmem:[%s755 + $0x20] sm:$0xf]
        %v1730 = vld [vmem:[%s755 + $0x24] sm:$0xf]
        %v1731 = vld [vmem:[%s755 + $0x28] sm:$0xf]
        %v1732 = vld [vmem:[%s755 + $0x2c] sm:$0xf]
        %v1733 = vld [vmem:[%s755 + $0x30] sm:$0xf]
        %v1734 = vld [vmem:[%s755 + $0x34] sm:$0xf]
        %v1735 = vld [vmem:[%s755 + $0x38] sm:$0xf]
        %v1736 = vld [vmem:[%s755 + $0x3c] sm:$0xf]
        %v1737 = vld [vmem:[%s903] sm:$0x1]
        %v1739 = vlaneseq
        %v1740 = vshrl.u32 %v1739, 7
        %v1741 = vsub.s32 0, %v1740
        %v1742 = vrot.slane %v1737, %v1741
        %v1760 = vunpack.c.l.b16 %v1721
        %v1761 = vunpack.c.l.b16 %v1722
        %v1762 = vunpack.c.l.b16 %v1723
        %v1763 = vunpack.c.l.b16 %v1724
        %v1764 = vunpack.c.l.b16 %v1725
        %v1765 = vunpack.c.l.b16 %v1726
        %v1766 = vunpack.c.l.b16 %v1727
        %v1767 = vunpack.c.l.b16 %v1728
        %v1768 = vunpack.c.l.b16 %v1729
        %v1769 = vunpack.c.l.b16 %v1730
        %v1770 = vunpack.c.l.b16 %v1731
        %v1771 = vunpack.c.l.b16 %v1732
        %v1772 = vunpack.c.l.b16 %v1733
        %v1773 = vunpack.c.l.b16 %v1734
        %v1774 = vunpack.c.l.b16 %v1735
        %v1775 = vunpack.c.l.b16 %v1736
        %v1776 = vpack.c.b16 %v1761, %v1760
        %v1777 = vpack.c.b16 %v1763, %v1762
        %v1778 = vpack.c.b16 %v1765, %v1764
        %v1779 = vpack.c.b16 %v1767, %v1766
        %v1780 = vpack.c.b16 %v1769, %v1768
        %v1781 = vpack.c.b16 %v1771, %v1770
        %v1782 = vpack.c.b16 %v1773, %v1772
        %v1783 = vpack.c.b16 %v1775, %v1774
        %1792 = vmatprep.subr.bf16.mxu0 0
        %1793 = vmatpush1.bf16.msra.mxu0 %v1783
        %1794 = vmatprep.subr.bf16.mxu0 0
        %1795 = vmatpush1.bf16.msra.mxu0 %v1782
        %1796 = vmatprep.subr.bf16.mxu0 0
        %1797 = vmatpush1.bf16.msra.mxu0 %v1781
        %1798 = vmatprep.subr.bf16.mxu0 0
        %1799 = vmatpush1.bf16.msra.mxu0 %v1780
        %1800 = vmatprep.subr.bf16.mxu0 0
        %1801 = vmatpush1.bf16.msra.mxu0 %v1779
        %1802 = vmatprep.subr.bf16.mxu0 0
        %1803 = vmatpush1.bf16.msra.mxu0 %v1778
        %1804 = vmatprep.subr.bf16.mxu0 0
        %1805 = vmatpush1.bf16.msra.mxu0 %v1777
        %1806 = vmatprep.subr.bf16.mxu0 0
        %1807 = vmatpush1.bf16.msra.mxu0 %v1776
        %1808 = vmatprep.subr.bf16.mxu0 0
        %1809 = vmatpush2.bf16.msra.mxu0 0
        %1810 = vmatprep.subr.bf16.mxu0 0
        %1811 = vmatpush2.bf16.msra.mxu0 0
        %1812 = vmatprep.subr.bf16.mxu0 0
        %1813 = vmatpush2.bf16.msra.mxu0 0
        %1814 = vmatprep.subr.bf16.mxu0 0
        %1815 = vmatpush2.bf16.msra.mxu0 0
        %1816 = vmatprep.subr.bf16.mxu0 0
        %1817 = vmatpush2.bf16.msra.mxu0 0
        %1818 = vmatprep.subr.bf16.mxu0 0
        %1819 = vmatpush2.bf16.msra.mxu0 0
        %1820 = vmatprep.subr.bf16.mxu0 0
        %1821 = vmatpush2.bf16.msra.mxu0 0
        %1822 = vmatprep.subr.bf16.mxu0 0
        %1823 = vmatpush2.bf16.msra.mxu0 0
        %1824 = vmatprep.mubr.bf16.mxu0 0
        %1825 = vmatmul.mubr.bf16.gmra.mxu0 %v1720
        %v1826 = vpop.f32.mrf.mxu0
        %v1827 = vadd.f32 %v1742, %v1826
        %v1828 = vpop.f32.mrf.mxu0
        %v1829 = vpop.f32.mrf.mxu0
        %v1830 = vadd.f32 %v1742, %v1829
        %v1831 = vpop.f32.mrf.mxu0
        %1832 = vdwg.mxu0
        %v1833 = vadd.f32 %v967, %v1827
        %v1834 = vadd.f32 %v968, %v1830
        %v1835 = vld [vmem:[%s906] sm:$0x1]
        %v1836 = vld [vmem:[%s909] sm:$0x1]
        %1837 = vadd.xlane.f32.xlu0 %v1833
        %v1838 = vpop.xlane.xlu0 %1837
        %1839 = vadd.xlane.f32.xlu0 %v1834
        %v1840 = vpop.xlane.xlu0 %1839
        %v1841 = vrcp.pop 128.0
        %v1842 = vmul.f32 %v1838, %v1841
        %v1843 = vmul.f32 %v1840, %v1841
        %v1844 = vsub.f32 %v1833, %v1842
        %v1845 = vsub.f32 %v1834, %v1843
        %v1846 = vmul.f32 %v1844, %v1844
        %v1847 = vmul.f32 %v1845, %v1845
        %1848 = vadd.xlane.f32.xlu0 %v1846
        %v1849 = vpop.xlane.xlu0 %1848
        %1850 = vadd.xlane.f32.xlu0 %v1847
        %v1851 = vpop.xlane.xlu0 %1850
        %v1852 = vmul.f32 %v1849, %v1841
        %v1853 = vmul.f32 %v1851, %v1841
        %v1854 = vadd.f32 %v1852, 1e-05
        %v1855 = vadd.f32 %v1853, 1e-05
        %v1856 = vrsqrt.pop %v1854
        %v1857 = vrsqrt.pop %v1855
        %v1858 = vmul.f32 %v1844, %v1856
        %v1859 = vmul.f32 %v1845, %v1857
        %v1861 = vlaneseq
        %v1862 = vshrl.u32 %v1861, 7
        %v1863 = vsub.s32 0, %v1862
        %v1864 = vrot.slane %v1835, %v1863
        %v1866 = vmul.f32 %v1858, %v1864
        %v1867 = vmul.f32 %v1859, %v1864
        %v1869 = vlaneseq
        %v1870 = vshrl.u32 %v1869, 7
        %v1871 = vsub.s32 0, %v1870
        %v1872 = vrot.slane %v1836, %v1871
        %v1874 = vadd.f32 %v1866, %v1872
        %v1875 = vadd.f32 %v1867, %v1872
        %v1876 = vpack.c.bf16 %v1875, %v1874
        %v1877 = vld [vmem:[%s764] sm:$0xff]
        %v1878 = vld [vmem:[%s764 + $0x8] sm:$0xff]
        %v1879 = vld [vmem:[%s764 + $0x10] sm:$0xff]
        %v1880 = vld [vmem:[%s764 + $0x18] sm:$0xff]
        %v1881 = vld [vmem:[%s764 + $0x20] sm:$0xff]
        %v1882 = vld [vmem:[%s764 + $0x28] sm:$0xff]
        %v1883 = vld [vmem:[%s764 + $0x30] sm:$0xff]
        %v1884 = vld [vmem:[%s764 + $0x38] sm:$0xff]
        %v1885 = vld [vmem:[%s764 + $0x40] sm:$0xff]
        %v1886 = vld [vmem:[%s764 + $0x48] sm:$0xff]
        %v1887 = vld [vmem:[%s764 + $0x50] sm:$0xff]
        %v1888 = vld [vmem:[%s764 + $0x58] sm:$0xff]
        %v1889 = vld [vmem:[%s764 + $0x60] sm:$0xff]
        %v1890 = vld [vmem:[%s764 + $0x68] sm:$0xff]
        %v1891 = vld [vmem:[%s764 + $0x70] sm:$0xff]
        %v1892 = vld [vmem:[%s764 + $0x78] sm:$0xff]
        %v1893 = vld [vmem:[%s764 + $0x80] sm:$0xff]
        %v1894 = vld [vmem:[%s764 + $0x88] sm:$0xff]
        %v1895 = vld [vmem:[%s764 + $0x90] sm:$0xff]
        %v1896 = vld [vmem:[%s764 + $0x98] sm:$0xff]
        %v1897 = vld [vmem:[%s764 + $0xa0] sm:$0xff]
        %v1898 = vld [vmem:[%s764 + $0xa8] sm:$0xff]
        %v1899 = vld [vmem:[%s764 + $0xb0] sm:$0xff]
        %v1900 = vld [vmem:[%s764 + $0xb8] sm:$0xff]
        %v1901 = vld [vmem:[%s764 + $0xc0] sm:$0xff]
        %v1902 = vld [vmem:[%s764 + $0xc8] sm:$0xff]
        %v1903 = vld [vmem:[%s764 + $0xd0] sm:$0xff]
        %v1904 = vld [vmem:[%s764 + $0xd8] sm:$0xff]
        %v1905 = vld [vmem:[%s764 + $0xe0] sm:$0xff]
        %v1906 = vld [vmem:[%s764 + $0xe8] sm:$0xff]
        %v1907 = vld [vmem:[%s764 + $0xf0] sm:$0xff]
        %v1908 = vld [vmem:[%s764 + $0xf8] sm:$0xff]
        %v1909 = vld [vmem:[%s913] sm:$0xf]
        %v1911 = vlaneseq
        %v1912 = vshrl.u32 %v1911, 7
        %v1913 = vsub.s32 0, %v1912
        %v1914 = vrot.slane %v1909, %v1913
        %v1915 = vlaneseq
        %v1916 = vshrl.u32 %v1915, 7
        %v1917 = vsub.s32 1, %v1916
        %v1918 = vrot.slane %v1909, %v1917
        %v1919 = vlaneseq
        %v1920 = vshrl.u32 %v1919, 7
        %v1921 = vsub.s32 2, %v1920
        %v1922 = vrot.slane %v1909, %v1921
        %v1923 = vlaneseq
        %v1924 = vshrl.u32 %v1923, 7
        %v1925 = vsub.s32 3, %v1924
        %v1926 = vrot.slane %v1909, %v1925
        %v1963 = vunpack.c.l.b16 %v1877
        %v1964 = vunpack.c.h.b16 %v1877
        %v1965 = vunpack.c.l.b16 %v1878
        %v1966 = vunpack.c.h.b16 %v1878
        %v1967 = vunpack.c.l.b16 %v1879
        %v1968 = vunpack.c.h.b16 %v1879
        %v1969 = vunpack.c.l.b16 %v1880
        %v1970 = vunpack.c.h.b16 %v1880
        %v1971 = vunpack.c.l.b16 %v1881
        %v1972 = vunpack.c.h.b16 %v1881
        %v1973 = vunpack.c.l.b16 %v1882
        %v1974 = vunpack.c.h.b16 %v1882
        %v1975 = vunpack.c.l.b16 %v1883
        %v1976 = vunpack.c.h.b16 %v1883
        %v1977 = vunpack.c.l.b16 %v1884
        %v1978 = vunpack.c.h.b16 %v1884
        %v1979 = vunpack.c.l.b16 %v1885
        %v1980 = vunpack.c.h.b16 %v1885
        %v1981 = vunpack.c.l.b16 %v1886
        %v1982 = vunpack.c.h.b16 %v1886
        %v1983 = vunpack.c.l.b16 %v1887
        %v1984 = vunpack.c.h.b16 %v1887
        %v1985 = vunpack.c.l.b16 %v1888
        %v1986 = vunpack.c.h.b16 %v1888
        %v1987 = vunpack.c.l.b16 %v1889
        %v1988 = vunpack.c.h.b16 %v1889
        %v1989 = vunpack.c.l.b16 %v1890
        %v1990 = vunpack.c.h.b16 %v1890
        %v1991 = vunpack.c.l.b16 %v1891
        %v1992 = vunpack.c.h.b16 %v1891
        %v1993 = vunpack.c.l.b16 %v1892
        %v1994 = vunpack.c.h.b16 %v1892
        %v1995 = vunpack.c.l.b16 %v1893
        %v1996 = vunpack.c.h.b16 %v1893
        %v1997 = vunpack.c.l.b16 %v1894
        %v1998 = vunpack.c.h.b16 %v1894
        %v1999 = vunpack.c.l.b16 %v1895
        %v2000 = vunpack.c.h.b16 %v1895
        %v2001 = vunpack.c.l.b16 %v1896
        %v2002 = vunpack.c.h.b16 %v1896
        %v2003 = vunpack.c.l.b16 %v1897
        %v2004 = vunpack.c.h.b16 %v1897
        %v2005 = vunpack.c.l.b16 %v1898
        %v2006 = vunpack.c.h.b16 %v1898
        %v2007 = vunpack.c.l.b16 %v1899
        %v2008 = vunpack.c.h.b16 %v1899
        %v2009 = vunpack.c.l.b16 %v1900
        %v2010 = vunpack.c.h.b16 %v1900
        %v2011 = vunpack.c.l.b16 %v1901
        %v2012 = vunpack.c.h.b16 %v1901
        %v2013 = vunpack.c.l.b16 %v1902
        %v2014 = vunpack.c.h.b16 %v1902
        %v2015 = vunpack.c.l.b16 %v1903
        %v2016 = vunpack.c.h.b16 %v1903
        %v2017 = vunpack.c.l.b16 %v1904
        %v2018 = vunpack.c.h.b16 %v1904
        %v2019 = vunpack.c.l.b16 %v1905
        %v2020 = vunpack.c.h.b16 %v1905
        %v2021 = vunpack.c.l.b16 %v1906
        %v2022 = vunpack.c.h.b16 %v1906
        %v2023 = vunpack.c.l.b16 %v1907
        %v2024 = vunpack.c.h.b16 %v1907
        %v2025 = vunpack.c.l.b16 %v1908
        %v2026 = vunpack.c.h.b16 %v1908
        %v2027 = vpack.c.b16 %v1967, %v1963
        %v2028 = vpack.c.b16 %v1968, %v1964
        %v2029 = vpack.c.b16 %v1969, %v1965
        %v2030 = vpack.c.b16 %v1970, %v1966
        %v2031 = vpack.c.b16 %v1975, %v1971
        %v2032 = vpack.c.b16 %v1976, %v1972
        %v2033 = vpack.c.b16 %v1977, %v1973
        %v2034 = vpack.c.b16 %v1978, %v1974
        %v2035 = vpack.c.b16 %v1983, %v1979
        %v2036 = vpack.c.b16 %v1984, %v1980
        %v2037 = vpack.c.b16 %v1985, %v1981
        %v2038 = vpack.c.b16 %v1986, %v1982
        %v2039 = vpack.c.b16 %v1991, %v1987
        %v2040 = vpack.c.b16 %v1992, %v1988
        %v2041 = vpack.c.b16 %v1993, %v1989
        %v2042 = vpack.c.b16 %v1994, %v1990
        %v2043 = vpack.c.b16 %v1999, %v1995
        %v2044 = vpack.c.b16 %v2000, %v1996
        %v2045 = vpack.c.b16 %v2001, %v1997
        %v2046 = vpack.c.b16 %v2002, %v1998
        %v2047 = vpack.c.b16 %v2007, %v2003
        %v2048 = vpack.c.b16 %v2008, %v2004
        %v2049 = vpack.c.b16 %v2009, %v2005
        %v2050 = vpack.c.b16 %v2010, %v2006
        %v2051 = vpack.c.b16 %v2015, %v2011
        %v2052 = vpack.c.b16 %v2016, %v2012
        %v2053 = vpack.c.b16 %v2017, %v2013
        %v2054 = vpack.c.b16 %v2018, %v2014
        %v2055 = vpack.c.b16 %v2023, %v2019
        %v2056 = vpack.c.b16 %v2024, %v2020
        %v2057 = vpack.c.b16 %v2025, %v2021
        %v2058 = vpack.c.b16 %v2026, %v2022
        %2091 = vmatprep.subr.bf16.mxu0 %v2056
        %2092 = vmatpush1.bf16.msra.mxu0 %v2055
        %2093 = vmatprep.subr.bf16.mxu0 %v2052
        %2094 = vmatpush1.bf16.msra.mxu0 %v2051
        %2095 = vmatprep.subr.bf16.mxu0 %v2048
        %2096 = vmatpush1.bf16.msra.mxu0 %v2047
        %2097 = vmatprep.subr.bf16.mxu0 %v2044
        %2098 = vmatpush1.bf16.msra.mxu0 %v2043
        %2099 = vmatprep.subr.bf16.mxu0 %v2040
        %2100 = vmatpush1.bf16.msra.mxu0 %v2039
        %2101 = vmatprep.subr.bf16.mxu0 %v2036
        %2102 = vmatpush1.bf16.msra.mxu0 %v2035
        %2103 = vmatprep.subr.bf16.mxu0 %v2032
        %2104 = vmatpush1.bf16.msra.mxu0 %v2031
        %2105 = vmatprep.subr.bf16.mxu0 %v2028
        %2106 = vmatpush1.bf16.msra.mxu0 %v2027
        %2107 = vmatprep.subr.bf16.mxu0 0
        %2108 = vmatpush2.bf16.msra.mxu0 0
        %2109 = vmatprep.subr.bf16.mxu0 0
        %2110 = vmatpush2.bf16.msra.mxu0 0
        %2111 = vmatprep.subr.bf16.mxu0 0
        %2112 = vmatpush2.bf16.msra.mxu0 0
        %2113 = vmatprep.subr.bf16.mxu0 0
        %2114 = vmatpush2.bf16.msra.mxu0 0
        %2115 = vmatprep.subr.bf16.mxu0 0
        %2116 = vmatpush2.bf16.msra.mxu0 0
        %2117 = vmatprep.subr.bf16.mxu0 0
        %2118 = vmatpush2.bf16.msra.mxu0 0
        %2119 = vmatprep.subr.bf16.mxu0 0
        %2120 = vmatpush2.bf16.msra.mxu0 0
        %2121 = vmatprep.subr.bf16.mxu0 0
        %2122 = vmatpush2.bf16.msra.mxu0 0
        %2123 = vmatprep.mubr.bf16.mxu0 0
        %2124 = vmatmul.mubr.bf16.gmra.mxu0 %v1876
        %v2125 = vpop.f32.mrf.mxu0
        %v2126 = vadd.f32 %v1914, %v2125
        %v2127 = vpop.f32.mrf.mxu0
        %v2128 = vadd.f32 %v1918, %v2127
        %v2129 = vpop.f32.mrf.mxu0
        %v2130 = vadd.f32 %v1914, %v2129
        %v2131 = vpop.f32.mrf.mxu0
        %v2132 = vadd.f32 %v1918, %v2131
        %2133 = vdwg.mxu0
        %2134 = vmatprep.subr.bf16.mxu0 %v2058
        %2135 = vmatpush1.bf16.msra.mxu0 %v2057
        %2136 = vmatprep.subr.bf16.mxu0 %v2054
        %2137 = vmatpush1.bf16.msra.mxu0 %v2053
        %2138 = vmatprep.subr.bf16.mxu0 %v2050
        %2139 = vmatpush1.bf16.msra.mxu0 %v2049
        %2140 = vmatprep.subr.bf16.mxu0 %v2046
        %2141 = vmatpush1.bf16.msra.mxu0 %v2045
        %2142 = vmatprep.subr.bf16.mxu0 %v2042
        %2143 = vmatpush1.bf16.msra.mxu0 %v2041
        %2144 = vmatprep.subr.bf16.mxu0 %v2038
        %2145 = vmatpush1.bf16.msra.mxu0 %v2037
        %2146 = vmatprep.subr.bf16.mxu0 %v2034
        %2147 = vmatpush1.bf16.msra.mxu0 %v2033
        %2148 = vmatprep.subr.bf16.mxu0 %v2030
        %2149 = vmatpush1.bf16.msra.mxu0 %v2029
        %2150 = vmatprep.subr.bf16.mxu0 0
        %2151 = vmatpush2.bf16.msra.mxu0 0
        %2152 = vmatprep.subr.bf16.mxu0 0
        %2153 = vmatpush2.bf16.msra.mxu0 0
        %2154 = vmatprep.subr.bf16.mxu0 0
        %2155 = vmatpush2.bf16.msra.mxu0 0
        %2156 = vmatprep.subr.bf16.mxu0 0
        %2157 = vmatpush2.bf16.msra.mxu0 0
        %2158 = vmatprep.subr.bf16.mxu0 0
        %2159 = vmatpush2.bf16.msra.mxu0 0
        %2160 = vmatprep.subr.bf16.mxu0 0
        %2161 = vmatpush2.bf16.msra.mxu0 0
        %2162 = vmatprep.subr.bf16.mxu0 0
        %2163 = vmatpush2.bf16.msra.mxu0 0
        %2164 = vmatprep.subr.bf16.mxu0 0
        %2165 = vmatpush2.bf16.msra.mxu0 0
        %2166 = vmatprep.mubr.bf16.mxu0 0
        %2167 = vmatmul.mubr.bf16.gmra.mxu0 %v1876
        %v2168 = vpop.f32.mrf.mxu0
        %v2169 = vadd.f32 %v1922, %v2168
        %v2170 = vpop.f32.mrf.mxu0
        %v2171 = vadd.f32 %v1926, %v2170
        %v2172 = vpop.f32.mrf.mxu0
        %v2173 = vadd.f32 %v1922, %v2172
        %v2174 = vpop.f32.mrf.mxu0
        %v2175 = vadd.f32 %v1926, %v2174
        %2176 = vdwg.mxu0
        %v2177 = vmul.f32 %v2126, 0.5
        %v2178 = vmul.f32 %v2128, 0.5
        %v2179 = vmul.f32 %v2169, 0.5
        %v2180 = vmul.f32 %v2171, 0.5
        %v2181 = vmul.f32 %v2130, 0.5
        %v2182 = vmul.f32 %v2132, 0.5
        %v2183 = vmul.f32 %v2173, 0.5
        %v2184 = vmul.f32 %v2175, 0.5
        %v2185 = vmul.f32 %v2126, 0.044715
        %v2186 = vmul.f32 %v2128, 0.044715
        %v2187 = vmul.f32 %v2169, 0.044715
        %v2188 = vmul.f32 %v2171, 0.044715
        %v2189 = vmul.f32 %v2130, 0.044715
        %v2190 = vmul.f32 %v2132, 0.044715
        %v2191 = vmul.f32 %v2173, 0.044715
        %v2192 = vmul.f32 %v2175, 0.044715
        %v2193 = vmul.f32 %v2185, %v2126
        %v2194 = vmul.f32 %v2186, %v2128
        %v2195 = vmul.f32 %v2187, %v2169
        %v2196 = vmul.f32 %v2188, %v2171
        %v2197 = vmul.f32 %v2189, %v2130
        %v2198 = vmul.f32 %v2190, %v2132
        %v2199 = vmul.f32 %v2191, %v2173
        %v2200 = vmul.f32 %v2192, %v2175
        %v2201 = vmul.f32 %v2193, %v2126
        %v2202 = vmul.f32 %v2194, %v2128
        %v2203 = vmul.f32 %v2195, %v2169
        %v2204 = vmul.f32 %v2196, %v2171
        %v2205 = vmul.f32 %v2197, %v2130
        %v2206 = vmul.f32 %v2198, %v2132
        %v2207 = vmul.f32 %v2199, %v2173
        %v2208 = vmul.f32 %v2200, %v2175
        %v2209 = vadd.f32 %v2126, %v2201
        %v2210 = vadd.f32 %v2128, %v2202
        %v2211 = vadd.f32 %v2169, %v2203
        %v2212 = vadd.f32 %v2171, %v2204
        %v2213 = vadd.f32 %v2130, %v2205
        %v2214 = vadd.f32 %v2132, %v2206
        %v2215 = vadd.f32 %v2173, %v2207
        %v2216 = vadd.f32 %v2175, %v2208
        %v2217 = vmul.f32 %v2209, 0.7978846
        %v2218 = vmul.f32 %v2210, 0.7978846
        %v2219 = vmul.f32 %v2211, 0.7978846
        %v2220 = vmul.f32 %v2212, 0.7978846
        %v2221 = vmul.f32 %v2213, 0.7978846
        %v2222 = vmul.f32 %v2214, 0.7978846
        %v2223 = vmul.f32 %v2215, 0.7978846
        %v2224 = vmul.f32 %v2216, 0.7978846
        %v2225 = vtanh.pop %v2217
        %v2226 = vtanh.pop %v2218
        %v2227 = vtanh.pop %v2219
        %v2228 = vtanh.pop %v2220
        %v2229 = vtanh.pop %v2221
        %v2230 = vtanh.pop %v2222
        %v2231 = vtanh.pop %v2223
        %v2232 = vtanh.pop %v2224
        %v2233 = vadd.f32 %v2225, 1.0
        %v2234 = vadd.f32 %v2226, 1.0
        %v2235 = vadd.f32 %v2227, 1.0
        %v2236 = vadd.f32 %v2228, 1.0
        %v2237 = vadd.f32 %v2229, 1.0
        %v2238 = vadd.f32 %v2230, 1.0
        %v2239 = vadd.f32 %v2231, 1.0
        %v2240 = vadd.f32 %v2232, 1.0
        %v2241 = vmul.f32 %v2177, %v2233
        %v2242 = vmul.f32 %v2178, %v2234
        %v2243 = vmul.f32 %v2179, %v2235
        %v2244 = vmul.f32 %v2180, %v2236
        %v2245 = vmul.f32 %v2181, %v2237
        %v2246 = vmul.f32 %v2182, %v2238
        %v2247 = vmul.f32 %v2183, %v2239
        %v2248 = vmul.f32 %v2184, %v2240
        %v2249 = vpack.c.bf16 %v2245, %v2241
        %v2250 = vpack.c.bf16 %v2246, %v2242
        %v2251 = vpack.c.bf16 %v2247, %v2243
        %v2252 = vpack.c.bf16 %v2248, %v2244
        %v2253 = vld [vmem:[%s773] sm:$0xf]
        %v2254 = vld [vmem:[%s773 + $0x4] sm:$0xf]
        %v2255 = vld [vmem:[%s773 + $0x8] sm:$0xf]
        %v2256 = vld [vmem:[%s773 + $0xc] sm:$0xf]
        %v2257 = vld [vmem:[%s773 + $0x10] sm:$0xf]
        %v2258 = vld [vmem:[%s773 + $0x14] sm:$0xf]
        %v2259 = vld [vmem:[%s773 + $0x18] sm:$0xf]
        %v2260 = vld [vmem:[%s773 + $0x1c] sm:$0xf]
        %v2261 = vld [vmem:[%s773 + $0x20] sm:$0xf]
        %v2262 = vld [vmem:[%s773 + $0x24] sm:$0xf]
        %v2263 = vld [vmem:[%s773 + $0x28] sm:$0xf]
        %v2264 = vld [vmem:[%s773 + $0x2c] sm:$0xf]
        %v2265 = vld [vmem:[%s773 + $0x30] sm:$0xf]
        %v2266 = vld [vmem:[%s773 + $0x34] sm:$0xf]
        %v2267 = vld [vmem:[%s773 + $0x38] sm:$0xf]
        %v2268 = vld [vmem:[%s773 + $0x3c] sm:$0xf]
        %v2269 = vld [vmem:[%s773 + $0x40] sm:$0xf]
        %v2270 = vld [vmem:[%s773 + $0x44] sm:$0xf]
        %v2271 = vld [vmem:[%s773 + $0x48] sm:$0xf]
        %v2272 = vld [vmem:[%s773 + $0x4c] sm:$0xf]
        %v2273 = vld [vmem:[%s773 + $0x50] sm:$0xf]
        %v2274 = vld [vmem:[%s773 + $0x54] sm:$0xf]
        %v2275 = vld [vmem:[%s773 + $0x58] sm:$0xf]
        %v2276 = vld [vmem:[%s773 + $0x5c] sm:$0xf]
        %v2277 = vld [vmem:[%s773 + $0x60] sm:$0xf]
        %v2278 = vld [vmem:[%s773 + $0x64] sm:$0xf]
        %v2279 = vld [vmem:[%s773 + $0x68] sm:$0xf]
        %v2280 = vld [vmem:[%s773 + $0x6c] sm:$0xf]
        %v2281 = vld [vmem:[%s773 + $0x70] sm:$0xf]
        %v2282 = vld [vmem:[%s773 + $0x74] sm:$0xf]
        %v2283 = vld [vmem:[%s773 + $0x78] sm:$0xf]
        %v2284 = vld [vmem:[%s773 + $0x7c] sm:$0xf]
        %v2285 = vld [vmem:[%s773 + $0x80] sm:$0xf]
        %v2286 = vld [vmem:[%s773 + $0x84] sm:$0xf]
        %v2287 = vld [vmem:[%s773 + $0x88] sm:$0xf]
        %v2288 = vld [vmem:[%s773 + $0x8c] sm:$0xf]
        %v2289 = vld [vmem:[%s773 + $0x90] sm:$0xf]
        %v2290 = vld [vmem:[%s773 + $0x94] sm:$0xf]
        %v2291 = vld [vmem:[%s773 + $0x98] sm:$0xf]
        %v2292 = vld [vmem:[%s773 + $0x9c] sm:$0xf]
        %v2293 = vld [vmem:[%s773 + $0xa0] sm:$0xf]
        %v2294 = vld [vmem:[%s773 + $0xa4] sm:$0xf]
        %v2295 = vld [vmem:[%s773 + $0xa8] sm:$0xf]
        %v2296 = vld [vmem:[%s773 + $0xac] sm:$0xf]
        %v2297 = vld [vmem:[%s773 + $0xb0] sm:$0xf]
        %v2298 = vld [vmem:[%s773 + $0xb4] sm:$0xf]
        %v2299 = vld [vmem:[%s773 + $0xb8] sm:$0xf]
        %v2300 = vld [vmem:[%s773 + $0xbc] sm:$0xf]
        %v2301 = vld [vmem:[%s773 + $0xc0] sm:$0xf]
        %v2302 = vld [vmem:[%s773 + $0xc4] sm:$0xf]
        %v2303 = vld [vmem:[%s773 + $0xc8] sm:$0xf]
        %v2304 = vld [vmem:[%s773 + $0xcc] sm:$0xf]
        %v2305 = vld [vmem:[%s773 + $0xd0] sm:$0xf]
        %v2306 = vld [vmem:[%s773 + $0xd4] sm:$0xf]
        %v2307 = vld [vmem:[%s773 + $0xd8] sm:$0xf]
        %v2308 = vld [vmem:[%s773 + $0xdc] sm:$0xf]
        %v2309 = vld [vmem:[%s773 + $0xe0] sm:$0xf]
        %v2310 = vld [vmem:[%s773 + $0xe4] sm:$0xf]
        %v2311 = vld [vmem:[%s773 + $0xe8] sm:$0xf]
        %v2312 = vld [vmem:[%s773 + $0xec] sm:$0xf]
        %v2313 = vld [vmem:[%s773 + $0xf0] sm:$0xf]
        %v2314 = vld [vmem:[%s773 + $0xf4] sm:$0xf]
        %v2315 = vld [vmem:[%s773 + $0xf8] sm:$0xf]
        %v2316 = vld [vmem:[%s773 + $0xfc] sm:$0xf]
        %v2317 = vld [vmem:[%s916] sm:$0x1]
        %v2319 = vlaneseq
        %v2320 = vshrl.u32 %v2319, 7
        %v2321 = vsub.s32 0, %v2320
        %v2322 = vrot.slane %v2317, %v2321
        %v2388 = vunpack.c.l.b16 %v2253
        %v2389 = vunpack.c.l.b16 %v2254
        %v2390 = vunpack.c.l.b16 %v2255
        %v2391 = vunpack.c.l.b16 %v2256
        %v2392 = vunpack.c.l.b16 %v2257
        %v2393 = vunpack.c.l.b16 %v2258
        %v2394 = vunpack.c.l.b16 %v2259
        %v2395 = vunpack.c.l.b16 %v2260
        %v2396 = vunpack.c.l.b16 %v2261
        %v2397 = vunpack.c.l.b16 %v2262
        %v2398 = vunpack.c.l.b16 %v2263
        %v2399 = vunpack.c.l.b16 %v2264
        %v2400 = vunpack.c.l.b16 %v2265
        %v2401 = vunpack.c.l.b16 %v2266
        %v2402 = vunpack.c.l.b16 %v2267
        %v2403 = vunpack.c.l.b16 %v2268
        %v2404 = vunpack.c.l.b16 %v2269
        %v2405 = vunpack.c.l.b16 %v2270
        %v2406 = vunpack.c.l.b16 %v2271
        %v2407 = vunpack.c.l.b16 %v2272
        %v2408 = vunpack.c.l.b16 %v2273
        %v2409 = vunpack.c.l.b16 %v2274
        %v2410 = vunpack.c.l.b16 %v2275
        %v2411 = vunpack.c.l.b16 %v2276
        %v2412 = vunpack.c.l.b16 %v2277
        %v2413 = vunpack.c.l.b16 %v2278
        %v2414 = vunpack.c.l.b16 %v2279
        %v2415 = vunpack.c.l.b16 %v2280
        %v2416 = vunpack.c.l.b16 %v2281
        %v2417 = vunpack.c.l.b16 %v2282
        %v2418 = vunpack.c.l.b16 %v2283
        %v2419 = vunpack.c.l.b16 %v2284
        %v2420 = vunpack.c.l.b16 %v2285
        %v2421 = vunpack.c.l.b16 %v2286
        %v2422 = vunpack.c.l.b16 %v2287
        %v2423 = vunpack.c.l.b16 %v2288
        %v2424 = vunpack.c.l.b16 %v2289
        %v2425 = vunpack.c.l.b16 %v2290
        %v2426 = vunpack.c.l.b16 %v2291
        %v2427 = vunpack.c.l.b16 %v2292
        %v2428 = vunpack.c.l.b16 %v2293
        %v2429 = vunpack.c.l.b16 %v2294
        %v2430 = vunpack.c.l.b16 %v2295
        %v2431 = vunpack.c.l.b16 %v2296
        %v2432 = vunpack.c.l.b16 %v2297
        %v2433 = vunpack.c.l.b16 %v2298
        %v2434 = vunpack.c.l.b16 %v2299
        %v2435 = vunpack.c.l.b16 %v2300
        %v2436 = vunpack.c.l.b16 %v2301
        %v2437 = vunpack.c.l.b16 %v2302
        %v2438 = vunpack.c.l.b16 %v2303
        %v2439 = vunpack.c.l.b16 %v2304
        %v2440 = vunpack.c.l.b16 %v2305
        %v2441 = vunpack.c.l.b16 %v2306
        %v2442 = vunpack.c.l.b16 %v2307
        %v2443 = vunpack.c.l.b16 %v2308
        %v2444 = vunpack.c.l.b16 %v2309
        %v2445 = vunpack.c.l.b16 %v2310
        %v2446 = vunpack.c.l.b16 %v2311
        %v2447 = vunpack.c.l.b16 %v2312
        %v2448 = vunpack.c.l.b16 %v2313
        %v2449 = vunpack.c.l.b16 %v2314
        %v2450 = vunpack.c.l.b16 %v2315
        %v2451 = vunpack.c.l.b16 %v2316
        %v2452 = vpack.c.b16 %v2389, %v2388
        %v2453 = vpack.c.b16 %v2391, %v2390
        %v2454 = vpack.c.b16 %v2393, %v2392
        %v2455 = vpack.c.b16 %v2395, %v2394
        %v2456 = vpack.c.b16 %v2397, %v2396
        %v2457 = vpack.c.b16 %v2399, %v2398
        %v2458 = vpack.c.b16 %v2401, %v2400
        %v2459 = vpack.c.b16 %v2403, %v2402
        %v2460 = vpack.c.b16 %v2405, %v2404
        %v2461 = vpack.c.b16 %v2407, %v2406
        %v2462 = vpack.c.b16 %v2409, %v2408
        %v2463 = vpack.c.b16 %v2411, %v2410
        %v2464 = vpack.c.b16 %v2413, %v2412
        %v2465 = vpack.c.b16 %v2415, %v2414
        %v2466 = vpack.c.b16 %v2417, %v2416
        %v2467 = vpack.c.b16 %v2419, %v2418
        %v2468 = vpack.c.b16 %v2421, %v2420
        %v2469 = vpack.c.b16 %v2423, %v2422
        %v2470 = vpack.c.b16 %v2425, %v2424
        %v2471 = vpack.c.b16 %v2427, %v2426
        %v2472 = vpack.c.b16 %v2429, %v2428
        %v2473 = vpack.c.b16 %v2431, %v2430
        %v2474 = vpack.c.b16 %v2433, %v2432
        %v2475 = vpack.c.b16 %v2435, %v2434
        %v2476 = vpack.c.b16 %v2437, %v2436
        %v2477 = vpack.c.b16 %v2439, %v2438
        %v2478 = vpack.c.b16 %v2441, %v2440
        %v2479 = vpack.c.b16 %v2443, %v2442
        %v2480 = vpack.c.b16 %v2445, %v2444
        %v2481 = vpack.c.b16 %v2447, %v2446
        %v2482 = vpack.c.b16 %v2449, %v2448
        %v2483 = vpack.c.b16 %v2451, %v2450
        %2516 = vmatprep.subr.bf16.mxu0 0
        %2517 = vmatpush1.bf16.msra.mxu0 %v2459
        %2518 = vmatprep.subr.bf16.mxu0 0
        %2519 = vmatpush1.bf16.msra.mxu0 %v2458
        %2520 = vmatprep.subr.bf16.mxu0 0
        %2521 = vmatpush1.bf16.msra.mxu0 %v2457
        %2522 = vmatprep.subr.bf16.mxu0 0
        %2523 = vmatpush1.bf16.msra.mxu0 %v2456
        %2524 = vmatprep.subr.bf16.mxu0 0
        %2525 = vmatpush1.bf16.msra.mxu0 %v2455
        %2526 = vmatprep.subr.bf16.mxu0 0
        %2527 = vmatpush1.bf16.msra.mxu0 %v2454
        %2528 = vmatprep.subr.bf16.mxu0 0
        %2529 = vmatpush1.bf16.msra.mxu0 %v2453
        %2530 = vmatprep.subr.bf16.mxu0 0
        %2531 = vmatpush1.bf16.msra.mxu0 %v2452
        %2532 = vmatprep.subr.bf16.mxu0 0
        %2533 = vmatpush2.bf16.msra.mxu0 %v2467
        %2534 = vmatprep.subr.bf16.mxu0 0
        %2535 = vmatpush2.bf16.msra.mxu0 %v2466
        %2536 = vmatprep.subr.bf16.mxu0 0
        %2537 = vmatpush2.bf16.msra.mxu0 %v2465
        %2538 = vmatprep.subr.bf16.mxu0 0
        %2539 = vmatpush2.bf16.msra.mxu0 %v2464
        %2540 = vmatprep.subr.bf16.mxu0 0
        %2541 = vmatpush2.bf16.msra.mxu0 %v2463
        %2542 = vmatprep.subr.bf16.mxu0 0
        %2543 = vmatpush2.bf16.msra.mxu0 %v2462
        %2544 = vmatprep.subr.bf16.mxu0 0
        %2545 = vmatpush2.bf16.msra.mxu0 %v2461
        %2546 = vmatprep.subr.bf16.mxu0 0
        %2547 = vmatpush2.bf16.msra.mxu0 %v2460
        %2548 = vmatprep.mubr.bf16.mxu0 %v2250
        %2549 = vmatmul.mubr.bf16.gmra.mxu0 %v2249
        %v2550 = vpop.f32.mrf.mxu0
        %v2551 = vadd.f32 %v2322, %v2550
        %v2552 = vpop.f32.mrf.mxu0
        %v2553 = vpop.f32.mrf.mxu0
        %v2554 = vadd.f32 %v2322, %v2553
        %v2555 = vpop.f32.mrf.mxu0
        %2556 = vdwg.mxu0
        %2557 = vmatprep.subr.bf16.mxu0 0
        %2558 = vmatpush1.bf16.msra.mxu0 %v2475
        %2559 = vmatprep.subr.bf16.mxu0 0
        %2560 = vmatpush1.bf16.msra.mxu0 %v2474
        %2561 = vmatprep.subr.bf16.mxu0 0
        %2562 = vmatpush1.bf16.msra.mxu0 %v2473
        %2563 = vmatprep.subr.bf16.mxu0 0
        %2564 = vmatpush1.bf16.msra.mxu0 %v2472
        %2565 = vmatprep.subr.bf16.mxu0 0
        %2566 = vmatpush1.bf16.msra.mxu0 %v2471
        %2567 = vmatprep.subr.bf16.mxu0 0
        %2568 = vmatpush1.bf16.msra.mxu0 %v2470
        %2569 = vmatprep.subr.bf16.mxu0 0
        %2570 = vmatpush1.bf16.msra.mxu0 %v2469
        %2571 = vmatprep.subr.bf16.mxu0 0
        %2572 = vmatpush1.bf16.msra.mxu0 %v2468
        %2573 = vmatprep.subr.bf16.mxu0 0
        %2574 = vmatpush2.bf16.msra.mxu0 %v2483
        %2575 = vmatprep.subr.bf16.mxu0 0
        %2576 = vmatpush2.bf16.msra.mxu0 %v2482
        %2577 = vmatprep.subr.bf16.mxu0 0
        %2578 = vmatpush2.bf16.msra.mxu0 %v2481
        %2579 = vmatprep.subr.bf16.mxu0 0
        %2580 = vmatpush2.bf16.msra.mxu0 %v2480
        %2581 = vmatprep.subr.bf16.mxu0 0
        %2582 = vmatpush2.bf16.msra.mxu0 %v2479
        %2583 = vmatprep.subr.bf16.mxu0 0
        %2584 = vmatpush2.bf16.msra.mxu0 %v2478
        %2585 = vmatprep.subr.bf16.mxu0 0
        %2586 = vmatpush2.bf16.msra.mxu0 %v2477
        %2587 = vmatprep.subr.bf16.mxu0 0
        %2588 = vmatpush2.bf16.msra.mxu0 %v2476
        %2589 = vmatprep.mubr.bf16.mxu0 %v2252
        %2590 = vmatmul.mubr.bf16.gmra.mxu0 %v2251
        %v2591 = vpop.f32.mrf.mxu0
        %v2592 = vadd.f32 %v2551, %v2591
        %v2593 = vpop.f32.mrf.mxu0
        %v2594 = vpop.f32.mrf.mxu0
        %v2595 = vadd.f32 %v2554, %v2594
        %v2596 = vpop.f32.mrf.mxu0
        %2597 = vdwg.mxu0
        %v2598 = vadd.f32 %v1874, %v2592
        %v2599 = vadd.f32 %v1875, %v2595
        %v2600 = vld [vmem:[%s781] sm:$0x1]
        %v2601 = vld [vmem:[%s789] sm:$0x1]
        %2602 = vadd.xlane.f32.xlu0 %v2598
        %v2603 = vpop.xlane.xlu0 %2602
        %2604 = vadd.xlane.f32.xlu0 %v2599
        %v2605 = vpop.xlane.xlu0 %2604
        %v2606 = vmul.f32 %v2603, %v1841
        %v2607 = vmul.f32 %v2605, %v1841
        %v2608 = vsub.f32 %v2598, %v2606
        %v2609 = vsub.f32 %v2599, %v2607
        %v2610 = vmul.f32 %v2608, %v2608
        %v2611 = vmul.f32 %v2609, %v2609
        %2612 = vadd.xlane.f32.xlu0 %v2610
        %v2613 = vpop.xlane.xlu0 %2612
        %2614 = vadd.xlane.f32.xlu0 %v2611
        %v2615 = vpop.xlane.xlu0 %2614
        %v2616 = vmul.f32 %v2613, %v1841
        %v2617 = vmul.f32 %v2615, %v1841
        %v2618 = vadd.f32 %v2616, 1e-05
        %v2619 = vadd.f32 %v2617, 1e-05
        %v2620 = vrsqrt.pop %v2618
        %v2621 = vrsqrt.pop %v2619
        %v2622 = vmul.f32 %v2608, %v2620
        %v2623 = vmul.f32 %v2609, %v2621
        %v2625 = vlaneseq
        %v2626 = vshrl.u32 %v2625, 7
        %v2627 = vsub.s32 0, %v2626
        %v2628 = vrot.slane %v2600, %v2627
        %v2630 = vmul.f32 %v2622, %v2628
        %v2631 = vmul.f32 %v2623, %v2628
        %v2633 = vlaneseq
        %v2634 = vshrl.u32 %v2633, 7
        %v2635 = vsub.s32 0, %v2634
        %v2636 = vrot.slane %v2601, %v2635
        %v2638 = vadd.f32 %v2630, %v2636
        %v2639 = vadd.f32 %v2631, %v2636
        %2640 = vst [vmem:[#allocation2] sm:$0xff] %v2638
        %2641 = vst [vmem:[#allocation2 + $0x8] sm:$0xff] %v2639
        %p2642 = scmp.eq.s32.totalorder %s42, 1
        // Predicated region
        $region133: #{roberta_large_forward.1} parent=99 // pred_check
          %p2643 = pneg %p2642
        $region134: #{roberta_large_forward.1} parent=99 // pred_check_branch
          %2645 = sbr.rel (%p2643) target = $region136
        $region135: #{roberta_large_forward.1} parent=99 // pred_region
          %v2646 = vpack.c.bf16 %v2638, %v2638
          %v2647 = vpack.c.bf16 %v2639, %v2639
          %v2648 = vld [vmem:[#allocation12] sm:$0xf]
          %v2649 = vld [vmem:[#allocation12 + $0x4] sm:$0xf]
          %v2650 = vld [vmem:[#allocation12 + $0x8] sm:$0xf]
          %v2651 = vld [vmem:[#allocation12 + $0xc] sm:$0xf]
          %v2652 = vld [vmem:[#allocation12 + $0x10] sm:$0xf]
          %v2653 = vld [vmem:[#allocation12 + $0x14] sm:$0xf]
          %v2654 = vld [vmem:[#allocation12 + $0x18] sm:$0xf]
          %v2655 = vld [vmem:[#allocation12 + $0x1c] sm:$0xf]
          %v2656 = vld [vmem:[#allocation12 + $0x20] sm:$0xf]
          %v2657 = vld [vmem:[#allocation12 + $0x24] sm:$0xf]
          %v2658 = vld [vmem:[#allocation12 + $0x28] sm:$0xf]
          %v2659 = vld [vmem:[#allocation12 + $0x2c] sm:$0xf]
          %v2660 = vld [vmem:[#allocation12 + $0x30] sm:$0xf]
          %v2661 = vld [vmem:[#allocation12 + $0x34] sm:$0xf]
          %v2662 = vld [vmem:[#allocation12 + $0x38] sm:$0xf]
          %v2663 = vld [vmem:[#allocation12 + $0x3c] sm:$0xf]
          %v2664 = vld [vmem:[%s17] sm:$0x1]
          %v2666 = vlaneseq
          %v2667 = vshrl.u32 %v2666, 7
          %v2668 = vsub.s32 0, %v2667
          %v2669 = vrot.slane %v2664, %v2668
          %v2673 = vunpack.c.l.b16 %v2646
          %v2674 = vunpack.c.l.b16 %v2647
          %v2675 = vrot.slane %v2674, 7
          %vm2676 = vcmask 1041409
          %v2677 = vsel %vm2676, %v2675, %v2673
          %v2678 = vpack.c.b16 %v2677, %v2677
          %v2696 = vunpack.c.l.b16 %v2648
          %v2697 = vunpack.c.l.b16 %v2649
          %v2698 = vunpack.c.l.b16 %v2650
          %v2699 = vunpack.c.l.b16 %v2651
          %v2700 = vunpack.c.l.b16 %v2652
          %v2701 = vunpack.c.l.b16 %v2653
          %v2702 = vunpack.c.l.b16 %v2654
          %v2703 = vunpack.c.l.b16 %v2655
          %v2704 = vunpack.c.l.b16 %v2656
          %v2705 = vunpack.c.l.b16 %v2657
          %v2706 = vunpack.c.l.b16 %v2658
          %v2707 = vunpack.c.l.b16 %v2659
          %v2708 = vunpack.c.l.b16 %v2660
          %v2709 = vunpack.c.l.b16 %v2661
          %v2710 = vunpack.c.l.b16 %v2662
          %v2711 = vunpack.c.l.b16 %v2663
          %v2712 = vpack.c.b16 %v2697, %v2696
          %v2713 = vpack.c.b16 %v2699, %v2698
          %v2714 = vpack.c.b16 %v2701, %v2700
          %v2715 = vpack.c.b16 %v2703, %v2702
          %v2716 = vpack.c.b16 %v2705, %v2704
          %v2717 = vpack.c.b16 %v2707, %v2706
          %v2718 = vpack.c.b16 %v2709, %v2708
          %v2719 = vpack.c.b16 %v2711, %v2710
          %2728 = vmatprep.subr.bf16.mxu0 0
          %2729 = vmatpush1.bf16.msra.mxu0 %v2719
          %2730 = vmatprep.subr.bf16.mxu0 0
          %2731 = vmatpush1.bf16.msra.mxu0 %v2718
          %2732 = vmatprep.subr.bf16.mxu0 0
          %2733 = vmatpush1.bf16.msra.mxu0 %v2717
          %2734 = vmatprep.subr.bf16.mxu0 0
          %2735 = vmatpush1.bf16.msra.mxu0 %v2716
          %2736 = vmatprep.subr.bf16.mxu0 0
          %2737 = vmatpush1.bf16.msra.mxu0 %v2715
          %2738 = vmatprep.subr.bf16.mxu0 0
          %2739 = vmatpush1.bf16.msra.mxu0 %v2714
          %2740 = vmatprep.subr.bf16.mxu0 0
          %2741 = vmatpush1.bf16.msra.mxu0 %v2713
          %2742 = vmatprep.subr.bf16.mxu0 0
          %2743 = vmatpush1.bf16.msra.mxu0 %v2712
          %2744 = vmatprep.subr.bf16.mxu0 0
          %2745 = vmatpush2.bf16.msra.mxu0 0
          %2746 = vmatprep.subr.bf16.mxu0 0
          %2747 = vmatpush2.bf16.msra.mxu0 0
          %2748 = vmatprep.subr.bf16.mxu0 0
          %2749 = vmatpush2.bf16.msra.mxu0 0
          %2750 = vmatprep.subr.bf16.mxu0 0
          %2751 = vmatpush2.bf16.msra.mxu0 0
          %2752 = vmatprep.subr.bf16.mxu0 0
          %2753 = vmatpush2.bf16.msra.mxu0 0
          %2754 = vmatprep.subr.bf16.mxu0 0
          %2755 = vmatpush2.bf16.msra.mxu0 0
          %2756 = vmatprep.subr.bf16.mxu0 0
          %2757 = vmatpush2.bf16.msra.mxu0 0
          %2758 = vmatprep.subr.bf16.mxu0 0
          %2759 = vmatpush2.bf16.msra.mxu0 0
          %2760 = vmatprep.mubr.bf16.mxu0 0
          %2761 = vmatmul.mubr.bf16.gmra.mxu0 %v2678
          %v2762 = vpop.f32.mrf.mxu0
          %v2763 = vadd.f32 %v2669, %v2762
          %v2764 = vpop.f32.mrf.mxu0
          %v2765 = vpop.f32.mrf.mxu0
          %v2766 = vpop.f32.mrf.mxu0
          %2767 = vdwg.mxu0
          %v2768 = vtanh.pop %v2763
          %v2769 = vpack.c.bf16 %v2768, %v2768
          %v2770 = vld [vmem:[#allocation14] sm:$0xf]
          %v2771 = vld [vmem:[#allocation14 + $0x4] sm:$0xf]
          %v2772 = vld [vmem:[#allocation14 + $0x8] sm:$0xf]
          %v2773 = vld [vmem:[#allocation14 + $0xc] sm:$0xf]
          %v2774 = vld [vmem:[#allocation14 + $0x10] sm:$0xf]
          %v2775 = vld [vmem:[#allocation14 + $0x14] sm:$0xf]
          %v2776 = vld [vmem:[#allocation14 + $0x18] sm:$0xf]
          %v2777 = vld [vmem:[#allocation14 + $0x1c] sm:$0xf]
          %v2778 = vld [vmem:[#allocation14 + $0x20] sm:$0xf]
          %v2779 = vld [vmem:[#allocation14 + $0x24] sm:$0xf]
          %v2780 = vld [vmem:[#allocation14 + $0x28] sm:$0xf]
          %v2781 = vld [vmem:[#allocation14 + $0x2c] sm:$0xf]
          %v2782 = vld [vmem:[#allocation14 + $0x30] sm:$0xf]
          %v2783 = vld [vmem:[#allocation14 + $0x34] sm:$0xf]
          %v2784 = vld [vmem:[#allocation14 + $0x38] sm:$0xf]
          %v2785 = vld [vmem:[#allocation14 + $0x3c] sm:$0xf]
          %v2786 = vld [vmem:[%s19] sm:$0x1]
          %v2788 = vlaneseq
          %v2789 = vshrl.u32 %v2788, 7
          %v2790 = vsub.s32 0, %v2789
          %v2791 = vrot.slane %v2786, %v2790
          %v2809 = vunpack.c.l.b16 %v2770
          %v2810 = vunpack.c.l.b16 %v2771
          %v2811 = vunpack.c.l.b16 %v2772
          %v2812 = vunpack.c.l.b16 %v2773
          %v2813 = vunpack.c.l.b16 %v2774
          %v2814 = vunpack.c.l.b16 %v2775
          %v2815 = vunpack.c.l.b16 %v2776
          %v2816 = vunpack.c.l.b16 %v2777
          %v2817 = vunpack.c.l.b16 %v2778
          %v2818 = vunpack.c.l.b16 %v2779
          %v2819 = vunpack.c.l.b16 %v2780
          %v2820 = vunpack.c.l.b16 %v2781
          %v2821 = vunpack.c.l.b16 %v2782
          %v2822 = vunpack.c.l.b16 %v2783
          %v2823 = vunpack.c.l.b16 %v2784
          %v2824 = vunpack.c.l.b16 %v2785
          %v2825 = vpack.c.b16 %v2810, %v2809
          %v2826 = vpack.c.b16 %v2812, %v2811
          %v2827 = vpack.c.b16 %v2814, %v2813
          %v2828 = vpack.c.b16 %v2816, %v2815
          %v2829 = vpack.c.b16 %v2818, %v2817
          %v2830 = vpack.c.b16 %v2820, %v2819
          %v2831 = vpack.c.b16 %v2822, %v2821
          %v2832 = vpack.c.b16 %v2824, %v2823
          %2841 = vmatprep.subr.bf16.mxu0 0
          %2842 = vmatpush1.bf16.msra.mxu0 %v2832
          %2843 = vmatprep.subr.bf16.mxu0 0
          %2844 = vmatpush1.bf16.msra.mxu0 %v2831
          %2845 = vmatprep.subr.bf16.mxu0 0
          %2846 = vmatpush1.bf16.msra.mxu0 %v2830
          %2847 = vmatprep.subr.bf16.mxu0 0
          %2848 = vmatpush1.bf16.msra.mxu0 %v2829
          %2849 = vmatprep.subr.bf16.mxu0 0
          %2850 = vmatpush1.bf16.msra.mxu0 %v2828
          %2851 = vmatprep.subr.bf16.mxu0 0
          %2852 = vmatpush1.bf16.msra.mxu0 %v2827
          %2853 = vmatprep.subr.bf16.mxu0 0
          %2854 = vmatpush1.bf16.msra.mxu0 %v2826
          %2855 = vmatprep.subr.bf16.mxu0 0
          %2856 = vmatpush1.bf16.msra.mxu0 %v2825
          %2857 = vmatprep.subr.bf16.mxu0 0
          %2858 = vmatpush2.bf16.msra.mxu0 0
          %2859 = vmatprep.subr.bf16.mxu0 0
          %2860 = vmatpush2.bf16.msra.mxu0 0
          %2861 = vmatprep.subr.bf16.mxu0 0
          %2862 = vmatpush2.bf16.msra.mxu0 0
          %2863 = vmatprep.subr.bf16.mxu0 0
          %2864 = vmatpush2.bf16.msra.mxu0 0
          %2865 = vmatprep.subr.bf16.mxu0 0
          %2866 = vmatpush2.bf16.msra.mxu0 0
          %2867 = vmatprep.subr.bf16.mxu0 0
          %2868 = vmatpush2.bf16.msra.mxu0 0
          %2869 = vmatprep.subr.bf16.mxu0 0
          %2870 = vmatpush2.bf16.msra.mxu0 0
          %2871 = vmatprep.subr.bf16.mxu0 0
          %2872 = vmatpush2.bf16.msra.mxu0 0
          %2873 = vmatprep.mubr.bf16.mxu0 0
          %2874 = vmatmul.mubr.bf16.gmra.mxu0 %v2769
          %v2875 = vpop.f32.mrf.mxu0
          %v2876 = vadd.f32 %v2791, %v2875
          %v2877 = vpop.f32.mrf.mxu0
          %v2878 = vpop.f32.mrf.mxu0
          %v2879 = vpop.f32.mrf.mxu0
          %2880 = vdwg.mxu0
          %2881 = vst [vmem:[#allocation15] sm:$0x3] %v2876
        $region136: #{roberta_large_forward.1} parent=99 // pred_fallthru
          _
        // Predicated region
        $region137: #{roberta_large_forward.1} parent=99 // pred_check
          %p2882 = pneg %p535
        $region138: #{roberta_large_forward.1} parent=99 // pred_check_branch
          %2884 = sbr.rel (%p2882) target = $region140
        $region139: #{roberta_large_forward.1} parent=99 // pred_region
          %s2886 = ssub.s32 32, 32
          %2887 = vsyncadd [#allocation5], %s2886
          %s2889 = sshll.u32 [#allocation15], 4
          %s2890 = int_to_ptr.vmem [resolvable:$true] %s2889
          %2892 = dma.vmem_to_hbm [thread:$0]  %s2890, 32, %s20, [#allocation5]
        $region140: #{roberta_large_forward.1} parent=99 // pred_fallthru
          _
        // Predicated region
        $region141: #{roberta_large_forward.1} parent=99 // pred_check
          %p2893 = pneg %p535
        $region142: #{roberta_large_forward.1} parent=99 // pred_check_branch
          %2895 = sbr.rel (%p2893) target = $region144
        $region143: #{roberta_large_forward.1} parent=99 // pred_region
          %2896 = dma.done [#allocation5], 32
        $region144: #{roberta_large_forward.1} parent=99 // pred_fallthru
          _
      $region100: #{roberta_large_forward.1} parent=5 // pred_fallthru
        _
      %p2897 = scmp.le.s32.totalorder 2, %s37
      // Predicated region
      $region145: #{roberta_large_forward.1} parent=5 // pred_check
        %p2898 = pneg %p2897
      $region146: #{roberta_large_forward.1} parent=5 // pred_check_branch
        %2900 = sbr.rel (%p2898) target = $region148
      $region147: #{roberta_large_forward.1} parent=5 // pred_region
        %s2901 = ssub.s32 %s37, 2
      $region148: #{roberta_large_forward.1} parent=5 // pred_fallthru
        _
    $region6: #{roberta_large_forward.1} parent=1 // loop_footer
      %s41 = sadd.s32 1, %s37
    $region7: #{roberta_large_forward.1} parent=1 // loop_footer_branch
      %36 = sbr.rel target = $region3
    $region8: #{roberta_large_forward.1} parent=1 // loop_exit
      _
    %2902 = vsyncpa [#allocation4], 1
    %s2903 = scalar_lea.sflag [#allocation4], 1
    %2904 = vsyncpa %s2903, 1
    %2905 = vsyncpa [#allocation7], 1
    %s2906 = scalar_lea.sflag [#allocation7], 1
    %2907 = vsyncpa %s2906, 1
    %2908 = vsyncpa [#allocation10], 1
    %s2909 = scalar_lea.sflag [#allocation10], 1
    %2910 = vsyncpa %s2909, 1
    %2911 = vsyncpa [#allocation13], 1
    %2912 = vsyncpa [#allocation5], 1
    %s2913 = scalar_lea.sflag [#allocation5], 1
    %2914 = vsyncpa %s2913, 1

</llo_original>
